<compile_context>
chip_gen: v7x
topology: tpu7x:2x2x1
jax: 0.10.0
libtpu: 0.0.40
codegen_flags: <defaults>
</compile_context>

<pallas_src>
import functools

import jax
import jax.numpy as jnp
from jax.experimental import pallas as pl
from jax.experimental.pallas import tpu as pltpu

# ---------------- small synthetic BERT config ----------------
VOCAB = 64
HIDDEN = 32
LAYERS = 2
HEADS = 4
HEAD_DIM = HIDDEN // HEADS
INTERMEDIATE = 64
MAX_POS = 16
TYPE_VOCAB = 2
LN_EPS = 1e-12
NUM_LABELS = 3
FC1_DIM = 128
LABEL_PAD = 128          # lane-dense padded width of the classifier output


# ---------------- fused whole-model kernel (single grid step) ----------------
def _bert_kernel(x_emb_ref, mask_ref, emb_g_ref, emb_b_ref,
                 wqkv_ref, bqkv_ref, wo_ref, bo_ref, ln1_g_ref, ln1_b_ref,
                 wi_ref, bi_ref, wout_ref, bout_ref, ln2_g_ref, ln2_b_ref,
                 pool_w_ref, pool_b_ref, fc1_w_ref, fc1_b_ref,
                 out_w_ref, out_b_ref,
                 probs_ref,
                 x_vmem):
    BS, H = x_emb_ref.shape
    B, S = mask_ref.shape

    def _ln(y, g, b):
        mu = jnp.mean(y, axis=-1, keepdims=True)
        yc = y - mu
        var = jnp.mean(yc * yc, axis=-1, keepdims=True)
        return yc * jax.lax.rsqrt(var + LN_EPS) * g + b

    def _mm(a, w, bias):
        # bf16 MXU operands, f32 accumulation, f32 bias add.
        return jnp.dot(a.astype(jnp.bfloat16), w,
                       preferred_element_type=jnp.float32) + bias

    # ---- embedding LayerNorm (no residual) ----
    x = _ln(x_emb_ref[...], emb_g_ref[...], emb_b_ref[...])          # (BS, H) f32

    # additive mask broadcast once to (HEADS*B, 1, S); batch index = h*B + b
    mask_b3 = mask_ref[...][:, None, :]                               # (B, 1, S)
    mask_hb = jnp.concatenate([mask_b3] * HEADS, axis=0)              # (HEADS*B, 1, S)
    scale = 1.0 / float(HEAD_DIM) ** 0.5

    def split_heads(mat, base):
        # (BS, 3H) columns [base : base+H] -> (HEADS*B, S, HEAD_DIM), idx h*B+b
        parts = [mat[:, base + h * HEAD_DIM: base + (h + 1) * HEAD_DIM]
                 .reshape(B, S, HEAD_DIM) for h in range(HEADS)]
        return jnp.concatenate(parts, axis=0).astype(jnp.bfloat16)

    # ---- transformer layers: static unroll, activation stays in registers ----
    for l in range(LAYERS):
        # fused QKV projection
        qkv = _mm(x, wqkv_ref[l], bqkv_ref[l])                        # (BS, 3H) f32
        q = split_heads(qkv, 0)
        k = split_heads(qkv, H)
        v = split_heads(qkv, 2 * H)

        # all heads in one batched score / softmax / context
        s = jnp.einsum("bqd,bkd->bqk", q, k,
                       preferred_element_type=jnp.float32) * scale    # (HB, S, S)
        s = s + mask_hb
        s = s - jnp.max(s, axis=-1, keepdims=True)
        p = jnp.exp(s)
        p = p * pl.reciprocal(jnp.sum(p, axis=-1, keepdims=True), approx=True)
        ctx = jnp.einsum("bqk,bkd->bqd", p.astype(jnp.bfloat16), v,
                         preferred_element_type=jnp.float32)          # (HB, S, D)
        # merge heads back to (BS, H): out[b*S+s, h*D+d] = ctx[h*B+b, s, d]
        ctx = jnp.concatenate(
            [ctx[h * B:(h + 1) * B].reshape(BS, HEAD_DIM) for h in range(HEADS)],
            axis=1)                                                   # (BS, H)

        # attention output projection + fused residual LayerNorm
        attn_out = _mm(ctx, wo_ref[l], bo_ref[l])
        x = _ln(attn_out + x, ln1_g_ref[l], ln1_b_ref[l])

        # FFN + fused residual LayerNorm
        inter = _mm(x, wi_ref[l], bi_ref[l])
        # TODO(synk): tanh-approx GELU ("gelu_new") instead of HF's exact erf GELU.
        c0 = 0.7978845608028654  # sqrt(2/pi)
        inter = 0.5 * inter * (1.0 + jnp.tanh(
            c0 * (inter + 0.044715 * inter * inter * inter)))
        ffn = _mm(inter, wout_ref[l], bout_ref[l])
        x = _ln(ffn + x, ln2_g_ref[l], ln2_b_ref[l])

    # ---- pooler + classifier head + softmax ----
    x_vmem[...] = x
    cls = x_vmem[pl.ds(0, B, stride=S), :]                            # CLS rows 0, S, ...
    pooled = jnp.tanh(_mm(cls, pool_w_ref[...], pool_b_ref[...]))
    # TODO(synk): nn.Dropout() treated as eval-mode identity (no RNG drop).
    hid = jnp.maximum(_mm(pooled, fc1_w_ref[...], fc1_b_ref[...]), 0.0)
    z = _mm(hid, out_w_ref[...], out_b_ref[...])                      # (B, LABEL_PAD)
    # softmax over dim=1 (labels axis); padded columns carry -1e9 bias -> prob 0
    z = z - jnp.max(z, axis=1, keepdims=True)
    e = jnp.exp(z)
    probs_ref[...] = e / jnp.sum(e, axis=1, keepdims=True)            # exact division


def bert_fused(pp, x_emb, mask_add):
    BS, H = x_emb.shape
    B, S = mask_add.shape
    return pl.pallas_call(
        _bert_kernel,
        out_shape=jax.ShapeDtypeStruct((B, LABEL_PAD), jnp.float32),
        scratch_shapes=[pltpu.VMEM((BS, H), jnp.float32)],   # for strided CLS read
    )(x_emb, mask_add,
      pp["emb_g"], pp["emb_b"],
      pp["wqkv"], pp["bqkv"], pp["wo"], pp["bo"], pp["ln1_g"], pp["ln1_b"],
      pp["wi"], pp["bi"], pp["wout"], pp["bout"], pp["ln2_g"], pp["ln2_b"],
      pp["pool_w"], pp["pool_b"], pp["fc1_w"], pp["fc1_b"],
      pp["out_w"], pp["out_b"])


# ---------------- parameters (deterministic synthetic init) ----------------
def init_params(key):
    def nrm(k, shape):
        return 0.02 * jax.random.normal(k, shape, dtype=jnp.float32)

    keys = iter(jax.random.split(key, 16 + LAYERS * 16))
    p = {
        "word_emb": nrm(next(keys), (VOCAB, HIDDEN)),
        "pos_emb": nrm(next(keys), (MAX_POS, HIDDEN)),
        "type_emb": nrm(next(keys), (TYPE_VOCAB, HIDDEN)),
        "emb_ln_g": jnp.ones((HIDDEN,), jnp.float32),
        "emb_ln_b": jnp.zeros((HIDDEN,), jnp.float32),
        "pool_w": nrm(next(keys), (HIDDEN, HIDDEN)),
        "pool_b": jnp.zeros((HIDDEN,), jnp.float32),
        "fc1_w": nrm(next(keys), (HIDDEN, FC1_DIM)),
        "fc1_b": jnp.zeros((FC1_DIM,), jnp.float32),
        "out_w": nrm(next(keys), (FC1_DIM, NUM_LABELS)),
        "out_b": jnp.zeros((NUM_LABELS,), jnp.float32),
        "layers": [],
    }
    for _ in range(LAYERS):
        p["layers"].append({
            "wq": nrm(next(keys), (HIDDEN, HIDDEN)), "bq": jnp.zeros((HIDDEN,), jnp.float32),
            "wk": nrm(next(keys), (HIDDEN, HIDDEN)), "bk": jnp.zeros((HIDDEN,), jnp.float32),
            "wv": nrm(next(keys), (HIDDEN, HIDDEN)), "bv": jnp.zeros((HIDDEN,), jnp.float32),
            "wo": nrm(next(keys), (HIDDEN, HIDDEN)), "bo": jnp.zeros((HIDDEN,), jnp.float32),
            "ln1_g": jnp.ones((HIDDEN,), jnp.float32), "ln1_b": jnp.zeros((HIDDEN,), jnp.float32),
            "wi": nrm(next(keys), (HIDDEN, INTERMEDIATE)), "bi": jnp.zeros((INTERMEDIATE,), jnp.float32),
            "wout": nrm(next(keys), (INTERMEDIATE, HIDDEN)), "bout": jnp.zeros((HIDDEN,), jnp.float32),
            "ln2_g": jnp.ones((HIDDEN,), jnp.float32), "ln2_b": jnp.zeros((HIDDEN,), jnp.float32),
        })
    return p


def pack_params(p):
    """Stack per-layer weights to (LAYERS, ...), cast matmul weights to bf16,
    and pad the classifier output to a lane-dense LABEL_PAD width."""
    layers = p["layers"]

    def stack_w(name):
        return jnp.stack([lyr[name] for lyr in layers], axis=0).astype(jnp.bfloat16)

    def stack_v(name, n):
        return jnp.stack([lyr[name] for lyr in layers], axis=0).reshape(LAYERS, 1, n)

    wqkv = jnp.stack(
        [jnp.concatenate([lyr["wq"], lyr["wk"], lyr["wv"]], axis=1) for lyr in layers],
        axis=0).astype(jnp.bfloat16)                                   # (L, H, 3H)
    bqkv = jnp.stack(
        [jnp.concatenate([lyr["bq"], lyr["bk"], lyr["bv"]], axis=0) for lyr in layers],
        axis=0).reshape(LAYERS, 1, 3 * HIDDEN)                         # (L, 1, 3H)

    # lane-dense padded classifier: zero weight cols, -1e9 bias in pad cols
    out_w_pad = jnp.zeros((FC1_DIM, LABEL_PAD), jnp.float32)
    out_w_pad = out_w_pad.at[:, :NUM_LABELS].set(p["out_w"]).astype(jnp.bfloat16)
    out_b_pad = jnp.full((LABEL_PAD,), -1e9, jnp.float32)
    out_b_pad = out_b_pad.at[:NUM_LABELS].set(p["out_b"]).reshape(1, LABEL_PAD)

    return {
        "word_emb": p["word_emb"], "pos_emb": p["pos_emb"], "type_emb": p["type_emb"],
        "emb_g": p["emb_ln_g"].reshape(1, HIDDEN),
        "emb_b": p["emb_ln_b"].reshape(1, HIDDEN),
        "wqkv": wqkv, "bqkv": bqkv,
        "wo": stack_w("wo"), "bo": stack_v("bo", HIDDEN),
        "ln1_g": stack_v("ln1_g", HIDDEN), "ln1_b": stack_v("ln1_b", HIDDEN),
        "wi": stack_w("wi"), "bi": stack_v("bi", INTERMEDIATE),
        "wout": stack_w("wout"), "bout": stack_v("bout", HIDDEN),
        "ln2_g": stack_v("ln2_g", HIDDEN), "ln2_b": stack_v("ln2_b", HIDDEN),
        "pool_w": p["pool_w"].astype(jnp.bfloat16),
        "pool_b": p["pool_b"].reshape(1, HIDDEN),
        "fc1_w": p["fc1_w"].astype(jnp.bfloat16),
        "fc1_b": p["fc1_b"].reshape(1, FC1_DIM),
        "out_w": out_w_pad,
        "out_b": out_b_pad,
    }


# ---------------- full forward (embeddings in JAX, rest fused in Pallas) ----------------
def forward(packed, input_ids, attention_mask, labels=None):
    B, S = input_ids.shape

    # embeddings (gather is glue; LayerNorm runs inside the fused kernel)
    we = jnp.take(packed["word_emb"], input_ids, axis=0)          # (B,S,H)
    pe = packed["pos_emb"][:S][None, :, :]                        # (1,S,H)
    te = packed["type_emb"][0][None, None, :]                     # token_type_ids == 0
    x_emb = (we + pe + te).reshape(B * S, HIDDEN).astype(jnp.float32)

    # HF-style additive mask kept at (B, S); broadcast happens inside the kernel
    mask_add = (1.0 - attention_mask.astype(jnp.float32)) * -10000.0

    probs_pad = bert_fused(packed, x_emb, mask_add)               # (B, LABEL_PAD)
    probs = probs_pad[:, :NUM_LABELS]                             # (B, NUM_LABELS)

    loss = None
    if labels is not None:
        # module applies CrossEntropyLoss on the already-softmaxed logits
        logp = jax.nn.log_softmax(probs, axis=-1)
        loss = -jnp.mean(jnp.take_along_axis(logp, labels[:, None], axis=1))
    return {"logits": probs, "loss": loss}


if __name__ == "__main__":
    key = jax.random.PRNGKey(0)
    k_param, k_ids = jax.random.split(key)

    params = init_params(k_param)
    packed = pack_params(params)

    B, S = 2, 8
    input_ids = jax.random.randint(k_ids, (B, S), 0, VOCAB, dtype=jnp.int32)
    attention_mask = jnp.array(
        [[1, 1, 1, 1, 1, 1, 1, 1],
         [1, 1, 1, 1, 1, 0, 0, 0]], dtype=jnp.int32)
    labels = jnp.array([0, 2], dtype=jnp.int32)

    fwd = jax.jit(functools.partial(forward, packed))
    out = fwd(input_ids, attention_mask, labels)
    jax.block_until_ready(out["logits"])
    jax.block_until_ready(out["loss"])

    assert out["logits"].shape == (B, NUM_LABELS)
    assert bool(jnp.all(jnp.isfinite(out["logits"])))
    assert bool(jnp.isfinite(out["loss"]))
    print("KERNEL_OK")
</pallas_src>

<mosaic_0001>
module attributes {stable_mosaic.version = 11 : i64} {
  func.func @_bert_kernel(%arg0: memref<16x32xf32, #tpu.memory_space<vmem>>, %arg1: memref<2x8xf32, #tpu.memory_space<vmem>>, %arg2: memref<1x32xf32, #tpu.memory_space<vmem>>, %arg3: memref<1x32xf32, #tpu.memory_space<vmem>>, %arg4: memref<2x32x96xbf16, #tpu.memory_space<vmem>>, %arg5: memref<2x1x96xf32, #tpu.memory_space<vmem>>, %arg6: memref<2x32x32xbf16, #tpu.memory_space<vmem>>, %arg7: memref<2x1x32xf32, #tpu.memory_space<vmem>>, %arg8: memref<2x1x32xf32, #tpu.memory_space<vmem>>, %arg9: memref<2x1x32xf32, #tpu.memory_space<vmem>>, %arg10: memref<2x32x64xbf16, #tpu.memory_space<vmem>>, %arg11: memref<2x1x64xf32, #tpu.memory_space<vmem>>, %arg12: memref<2x64x32xbf16, #tpu.memory_space<vmem>>, %arg13: memref<2x1x32xf32, #tpu.memory_space<vmem>>, %arg14: memref<2x1x32xf32, #tpu.memory_space<vmem>>, %arg15: memref<2x1x32xf32, #tpu.memory_space<vmem>>, %arg16: memref<32x32xbf16, #tpu.memory_space<vmem>>, %arg17: memref<1x32xf32, #tpu.memory_space<vmem>>, %arg18: memref<32x128xbf16, #tpu.memory_space<vmem>>, %arg19: memref<1x128xf32, #tpu.memory_space<vmem>>, %arg20: memref<128x128xbf16, #tpu.memory_space<vmem>>, %arg21: memref<1x128xf32, #tpu.memory_space<vmem>>, %arg22: memref<2x128xf32, #tpu.memory_space<vmem>>, %arg23: memref<16x32xf32, #tpu.memory_space<vmem>>) attributes {dimension_semantics = [], scalar_prefetch = 0 : i64, scratch_operands = 1 : i64, tpu.core_type = #tpu.core_type<tc>} {
    %c0 = arith.constant 0 : index
    %c0_0 = arith.constant 0 : index
    %0 = vector.load %arg0[%c0, %c0_0] : memref<16x32xf32, #tpu.memory_space<vmem>>, vector<16x32xf32>
    %c0_1 = arith.constant 0 : index
    %c0_2 = arith.constant 0 : index
    %1 = vector.load %arg2[%c0_1, %c0_2] : memref<1x32xf32, #tpu.memory_space<vmem>>, vector<1x32xf32>
    %c0_3 = arith.constant 0 : index
    %c0_4 = arith.constant 0 : index
    %2 = vector.load %arg3[%c0_3, %c0_4] : memref<1x32xf32, #tpu.memory_space<vmem>>, vector<1x32xf32>
    %cst = arith.constant dense<0.000000e+00> : vector<16xf32>
    %3 = vector.multi_reduction <add>, %0, %cst [1] : vector<16x32xf32> to vector<16xf32>
    %4 = vector.shape_cast %3 : vector<16xf32> to vector<16x1xf32>
    %cst_5 = arith.constant 3.200000e+01 : f32
    %5 = vector.broadcast %cst_5 : f32 to vector<16x1xf32>
    %6 = arith.divf %4, %5 : vector<16x1xf32>
    %7 = vector.broadcast %6 : vector<16x1xf32> to vector<16x32xf32>
    %8 = arith.subf %0, %7 : vector<16x32xf32>
    %9 = arith.mulf %8, %8 : vector<16x32xf32>
    %cst_6 = arith.constant dense<0.000000e+00> : vector<16xf32>
    %10 = vector.multi_reduction <add>, %9, %cst_6 [1] : vector<16x32xf32> to vector<16xf32>
    %11 = vector.shape_cast %10 : vector<16xf32> to vector<16x1xf32>
    %cst_7 = arith.constant 3.200000e+01 : f32
    %12 = vector.broadcast %cst_7 : f32 to vector<16x1xf32>
    %13 = arith.divf %11, %12 : vector<16x1xf32>
    %cst_8 = arith.constant 9.99999996E-13 : f32
    %14 = vector.broadcast %cst_8 : f32 to vector<16x1xf32>
    %15 = arith.addf %13, %14 : vector<16x1xf32>
    %16 = math.rsqrt %15 : vector<16x1xf32>
    %17 = vector.broadcast %16 : vector<16x1xf32> to vector<16x32xf32>
    %18 = arith.mulf %8, %17 : vector<16x32xf32>
    %19 = vector.broadcast %1 : vector<1x32xf32> to vector<16x32xf32>
    %20 = arith.mulf %18, %19 : vector<16x32xf32>
    %21 = vector.broadcast %2 : vector<1x32xf32> to vector<16x32xf32>
    %22 = arith.addf %20, %21 : vector<16x32xf32>
    %c0_9 = arith.constant 0 : index
    %c0_10 = arith.constant 0 : index
    %23 = vector.load %arg1[%c0_9, %c0_10] : memref<2x8xf32, #tpu.memory_space<vmem>>, vector<2x8xf32>
    %24 = vector.shape_cast %23 : vector<2x8xf32> to vector<2x1x8xf32>
    %25 = tpu.concatenate %24, %24, %24, %24 in 0 : vector<2x1x8xf32>, vector<2x1x8xf32>, vector<2x1x8xf32>, vector<2x1x8xf32> -> vector<8x1x8xf32>
    %c0_11 = arith.constant 0 : index
    %c0_12 = arith.constant 0 : index
    %c0_13 = arith.constant 0 : index
    %26 = vector.load %arg4[%c0_11, %c0_12, %c0_13] : memref<2x32x96xbf16, #tpu.memory_space<vmem>>, vector<1x32x96xbf16>
    %27 = vector.shape_cast %26 : vector<1x32x96xbf16> to vector<32x96xbf16>
    %c0_14 = arith.constant 0 : index
    %c0_15 = arith.constant 0 : index
    %c0_16 = arith.constant 0 : index
    %28 = vector.load %arg5[%c0_14, %c0_15, %c0_16] : memref<2x1x96xf32, #tpu.memory_space<vmem>>, vector<1x1x96xf32>
    %29 = vector.shape_cast %28 : vector<1x1x96xf32> to vector<1x96xf32>
    %30 = arith.truncf %22 : vector<16x32xf32> to vector<16x32xbf16>
    %cst_17 = arith.constant dense<0.000000e+00> : vector<16x96xf32>
    %31 = tpu.matmul %30, %27, %cst_17 {dimension_numbers = #tpu.dot_dimension_numbers<[1], [0], [0], [1], [0, 0, 1, 1], [], []>} : vector<16x32xbf16>, vector<32x96xbf16>, vector<16x96xf32> -> vector<16x96xf32>
    %32 = vector.broadcast %29 : vector<1x96xf32> to vector<16x96xf32>
    %33 = arith.addf %31, %32 : vector<16x96xf32>
    %34 = vector.extract_strided_slice %33 {offsets = [0, 0], sizes = [16, 8], strides = [1, 1]} : vector<16x96xf32> to vector<16x8xf32>
    %35 = vector.shape_cast %34 : vector<16x8xf32> to vector<2x8x8xf32>
    %36 = vector.extract_strided_slice %33 {offsets = [0, 8], sizes = [16, 8], strides = [1, 1]} : vector<16x96xf32> to vector<16x8xf32>
    %37 = vector.shape_cast %36 : vector<16x8xf32> to vector<2x8x8xf32>
    %38 = vector.extract_strided_slice %33 {offsets = [0, 16], sizes = [16, 8], strides = [1, 1]} : vector<16x96xf32> to vector<16x8xf32>
    %39 = vector.shape_cast %38 : vector<16x8xf32> to vector<2x8x8xf32>
    %40 = vector.extract_strided_slice %33 {offsets = [0, 24], sizes = [16, 8], strides = [1, 1]} : vector<16x96xf32> to vector<16x8xf32>
    %41 = vector.shape_cast %40 : vector<16x8xf32> to vector<2x8x8xf32>
    %42 = tpu.concatenate %35, %37, %39, %41 in 0 : vector<2x8x8xf32>, vector<2x8x8xf32>, vector<2x8x8xf32>, vector<2x8x8xf32> -> vector<8x8x8xf32>
    %43 = arith.truncf %42 : vector<8x8x8xf32> to vector<8x8x8xbf16>
    %44 = vector.extract_strided_slice %33 {offsets = [0, 32], sizes = [16, 8], strides = [1, 1]} : vector<16x96xf32> to vector<16x8xf32>
    %45 = vector.shape_cast %44 : vector<16x8xf32> to vector<2x8x8xf32>
    %46 = vector.extract_strided_slice %33 {offsets = [0, 40], sizes = [16, 8], strides = [1, 1]} : vector<16x96xf32> to vector<16x8xf32>
    %47 = vector.shape_cast %46 : vector<16x8xf32> to vector<2x8x8xf32>
    %48 = vector.extract_strided_slice %33 {offsets = [0, 48], sizes = [16, 8], strides = [1, 1]} : vector<16x96xf32> to vector<16x8xf32>
    %49 = vector.shape_cast %48 : vector<16x8xf32> to vector<2x8x8xf32>
    %50 = vector.extract_strided_slice %33 {offsets = [0, 56], sizes = [16, 8], strides = [1, 1]} : vector<16x96xf32> to vector<16x8xf32>
    %51 = vector.shape_cast %50 : vector<16x8xf32> to vector<2x8x8xf32>
    %52 = tpu.concatenate %45, %47, %49, %51 in 0 : vector<2x8x8xf32>, vector<2x8x8xf32>, vector<2x8x8xf32>, vector<2x8x8xf32> -> vector<8x8x8xf32>
    %53 = arith.truncf %52 : vector<8x8x8xf32> to vector<8x8x8xbf16>
    %54 = vector.extract_strided_slice %33 {offsets = [0, 64], sizes = [16, 8], strides = [1, 1]} : vector<16x96xf32> to vector<16x8xf32>
    %55 = vector.shape_cast %54 : vector<16x8xf32> to vector<2x8x8xf32>
    %56 = vector.extract_strided_slice %33 {offsets = [0, 72], sizes = [16, 8], strides = [1, 1]} : vector<16x96xf32> to vector<16x8xf32>
    %57 = vector.shape_cast %56 : vector<16x8xf32> to vector<2x8x8xf32>
    %58 = vector.extract_strided_slice %33 {offsets = [0, 80], sizes = [16, 8], strides = [1, 1]} : vector<16x96xf32> to vector<16x8xf32>
    %59 = vector.shape_cast %58 : vector<16x8xf32> to vector<2x8x8xf32>
    %60 = vector.extract_strided_slice %33 {offsets = [0, 88], sizes = [16, 8], strides = [1, 1]} : vector<16x96xf32> to vector<16x8xf32>
    %61 = vector.shape_cast %60 : vector<16x8xf32> to vector<2x8x8xf32>
    %62 = tpu.concatenate %55, %57, %59, %61 in 0 : vector<2x8x8xf32>, vector<2x8x8xf32>, vector<2x8x8xf32>, vector<2x8x8xf32> -> vector<8x8x8xf32>
    %63 = arith.truncf %62 : vector<8x8x8xf32> to vector<8x8x8xbf16>
    "tpu.trace_start"() <{level = 10 : i32, message = "bqd,bkd->bqk"}> : () -> ()
    %cst_18 = arith.constant dense<0.000000e+00> : vector<8x8x8xf32>
    %64 = tpu.matmul %43, %53, %cst_18 {dimension_numbers = #tpu.dot_dimension_numbers<[2], [2], [1], [1], [0, 0, 0, 1, 1, 1], [0], [0]>} : vector<8x8x8xbf16>, vector<8x8x8xbf16>, vector<8x8x8xf32> -> vector<8x8x8xf32>
    "tpu.trace_stop"() : () -> ()
    %cst_19 = arith.constant 0.353553385 : f32
    %65 = vector.broadcast %cst_19 : f32 to vector<8x8x8xf32>
    %66 = arith.mulf %64, %65 : vector<8x8x8xf32>
    %67 = vector.broadcast %25 : vector<8x1x8xf32> to vector<8x8x8xf32>
    %68 = arith.addf %66, %67 : vector<8x8x8xf32>
    %cst_20 = arith.constant dense<0xFF800000> : vector<8x8xf32>
    %69 = vector.multi_reduction <maximumf>, %68, %cst_20 [2] : vector<8x8x8xf32> to vector<8x8xf32>
    %70 = vector.shape_cast %69 : vector<8x8xf32> to vector<8x8x1xf32>
    %71 = vector.broadcast %70 : vector<8x8x1xf32> to vector<8x8x8xf32>
    %72 = arith.subf %68, %71 : vector<8x8x8xf32>
    %73 = math.exp %72 : vector<8x8x8xf32>
    %cst_21 = arith.constant dense<0.000000e+00> : vector<8x8xf32>
    %74 = vector.multi_reduction <add>, %73, %cst_21 [2] : vector<8x8x8xf32> to vector<8x8xf32>
    %75 = vector.shape_cast %74 : vector<8x8xf32> to vector<8x8x1xf32>
    %76 = tpu.reciprocal %75 {approx = true} : vector<8x8x1xf32> -> vector<8x8x1xf32>
    %77 = vector.broadcast %76 : vector<8x8x1xf32> to vector<8x8x8xf32>
    %78 = arith.mulf %73, %77 : vector<8x8x8xf32>
    %79 = arith.truncf %78 : vector<8x8x8xf32> to vector<8x8x8xbf16>
    "tpu.trace_start"() <{level = 10 : i32, message = "bqk,bkd->bqd"}> : () -> ()
    %cst_22 = arith.constant dense<0.000000e+00> : vector<8x8x8xf32>
    %80 = tpu.matmul %79, %63, %cst_22 {dimension_numbers = #tpu.dot_dimension_numbers<[2], [1], [1], [2], [0, 0, 0, 1, 1, 2], [0], [0]>} : vector<8x8x8xbf16>, vector<8x8x8xbf16>, vector<8x8x8xf32> -> vector<8x8x8xf32>
    "tpu.trace_stop"() : () -> ()
    %81 = vector.extract_strided_slice %80 {offsets = [0, 0, 0], sizes = [2, 8, 8], strides = [1, 1, 1]} : vector<8x8x8xf32> to vector<2x8x8xf32>
    %82 = vector.shape_cast %81 : vector<2x8x8xf32> to vector<16x8xf32>
    %83 = vector.extract_strided_slice %80 {offsets = [2, 0, 0], sizes = [2, 8, 8], strides = [1, 1, 1]} : vector<8x8x8xf32> to vector<2x8x8xf32>
    %84 = vector.shape_cast %83 : vector<2x8x8xf32> to vector<16x8xf32>
    %85 = vector.extract_strided_slice %80 {offsets = [4, 0, 0], sizes = [2, 8, 8], strides = [1, 1, 1]} : vector<8x8x8xf32> to vector<2x8x8xf32>
    %86 = vector.shape_cast %85 : vector<2x8x8xf32> to vector<16x8xf32>
    %87 = vector.extract_strided_slice %80 {offsets = [6, 0, 0], sizes = [2, 8, 8], strides = [1, 1, 1]} : vector<8x8x8xf32> to vector<2x8x8xf32>
    %88 = vector.shape_cast %87 : vector<2x8x8xf32> to vector<16x8xf32>
    %89 = tpu.concatenate %82, %84, %86, %88 in 1 : vector<16x8xf32>, vector<16x8xf32>, vector<16x8xf32>, vector<16x8xf32> -> vector<16x32xf32>
    %c0_23 = arith.constant 0 : index
    %c0_24 = arith.constant 0 : index
    %c0_25 = arith.constant 0 : index
    %90 = vector.load %arg6[%c0_23, %c0_24, %c0_25] : memref<2x32x32xbf16, #tpu.memory_space<vmem>>, vector<1x32x32xbf16>
    %91 = vector.shape_cast %90 : vector<1x32x32xbf16> to vector<32x32xbf16>
    %c0_26 = arith.constant 0 : index
    %c0_27 = arith.constant 0 : index
    %c0_28 = arith.constant 0 : index
    %92 = vector.load %arg7[%c0_26, %c0_27, %c0_28] : memref<2x1x32xf32, #tpu.memory_space<vmem>>, vector<1x1x32xf32>
    %93 = vector.shape_cast %92 : vector<1x1x32xf32> to vector<1x32xf32>
    %94 = arith.truncf %89 : vector<16x32xf32> to vector<16x32xbf16>
    %cst_29 = arith.constant dense<0.000000e+00> : vector<16x32xf32>
    %95 = tpu.matmul %94, %91, %cst_29 {dimension_numbers = #tpu.dot_dimension_numbers<[1], [0], [0], [1], [0, 0, 1, 1], [], []>} : vector<16x32xbf16>, vector<32x32xbf16>, vector<16x32xf32> -> vector<16x32xf32>
    %96 = vector.broadcast %93 : vector<1x32xf32> to vector<16x32xf32>
    %97 = arith.addf %95, %96 : vector<16x32xf32>
    %98 = arith.addf %97, %22 : vector<16x32xf32>
    %c0_30 = arith.constant 0 : index
    %c0_31 = arith.constant 0 : index
    %c0_32 = arith.constant 0 : index
    %99 = vector.load %arg8[%c0_30, %c0_31, %c0_32] : memref<2x1x32xf32, #tpu.memory_space<vmem>>, vector<1x1x32xf32>
    %100 = vector.shape_cast %99 : vector<1x1x32xf32> to vector<1x32xf32>
    %c0_33 = arith.constant 0 : index
    %c0_34 = arith.constant 0 : index
    %c0_35 = arith.constant 0 : index
    %101 = vector.load %arg9[%c0_33, %c0_34, %c0_35] : memref<2x1x32xf32, #tpu.memory_space<vmem>>, vector<1x1x32xf32>
    %102 = vector.shape_cast %101 : vector<1x1x32xf32> to vector<1x32xf32>
    %cst_36 = arith.constant dense<0.000000e+00> : vector<16xf32>
    %103 = vector.multi_reduction <add>, %98, %cst_36 [1] : vector<16x32xf32> to vector<16xf32>
    %104 = vector.shape_cast %103 : vector<16xf32> to vector<16x1xf32>
    %cst_37 = arith.constant 3.200000e+01 : f32
    %105 = vector.broadcast %cst_37 : f32 to vector<16x1xf32>
    %106 = arith.divf %104, %105 : vector<16x1xf32>
    %107 = vector.broadcast %106 : vector<16x1xf32> to vector<16x32xf32>
    %108 = arith.subf %98, %107 : vector<16x32xf32>
    %109 = arith.mulf %108, %108 : vector<16x32xf32>
    %cst_38 = arith.constant dense<0.000000e+00> : vector<16xf32>
    %110 = vector.multi_reduction <add>, %109, %cst_38 [1] : vector<16x32xf32> to vector<16xf32>
    %111 = vector.shape_cast %110 : vector<16xf32> to vector<16x1xf32>
    %cst_39 = arith.constant 3.200000e+01 : f32
    %112 = vector.broadcast %cst_39 : f32 to vector<16x1xf32>
    %113 = arith.divf %111, %112 : vector<16x1xf32>
    %cst_40 = arith.constant 9.99999996E-13 : f32
    %114 = vector.broadcast %cst_40 : f32 to vector<16x1xf32>
    %115 = arith.addf %113, %114 : vector<16x1xf32>
    %116 = math.rsqrt %115 : vector<16x1xf32>
    %117 = vector.broadcast %116 : vector<16x1xf32> to vector<16x32xf32>
    %118 = arith.mulf %108, %117 : vector<16x32xf32>
    %119 = vector.broadcast %100 : vector<1x32xf32> to vector<16x32xf32>
    %120 = arith.mulf %118, %119 : vector<16x32xf32>
    %121 = vector.broadcast %102 : vector<1x32xf32> to vector<16x32xf32>
    %122 = arith.addf %120, %121 : vector<16x32xf32>
    %c0_41 = arith.constant 0 : index
    %c0_42 = arith.constant 0 : index
    %c0_43 = arith.constant 0 : index
    %123 = vector.load %arg10[%c0_41, %c0_42, %c0_43] : memref<2x32x64xbf16, #tpu.memory_space<vmem>>, vector<1x32x64xbf16>
    %124 = vector.shape_cast %123 : vector<1x32x64xbf16> to vector<32x64xbf16>
    %c0_44 = arith.constant 0 : index
    %c0_45 = arith.constant 0 : index
    %c0_46 = arith.constant 0 : index
    %125 = vector.load %arg11[%c0_44, %c0_45, %c0_46] : memref<2x1x64xf32, #tpu.memory_space<vmem>>, vector<1x1x64xf32>
    %126 = vector.shape_cast %125 : vector<1x1x64xf32> to vector<1x64xf32>
    %127 = arith.truncf %122 : vector<16x32xf32> to vector<16x32xbf16>
    %cst_47 = arith.constant dense<0.000000e+00> : vector<16x64xf32>
    %128 = tpu.matmul %127, %124, %cst_47 {dimension_numbers = #tpu.dot_dimension_numbers<[1], [0], [0], [1], [0, 0, 1, 1], [], []>} : vector<16x32xbf16>, vector<32x64xbf16>, vector<16x64xf32> -> vector<16x64xf32>
    %129 = vector.broadcast %126 : vector<1x64xf32> to vector<16x64xf32>
    %130 = arith.addf %128, %129 : vector<16x64xf32>
    %cst_48 = arith.constant 5.000000e-01 : f32
    %131 = vector.broadcast %cst_48 : f32 to vector<16x64xf32>
    %132 = arith.mulf %131, %130 : vector<16x64xf32>
    %cst_49 = arith.constant 4.471500e-02 : f32
    %133 = vector.broadcast %cst_49 : f32 to vector<16x64xf32>
    %134 = arith.mulf %133, %130 : vector<16x64xf32>
    %135 = arith.mulf %134, %130 : vector<16x64xf32>
    %136 = arith.mulf %135, %130 : vector<16x64xf32>
    %137 = arith.addf %130, %136 : vector<16x64xf32>
    %cst_50 = arith.constant 0.797884583 : f32
    %138 = vector.broadcast %cst_50 : f32 to vector<16x64xf32>
    %139 = arith.mulf %138, %137 : vector<16x64xf32>
    %140 = math.tanh %139 : vector<16x64xf32>
    %cst_51 = arith.constant 1.000000e+00 : f32
    %141 = vector.broadcast %cst_51 : f32 to vector<16x64xf32>
    %142 = arith.addf %141, %140 : vector<16x64xf32>
    %143 = arith.mulf %132, %142 : vector<16x64xf32>
    %c0_52 = arith.constant 0 : index
    %c0_53 = arith.constant 0 : index
    %c0_54 = arith.constant 0 : index
    %144 = vector.load %arg12[%c0_52, %c0_53, %c0_54] : memref<2x64x32xbf16, #tpu.memory_space<vmem>>, vector<1x64x32xbf16>
    %145 = vector.shape_cast %144 : vector<1x64x32xbf16> to vector<64x32xbf16>
    %c0_55 = arith.constant 0 : index
    %c0_56 = arith.constant 0 : index
    %c0_57 = arith.constant 0 : index
    %146 = vector.load %arg13[%c0_55, %c0_56, %c0_57] : memref<2x1x32xf32, #tpu.memory_space<vmem>>, vector<1x1x32xf32>
    %147 = vector.shape_cast %146 : vector<1x1x32xf32> to vector<1x32xf32>
    %148 = arith.truncf %143 : vector<16x64xf32> to vector<16x64xbf16>
    %cst_58 = arith.constant dense<0.000000e+00> : vector<16x32xf32>
    %149 = tpu.matmul %148, %145, %cst_58 {dimension_numbers = #tpu.dot_dimension_numbers<[1], [0], [0], [1], [0, 0, 1, 1], [], []>} : vector<16x64xbf16>, vector<64x32xbf16>, vector<16x32xf32> -> vector<16x32xf32>
    %150 = vector.broadcast %147 : vector<1x32xf32> to vector<16x32xf32>
    %151 = arith.addf %149, %150 : vector<16x32xf32>
    %152 = arith.addf %151, %122 : vector<16x32xf32>
    %c0_59 = arith.constant 0 : index
    %c0_60 = arith.constant 0 : index
    %c0_61 = arith.constant 0 : index
    %153 = vector.load %arg14[%c0_59, %c0_60, %c0_61] : memref<2x1x32xf32, #tpu.memory_space<vmem>>, vector<1x1x32xf32>
    %154 = vector.shape_cast %153 : vector<1x1x32xf32> to vector<1x32xf32>
    %c0_62 = arith.constant 0 : index
    %c0_63 = arith.constant 0 : index
    %c0_64 = arith.constant 0 : index
    %155 = vector.load %arg15[%c0_62, %c0_63, %c0_64] : memref<2x1x32xf32, #tpu.memory_space<vmem>>, vector<1x1x32xf32>
    %156 = vector.shape_cast %155 : vector<1x1x32xf32> to vector<1x32xf32>
    %cst_65 = arith.constant dense<0.000000e+00> : vector<16xf32>
    %157 = vector.multi_reduction <add>, %152, %cst_65 [1] : vector<16x32xf32> to vector<16xf32>
    %158 = vector.shape_cast %157 : vector<16xf32> to vector<16x1xf32>
    %cst_66 = arith.constant 3.200000e+01 : f32
    %159 = vector.broadcast %cst_66 : f32 to vector<16x1xf32>
    %160 = arith.divf %158, %159 : vector<16x1xf32>
    %161 = vector.broadcast %160 : vector<16x1xf32> to vector<16x32xf32>
    %162 = arith.subf %152, %161 : vector<16x32xf32>
    %163 = arith.mulf %162, %162 : vector<16x32xf32>
    %cst_67 = arith.constant dense<0.000000e+00> : vector<16xf32>
    %164 = vector.multi_reduction <add>, %163, %cst_67 [1] : vector<16x32xf32> to vector<16xf32>
    %165 = vector.shape_cast %164 : vector<16xf32> to vector<16x1xf32>
    %cst_68 = arith.constant 3.200000e+01 : f32
    %166 = vector.broadcast %cst_68 : f32 to vector<16x1xf32>
    %167 = arith.divf %165, %166 : vector<16x1xf32>
    %cst_69 = arith.constant 9.99999996E-13 : f32
    %168 = vector.broadcast %cst_69 : f32 to vector<16x1xf32>
    %169 = arith.addf %167, %168 : vector<16x1xf32>
    %170 = math.rsqrt %169 : vector<16x1xf32>
    %171 = vector.broadcast %170 : vector<16x1xf32> to vector<16x32xf32>
    %172 = arith.mulf %162, %171 : vector<16x32xf32>
    %173 = vector.broadcast %154 : vector<1x32xf32> to vector<16x32xf32>
    %174 = arith.mulf %172, %173 : vector<16x32xf32>
    %175 = vector.broadcast %156 : vector<1x32xf32> to vector<16x32xf32>
    %176 = arith.addf %174, %175 : vector<16x32xf32>
    %c1 = arith.constant 1 : index
    %c0_70 = arith.constant 0 : index
    %c0_71 = arith.constant 0 : index
    %177 = vector.load %arg4[%c1, %c0_70, %c0_71] : memref<2x32x96xbf16, #tpu.memory_space<vmem>>, vector<1x32x96xbf16>
    %178 = vector.shape_cast %177 : vector<1x32x96xbf16> to vector<32x96xbf16>
    %c1_72 = arith.constant 1 : index
    %c0_73 = arith.constant 0 : index
    %c0_74 = arith.constant 0 : index
    %179 = vector.load %arg5[%c1_72, %c0_73, %c0_74] : memref<2x1x96xf32, #tpu.memory_space<vmem>>, vector<1x1x96xf32>
    %180 = vector.shape_cast %179 : vector<1x1x96xf32> to vector<1x96xf32>
    %181 = arith.truncf %176 : vector<16x32xf32> to vector<16x32xbf16>
    %cst_75 = arith.constant dense<0.000000e+00> : vector<16x96xf32>
    %182 = tpu.matmul %181, %178, %cst_75 {dimension_numbers = #tpu.dot_dimension_numbers<[1], [0], [0], [1], [0, 0, 1, 1], [], []>} : vector<16x32xbf16>, vector<32x96xbf16>, vector<16x96xf32> -> vector<16x96xf32>
    %183 = vector.broadcast %180 : vector<1x96xf32> to vector<16x96xf32>
    %184 = arith.addf %182, %183 : vector<16x96xf32>
    %185 = vector.extract_strided_slice %184 {offsets = [0, 0], sizes = [16, 8], strides = [1, 1]} : vector<16x96xf32> to vector<16x8xf32>
    %186 = vector.shape_cast %185 : vector<16x8xf32> to vector<2x8x8xf32>
    %187 = vector.extract_strided_slice %184 {offsets = [0, 8], sizes = [16, 8], strides = [1, 1]} : vector<16x96xf32> to vector<16x8xf32>
    %188 = vector.shape_cast %187 : vector<16x8xf32> to vector<2x8x8xf32>
    %189 = vector.extract_strided_slice %184 {offsets = [0, 16], sizes = [16, 8], strides = [1, 1]} : vector<16x96xf32> to vector<16x8xf32>
    %190 = vector.shape_cast %189 : vector<16x8xf32> to vector<2x8x8xf32>
    %191 = vector.extract_strided_slice %184 {offsets = [0, 24], sizes = [16, 8], strides = [1, 1]} : vector<16x96xf32> to vector<16x8xf32>
    %192 = vector.shape_cast %191 : vector<16x8xf32> to vector<2x8x8xf32>
    %193 = tpu.concatenate %186, %188, %190, %192 in 0 : vector<2x8x8xf32>, vector<2x8x8xf32>, vector<2x8x8xf32>, vector<2x8x8xf32> -> vector<8x8x8xf32>
    %194 = arith.truncf %193 : vector<8x8x8xf32> to vector<8x8x8xbf16>
    %195 = vector.extract_strided_slice %184 {offsets = [0, 32], sizes = [16, 8], strides = [1, 1]} : vector<16x96xf32> to vector<16x8xf32>
    %196 = vector.shape_cast %195 : vector<16x8xf32> to vector<2x8x8xf32>
    %197 = vector.extract_strided_slice %184 {offsets = [0, 40], sizes = [16, 8], strides = [1, 1]} : vector<16x96xf32> to vector<16x8xf32>
    %198 = vector.shape_cast %197 : vector<16x8xf32> to vector<2x8x8xf32>
    %199 = vector.extract_strided_slice %184 {offsets = [0, 48], sizes = [16, 8], strides = [1, 1]} : vector<16x96xf32> to vector<16x8xf32>
    %200 = vector.shape_cast %199 : vector<16x8xf32> to vector<2x8x8xf32>
    %201 = vector.extract_strided_slice %184 {offsets = [0, 56], sizes = [16, 8], strides = [1, 1]} : vector<16x96xf32> to vector<16x8xf32>
    %202 = vector.shape_cast %201 : vector<16x8xf32> to vector<2x8x8xf32>
    %203 = tpu.concatenate %196, %198, %200, %202 in 0 : vector<2x8x8xf32>, vector<2x8x8xf32>, vector<2x8x8xf32>, vector<2x8x8xf32> -> vector<8x8x8xf32>
    %204 = arith.truncf %203 : vector<8x8x8xf32> to vector<8x8x8xbf16>
    %205 = vector.extract_strided_slice %184 {offsets = [0, 64], sizes = [16, 8], strides = [1, 1]} : vector<16x96xf32> to vector<16x8xf32>
    %206 = vector.shape_cast %205 : vector<16x8xf32> to vector<2x8x8xf32>
    %207 = vector.extract_strided_slice %184 {offsets = [0, 72], sizes = [16, 8], strides = [1, 1]} : vector<16x96xf32> to vector<16x8xf32>
    %208 = vector.shape_cast %207 : vector<16x8xf32> to vector<2x8x8xf32>
    %209 = vector.extract_strided_slice %184 {offsets = [0, 80], sizes = [16, 8], strides = [1, 1]} : vector<16x96xf32> to vector<16x8xf32>
    %210 = vector.shape_cast %209 : vector<16x8xf32> to vector<2x8x8xf32>
    %211 = vector.extract_strided_slice %184 {offsets = [0, 88], sizes = [16, 8], strides = [1, 1]} : vector<16x96xf32> to vector<16x8xf32>
    %212 = vector.shape_cast %211 : vector<16x8xf32> to vector<2x8x8xf32>
    %213 = tpu.concatenate %206, %208, %210, %212 in 0 : vector<2x8x8xf32>, vector<2x8x8xf32>, vector<2x8x8xf32>, vector<2x8x8xf32> -> vector<8x8x8xf32>
    %214 = arith.truncf %213 : vector<8x8x8xf32> to vector<8x8x8xbf16>
    "tpu.trace_start"() <{level = 10 : i32, message = "bqd,bkd->bqk"}> : () -> ()
    %cst_76 = arith.constant dense<0.000000e+00> : vector<8x8x8xf32>
    %215 = tpu.matmul %194, %204, %cst_76 {dimension_numbers = #tpu.dot_dimension_numbers<[2], [2], [1], [1], [0, 0, 0, 1, 1, 1], [0], [0]>} : vector<8x8x8xbf16>, vector<8x8x8xbf16>, vector<8x8x8xf32> -> vector<8x8x8xf32>
    "tpu.trace_stop"() : () -> ()
    %cst_77 = arith.constant 0.353553385 : f32
    %216 = vector.broadcast %cst_77 : f32 to vector<8x8x8xf32>
    %217 = arith.mulf %215, %216 : vector<8x8x8xf32>
    %218 = vector.broadcast %25 : vector<8x1x8xf32> to vector<8x8x8xf32>
    %219 = arith.addf %217, %218 : vector<8x8x8xf32>
    %cst_78 = arith.constant dense<0xFF800000> : vector<8x8xf32>
    %220 = vector.multi_reduction <maximumf>, %219, %cst_78 [2] : vector<8x8x8xf32> to vector<8x8xf32>
    %221 = vector.shape_cast %220 : vector<8x8xf32> to vector<8x8x1xf32>
    %222 = vector.broadcast %221 : vector<8x8x1xf32> to vector<8x8x8xf32>
    %223 = arith.subf %219, %222 : vector<8x8x8xf32>
    %224 = math.exp %223 : vector<8x8x8xf32>
    %cst_79 = arith.constant dense<0.000000e+00> : vector<8x8xf32>
    %225 = vector.multi_reduction <add>, %224, %cst_79 [2] : vector<8x8x8xf32> to vector<8x8xf32>
    %226 = vector.shape_cast %225 : vector<8x8xf32> to vector<8x8x1xf32>
    %227 = tpu.reciprocal %226 {approx = true} : vector<8x8x1xf32> -> vector<8x8x1xf32>
    %228 = vector.broadcast %227 : vector<8x8x1xf32> to vector<8x8x8xf32>
    %229 = arith.mulf %224, %228 : vector<8x8x8xf32>
    %230 = arith.truncf %229 : vector<8x8x8xf32> to vector<8x8x8xbf16>
    "tpu.trace_start"() <{level = 10 : i32, message = "bqk,bkd->bqd"}> : () -> ()
    %cst_80 = arith.constant dense<0.000000e+00> : vector<8x8x8xf32>
    %231 = tpu.matmul %230, %214, %cst_80 {dimension_numbers = #tpu.dot_dimension_numbers<[2], [1], [1], [2], [0, 0, 0, 1, 1, 2], [0], [0]>} : vector<8x8x8xbf16>, vector<8x8x8xbf16>, vector<8x8x8xf32> -> vector<8x8x8xf32>
    "tpu.trace_stop"() : () -> ()
    %232 = vector.extract_strided_slice %231 {offsets = [0, 0, 0], sizes = [2, 8, 8], strides = [1, 1, 1]} : vector<8x8x8xf32> to vector<2x8x8xf32>
    %233 = vector.shape_cast %232 : vector<2x8x8xf32> to vector<16x8xf32>
    %234 = vector.extract_strided_slice %231 {offsets = [2, 0, 0], sizes = [2, 8, 8], strides = [1, 1, 1]} : vector<8x8x8xf32> to vector<2x8x8xf32>
    %235 = vector.shape_cast %234 : vector<2x8x8xf32> to vector<16x8xf32>
    %236 = vector.extract_strided_slice %231 {offsets = [4, 0, 0], sizes = [2, 8, 8], strides = [1, 1, 1]} : vector<8x8x8xf32> to vector<2x8x8xf32>
    %237 = vector.shape_cast %236 : vector<2x8x8xf32> to vector<16x8xf32>
    %238 = vector.extract_strided_slice %231 {offsets = [6, 0, 0], sizes = [2, 8, 8], strides = [1, 1, 1]} : vector<8x8x8xf32> to vector<2x8x8xf32>
    %239 = vector.shape_cast %238 : vector<2x8x8xf32> to vector<16x8xf32>
    %240 = tpu.concatenate %233, %235, %237, %239 in 1 : vector<16x8xf32>, vector<16x8xf32>, vector<16x8xf32>, vector<16x8xf32> -> vector<16x32xf32>
    %c1_81 = arith.constant 1 : index
    %c0_82 = arith.constant 0 : index
    %c0_83 = arith.constant 0 : index
    %241 = vector.load %arg6[%c1_81, %c0_82, %c0_83] : memref<2x32x32xbf16, #tpu.memory_space<vmem>>, vector<1x32x32xbf16>
    %242 = vector.shape_cast %241 : vector<1x32x32xbf16> to vector<32x32xbf16>
    %c1_84 = arith.constant 1 : index
    %c0_85 = arith.constant 0 : index
    %c0_86 = arith.constant 0 : index
    %243 = vector.load %arg7[%c1_84, %c0_85, %c0_86] : memref<2x1x32xf32, #tpu.memory_space<vmem>>, vector<1x1x32xf32>
    %244 = vector.shape_cast %243 : vector<1x1x32xf32> to vector<1x32xf32>
    %245 = arith.truncf %240 : vector<16x32xf32> to vector<16x32xbf16>
    %cst_87 = arith.constant dense<0.000000e+00> : vector<16x32xf32>
    %246 = tpu.matmul %245, %242, %cst_87 {dimension_numbers = #tpu.dot_dimension_numbers<[1], [0], [0], [1], [0, 0, 1, 1], [], []>} : vector<16x32xbf16>, vector<32x32xbf16>, vector<16x32xf32> -> vector<16x32xf32>
    %247 = vector.broadcast %244 : vector<1x32xf32> to vector<16x32xf32>
    %248 = arith.addf %246, %247 : vector<16x32xf32>
    %249 = arith.addf %248, %176 : vector<16x32xf32>
    %c1_88 = arith.constant 1 : index
    %c0_89 = arith.constant 0 : index
    %c0_90 = arith.constant 0 : index
    %250 = vector.load %arg8[%c1_88, %c0_89, %c0_90] : memref<2x1x32xf32, #tpu.memory_space<vmem>>, vector<1x1x32xf32>
    %251 = vector.shape_cast %250 : vector<1x1x32xf32> to vector<1x32xf32>
    %c1_91 = arith.constant 1 : index
    %c0_92 = arith.constant 0 : index
    %c0_93 = arith.constant 0 : index
    %252 = vector.load %arg9[%c1_91, %c0_92, %c0_93] : memref<2x1x32xf32, #tpu.memory_space<vmem>>, vector<1x1x32xf32>
    %253 = vector.shape_cast %252 : vector<1x1x32xf32> to vector<1x32xf32>
    %cst_94 = arith.constant dense<0.000000e+00> : vector<16xf32>
    %254 = vector.multi_reduction <add>, %249, %cst_94 [1] : vector<16x32xf32> to vector<16xf32>
    %255 = vector.shape_cast %254 : vector<16xf32> to vector<16x1xf32>
    %cst_95 = arith.constant 3.200000e+01 : f32
    %256 = vector.broadcast %cst_95 : f32 to vector<16x1xf32>
    %257 = arith.divf %255, %256 : vector<16x1xf32>
    %258 = vector.broadcast %257 : vector<16x1xf32> to vector<16x32xf32>
    %259 = arith.subf %249, %258 : vector<16x32xf32>
    %260 = arith.mulf %259, %259 : vector<16x32xf32>
    %cst_96 = arith.constant dense<0.000000e+00> : vector<16xf32>
    %261 = vector.multi_reduction <add>, %260, %cst_96 [1] : vector<16x32xf32> to vector<16xf32>
    %262 = vector.shape_cast %261 : vector<16xf32> to vector<16x1xf32>
    %cst_97 = arith.constant 3.200000e+01 : f32
    %263 = vector.broadcast %cst_97 : f32 to vector<16x1xf32>
    %264 = arith.divf %262, %263 : vector<16x1xf32>
    %cst_98 = arith.constant 9.99999996E-13 : f32
    %265 = vector.broadcast %cst_98 : f32 to vector<16x1xf32>
    %266 = arith.addf %264, %265 : vector<16x1xf32>
    %267 = math.rsqrt %266 : vector<16x1xf32>
    %268 = vector.broadcast %267 : vector<16x1xf32> to vector<16x32xf32>
    %269 = arith.mulf %259, %268 : vector<16x32xf32>
    %270 = vector.broadcast %251 : vector<1x32xf32> to vector<16x32xf32>
    %271 = arith.mulf %269, %270 : vector<16x32xf32>
    %272 = vector.broadcast %253 : vector<1x32xf32> to vector<16x32xf32>
    %273 = arith.addf %271, %272 : vector<16x32xf32>
    %c1_99 = arith.constant 1 : index
    %c0_100 = arith.constant 0 : index
    %c0_101 = arith.constant 0 : index
    %274 = vector.load %arg10[%c1_99, %c0_100, %c0_101] : memref<2x32x64xbf16, #tpu.memory_space<vmem>>, vector<1x32x64xbf16>
    %275 = vector.shape_cast %274 : vector<1x32x64xbf16> to vector<32x64xbf16>
    %c1_102 = arith.constant 1 : index
    %c0_103 = arith.constant 0 : index
    %c0_104 = arith.constant 0 : index
    %276 = vector.load %arg11[%c1_102, %c0_103, %c0_104] : memref<2x1x64xf32, #tpu.memory_space<vmem>>, vector<1x1x64xf32>
    %277 = vector.shape_cast %276 : vector<1x1x64xf32> to vector<1x64xf32>
    %278 = arith.truncf %273 : vector<16x32xf32> to vector<16x32xbf16>
    %cst_105 = arith.constant dense<0.000000e+00> : vector<16x64xf32>
    %279 = tpu.matmul %278, %275, %cst_105 {dimension_numbers = #tpu.dot_dimension_numbers<[1], [0], [0], [1], [0, 0, 1, 1], [], []>} : vector<16x32xbf16>, vector<32x64xbf16>, vector<16x64xf32> -> vector<16x64xf32>
    %280 = vector.broadcast %277 : vector<1x64xf32> to vector<16x64xf32>
    %281 = arith.addf %279, %280 : vector<16x64xf32>
    %cst_106 = arith.constant 5.000000e-01 : f32
    %282 = vector.broadcast %cst_106 : f32 to vector<16x64xf32>
    %283 = arith.mulf %282, %281 : vector<16x64xf32>
    %cst_107 = arith.constant 4.471500e-02 : f32
    %284 = vector.broadcast %cst_107 : f32 to vector<16x64xf32>
    %285 = arith.mulf %284, %281 : vector<16x64xf32>
    %286 = arith.mulf %285, %281 : vector<16x64xf32>
    %287 = arith.mulf %286, %281 : vector<16x64xf32>
    %288 = arith.addf %281, %287 : vector<16x64xf32>
    %cst_108 = arith.constant 0.797884583 : f32
    %289 = vector.broadcast %cst_108 : f32 to vector<16x64xf32>
    %290 = arith.mulf %289, %288 : vector<16x64xf32>
    %291 = math.tanh %290 : vector<16x64xf32>
    %cst_109 = arith.constant 1.000000e+00 : f32
    %292 = vector.broadcast %cst_109 : f32 to vector<16x64xf32>
    %293 = arith.addf %292, %291 : vector<16x64xf32>
    %294 = arith.mulf %283, %293 : vector<16x64xf32>
    %c1_110 = arith.constant 1 : index
    %c0_111 = arith.constant 0 : index
    %c0_112 = arith.constant 0 : index
    %295 = vector.load %arg12[%c1_110, %c0_111, %c0_112] : memref<2x64x32xbf16, #tpu.memory_space<vmem>>, vector<1x64x32xbf16>
    %296 = vector.shape_cast %295 : vector<1x64x32xbf16> to vector<64x32xbf16>
    %c1_113 = arith.constant 1 : index
    %c0_114 = arith.constant 0 : index
    %c0_115 = arith.constant 0 : index
    %297 = vector.load %arg13[%c1_113, %c0_114, %c0_115] : memref<2x1x32xf32, #tpu.memory_space<vmem>>, vector<1x1x32xf32>
    %298 = vector.shape_cast %297 : vector<1x1x32xf32> to vector<1x32xf32>
    %299 = arith.truncf %294 : vector<16x64xf32> to vector<16x64xbf16>
    %cst_116 = arith.constant dense<0.000000e+00> : vector<16x32xf32>
    %300 = tpu.matmul %299, %296, %cst_116 {dimension_numbers = #tpu.dot_dimension_numbers<[1], [0], [0], [1], [0, 0, 1, 1], [], []>} : vector<16x64xbf16>, vector<64x32xbf16>, vector<16x32xf32> -> vector<16x32xf32>
    %301 = vector.broadcast %298 : vector<1x32xf32> to vector<16x32xf32>
    %302 = arith.addf %300, %301 : vector<16x32xf32>
    %303 = arith.addf %302, %273 : vector<16x32xf32>
    %c1_117 = arith.constant 1 : index
    %c0_118 = arith.constant 0 : index
    %c0_119 = arith.constant 0 : index
    %304 = vector.load %arg14[%c1_117, %c0_118, %c0_119] : memref<2x1x32xf32, #tpu.memory_space<vmem>>, vector<1x1x32xf32>
    %305 = vector.shape_cast %304 : vector<1x1x32xf32> to vector<1x32xf32>
    %c1_120 = arith.constant 1 : index
    %c0_121 = arith.constant 0 : index
    %c0_122 = arith.constant 0 : index
    %306 = vector.load %arg15[%c1_120, %c0_121, %c0_122] : memref<2x1x32xf32, #tpu.memory_space<vmem>>, vector<1x1x32xf32>
    %307 = vector.shape_cast %306 : vector<1x1x32xf32> to vector<1x32xf32>
    %cst_123 = arith.constant dense<0.000000e+00> : vector<16xf32>
    %308 = vector.multi_reduction <add>, %303, %cst_123 [1] : vector<16x32xf32> to vector<16xf32>
    %309 = vector.shape_cast %308 : vector<16xf32> to vector<16x1xf32>
    %cst_124 = arith.constant 3.200000e+01 : f32
    %310 = vector.broadcast %cst_124 : f32 to vector<16x1xf32>
    %311 = arith.divf %309, %310 : vector<16x1xf32>
    %312 = vector.broadcast %311 : vector<16x1xf32> to vector<16x32xf32>
    %313 = arith.subf %303, %312 : vector<16x32xf32>
    %314 = arith.mulf %313, %313 : vector<16x32xf32>
    %cst_125 = arith.constant dense<0.000000e+00> : vector<16xf32>
    %315 = vector.multi_reduction <add>, %314, %cst_125 [1] : vector<16x32xf32> to vector<16xf32>
    %316 = vector.shape_cast %315 : vector<16xf32> to vector<16x1xf32>
    %cst_126 = arith.constant 3.200000e+01 : f32
    %317 = vector.broadcast %cst_126 : f32 to vector<16x1xf32>
    %318 = arith.divf %316, %317 : vector<16x1xf32>
    %cst_127 = arith.constant 9.99999996E-13 : f32
    %319 = vector.broadcast %cst_127 : f32 to vector<16x1xf32>
    %320 = arith.addf %318, %319 : vector<16x1xf32>
    %321 = math.rsqrt %320 : vector<16x1xf32>
    %322 = vector.broadcast %321 : vector<16x1xf32> to vector<16x32xf32>
    %323 = arith.mulf %313, %322 : vector<16x32xf32>
    %324 = vector.broadcast %305 : vector<1x32xf32> to vector<16x32xf32>
    %325 = arith.mulf %323, %324 : vector<16x32xf32>
    %326 = vector.broadcast %307 : vector<1x32xf32> to vector<16x32xf32>
    %327 = arith.addf %325, %326 : vector<16x32xf32>
    %c0_128 = arith.constant 0 : index
    %c0_129 = arith.constant 0 : index
    %328 = vector.load %arg23[%c0_128, %c0_129] : memref<16x32xf32, #tpu.memory_space<vmem>>, vector<16x32xf32>
    tpu.vector_store %arg23[%c0_128, %c0_129], %327 {strides = array<i32>} : memref<16x32xf32, #tpu.memory_space<vmem>>, vector<16x32xf32>,
    %c0_130 = arith.constant 0 : index
    %c0_131 = arith.constant 0 : index
    %329 = tpu.strided_load %arg23[%c0_130, %c0_131] {strides = array<i32: 8, 1>} : memref<16x32xf32, #tpu.memory_space<vmem>>, vector<2x32xf32>
    %c0_132 = arith.constant 0 : index
    %c0_133 = arith.constant 0 : index
    %330 = vector.load %arg16[%c0_132, %c0_133] : memref<32x32xbf16, #tpu.memory_space<vmem>>, vector<32x32xbf16>
    %c0_134 = arith.constant 0 : index
    %c0_135 = arith.constant 0 : index
    %331 = vector.load %arg17[%c0_134, %c0_135] : memref<1x32xf32, #tpu.memory_space<vmem>>, vector<1x32xf32>
    %332 = arith.truncf %329 : vector<2x32xf32> to vector<2x32xbf16>
    %cst_136 = arith.constant dense<0.000000e+00> : vector<2x32xf32>
    %333 = tpu.matmul %332, %330, %cst_136 {dimension_numbers = #tpu.dot_dimension_numbers<[1], [0], [0], [1], [0, 0, 1, 1], [], []>} : vector<2x32xbf16>, vector<32x32xbf16>, vector<2x32xf32> -> vector<2x32xf32>
    %334 = vector.broadcast %331 : vector<1x32xf32> to vector<2x32xf32>
    %335 = arith.addf %333, %334 : vector<2x32xf32>
    %336 = math.tanh %335 : vector<2x32xf32>
    %c0_137 = arith.constant 0 : index
    %c0_138 = arith.constant 0 : index
    %337 = vector.load %arg18[%c0_137, %c0_138] : memref<32x128xbf16, #tpu.memory_space<vmem>>, vector<32x128xbf16>
    %c0_139 = arith.constant 0 : index
    %c0_140 = arith.constant 0 : index
    %338 = vector.load %arg19[%c0_139, %c0_140] : memref<1x128xf32, #tpu.memory_space<vmem>>, vector<1x128xf32>
    %339 = arith.truncf %336 : vector<2x32xf32> to vector<2x32xbf16>
    %cst_141 = arith.constant dense<0.000000e+00> : vector<2x128xf32>
    %340 = tpu.matmul %339, %337, %cst_141 {dimension_numbers = #tpu.dot_dimension_numbers<[1], [0], [0], [1], [0, 0, 1, 1], [], []>} : vector<2x32xbf16>, vector<32x128xbf16>, vector<2x128xf32> -> vector<2x128xf32>
    %341 = vector.broadcast %338 : vector<1x128xf32> to vector<2x128xf32>
    %342 = arith.addf %340, %341 : vector<2x128xf32>
    %cst_142 = arith.constant 0.000000e+00 : f32
    %343 = vector.broadcast %cst_142 : f32 to vector<2x128xf32>
    %344 = arith.maximumf %342, %343 : vector<2x128xf32>
    %c0_143 = arith.constant 0 : index
    %c0_144 = arith.constant 0 : index
    %345 = vector.load %arg20[%c0_143, %c0_144] : memref<128x128xbf16, #tpu.memory_space<vmem>>, vector<128x128xbf16>
    %c0_145 = arith.constant 0 : index
    %c0_146 = arith.constant 0 : index
    %346 = vector.load %arg21[%c0_145, %c0_146] : memref<1x128xf32, #tpu.memory_space<vmem>>, vector<1x128xf32>
    %347 = arith.truncf %344 : vector<2x128xf32> to vector<2x128xbf16>
    %cst_147 = arith.constant dense<0.000000e+00> : vector<2x128xf32>
    %348 = tpu.matmul %347, %345, %cst_147 {dimension_numbers = #tpu.dot_dimension_numbers<[1], [0], [0], [1], [0, 0, 1, 1], [], []>} : vector<2x128xbf16>, vector<128x128xbf16>, vector<2x128xf32> -> vector<2x128xf32>
    %349 = vector.broadcast %346 : vector<1x128xf32> to vector<2x128xf32>
    %350 = arith.addf %348, %349 : vector<2x128xf32>
    %cst_148 = arith.constant dense<0xFF800000> : vector<2xf32>
    %351 = vector.multi_reduction <maximumf>, %350, %cst_148 [1] : vector<2x128xf32> to vector<2xf32>
    %352 = vector.shape_cast %351 : vector<2xf32> to vector<2x1xf32>
    %353 = vector.broadcast %352 : vector<2x1xf32> to vector<2x128xf32>
    %354 = arith.subf %350, %353 : vector<2x128xf32>
    %355 = math.exp %354 : vector<2x128xf32>
    %cst_149 = arith.constant dense<0.000000e+00> : vector<2xf32>
    %356 = vector.multi_reduction <add>, %355, %cst_149 [1] : vector<2x128xf32> to vector<2xf32>
    %357 = vector.shape_cast %356 : vector<2xf32> to vector<2x1xf32>
    %358 = vector.broadcast %357 : vector<2x1xf32> to vector<2x128xf32>
    %359 = arith.divf %355, %358 : vector<2x128xf32>
    %c0_150 = arith.constant 0 : index
    %c0_151 = arith.constant 0 : index
    %360 = vector.load %arg22[%c0_150, %c0_151] : memref<2x128xf32, #tpu.memory_space<vmem>>, vector<2x128xf32>
    tpu.vector_store %arg22[%c0_150, %c0_151], %359 {strides = array<i32>} : memref<2x128xf32, #tpu.memory_space<vmem>>, vector<2x128xf32>,
    return
  }
}

</mosaic_0001>

<llo_original>
// kernel: forward.1
$region0: #{forward.1}
  #allocation0 [shape = 'u32[]', space=smem, size = 0x4, offset = 0x4, fixed_abs, tag = 'smem constant byte address 0x4 - core index']
  #allocation1 [shape = 'u32[144,128]{1,0:T(1,128)}', space=vmem, size = 0x12000, scoped, tag = 'internal scratch']
  #allocation2 [shape = 'f32[16,32]{1,0:T(8,128)}', space=vmem, size = 0x2000, scoped, tag = 'scratch operand']
  %s0 = inlined_call_operand.vmem [shape: f32[16,32], index: 0, kind: input, shape index: {}]
  %s1 = inlined_call_operand.vmem [shape: f32[2,8], index: 1, kind: input, shape index: {}]
  %s2 = inlined_call_operand.vmem [shape: f32[1,32], index: 2, kind: input, shape index: {}]
  %s3 = inlined_call_operand.vmem [shape: f32[1,32], index: 3, kind: input, shape index: {}, may-alias: {3,17}]
  %s4 = inlined_call_operand.vmem [shape: bf16[2,32,96], index: 4, kind: input, shape index: {}]
  %s5 = inlined_call_operand.vmem [shape: f32[2,1,96], index: 5, kind: input, shape index: {}]
  %s6 = inlined_call_operand.vmem [shape: bf16[2,32,32], index: 6, kind: input, shape index: {}]
  %s7 = inlined_call_operand.vmem [shape: f32[2,1,32], index: 7, kind: input, shape index: {}, may-alias: {7,9,13,15}]
  %s8 = inlined_call_operand.vmem [shape: f32[2,1,32], index: 8, kind: input, shape index: {}, may-alias: {8,14}]
  %s9 = inlined_call_operand.vmem [shape: f32[2,1,32], index: 9, kind: input, shape index: {}, may-alias: {7,9,13,15}]
  %s10 = inlined_call_operand.vmem [shape: bf16[2,32,64], index: 10, kind: input, shape index: {}]
  %s11 = inlined_call_operand.vmem [shape: f32[2,1,64], index: 11, kind: input, shape index: {}]
  %s12 = inlined_call_operand.vmem [shape: bf16[2,64,32], index: 12, kind: input, shape index: {}]
  %s13 = inlined_call_operand.vmem [shape: f32[2,1,32], index: 13, kind: input, shape index: {}, may-alias: {7,9,13,15}]
  %s14 = inlined_call_operand.vmem [shape: f32[2,1,32], index: 14, kind: input, shape index: {}, may-alias: {8,14}]
  %s15 = inlined_call_operand.vmem [shape: f32[2,1,32], index: 15, kind: input, shape index: {}, may-alias: {7,9,13,15}]
  %s16 = inlined_call_operand.vmem [shape: bf16[32,32], index: 16, kind: input, shape index: {}]
  %s17 = inlined_call_operand.vmem [shape: f32[1,32], index: 17, kind: input, shape index: {}, may-alias: {3,17}]
  %s18 = inlined_call_operand.vmem [shape: bf16[32,128], index: 18, kind: input, shape index: {}]
  %s19 = inlined_call_operand.vmem [shape: f32[1,128], index: 19, kind: input, shape index: {}]
  %s20 = inlined_call_operand.vmem [shape: bf16[128,128], index: 20, kind: input, shape index: {}]
  %s21 = inlined_call_operand.vmem [shape: f32[1,128], index: 21, kind: input, shape index: {}]
  %s22 = inlined_call_operand.vmem [shape: f32[2,128], index: 22, kind: output, shape index: {}]
  %s23 = sld [smem:[#allocation0]]
  $region98: #{forward.1} parent=0
    _
  %s25 = ssub.s32 1, %s23
  %s26 = scalar_select 0, %s25, %s23
  // Predicated region
  $region2: #{forward.1} parent=0 // pred_check
    _
  $region3: #{forward.1} parent=0 // pred_check_branch
    %28 = sbr.rel (0) target = $region5
  $region4: #{forward.1} parent=0 // pred_region
    _
  $region5: #{forward.1} parent=0 // pred_fallthru
    _
  // Predicated region
  $region6: #{forward.1} parent=0 // pred_check
    _
  $region7: #{forward.1} parent=0 // pred_check_branch
    %30 = sbr.rel (0) target = $region9
  $region8: #{forward.1} parent=0 // pred_region
    _
  $region9: #{forward.1} parent=0 // pred_fallthru
    _
  // Predicated region
  $region10: #{forward.1} parent=0 // pred_check
    _
  $region11: #{forward.1} parent=0 // pred_check_branch
    %32 = sbr.rel (0) target = $region13
  $region12: #{forward.1} parent=0 // pred_region
    _
  $region13: #{forward.1} parent=0 // pred_fallthru
    _
  // Predicated region
  $region14: #{forward.1} parent=0 // pred_check
    _
  $region15: #{forward.1} parent=0 // pred_check_branch
    %34 = sbr.rel (0) target = $region17
  $region16: #{forward.1} parent=0 // pred_region
    _
  $region17: #{forward.1} parent=0 // pred_fallthru
    _
  // Predicated region
  $region18: #{forward.1} parent=0 // pred_check
    _
  $region19: #{forward.1} parent=0 // pred_check_branch
    %36 = sbr.rel (0) target = $region21
  $region20: #{forward.1} parent=0 // pred_region
    _
  $region21: #{forward.1} parent=0 // pred_fallthru
    _
  // Predicated region
  $region22: #{forward.1} parent=0 // pred_check
    _
  $region23: #{forward.1} parent=0 // pred_check_branch
    %38 = sbr.rel (0) target = $region25
  $region24: #{forward.1} parent=0 // pred_region
    _
  $region25: #{forward.1} parent=0 // pred_fallthru
    _
  // Predicated region
  $region26: #{forward.1} parent=0 // pred_check
    _
  $region27: #{forward.1} parent=0 // pred_check_branch
    %40 = sbr.rel (0) target = $region29
  $region28: #{forward.1} parent=0 // pred_region
    _
  $region29: #{forward.1} parent=0 // pred_fallthru
    _
  // Predicated region
  $region30: #{forward.1} parent=0 // pred_check
    _
  $region31: #{forward.1} parent=0 // pred_check_branch
    %42 = sbr.rel (0) target = $region33
  $region32: #{forward.1} parent=0 // pred_region
    _
  $region33: #{forward.1} parent=0 // pred_fallthru
    _
  // Predicated region
  $region34: #{forward.1} parent=0 // pred_check
    _
  $region35: #{forward.1} parent=0 // pred_check_branch
    %44 = sbr.rel (0) target = $region37
  $region36: #{forward.1} parent=0 // pred_region
    _
  $region37: #{forward.1} parent=0 // pred_fallthru
    _
  // Predicated region
  $region38: #{forward.1} parent=0 // pred_check
    _
  $region39: #{forward.1} parent=0 // pred_check_branch
    %46 = sbr.rel (0) target = $region41
  $region40: #{forward.1} parent=0 // pred_region
    _
  $region41: #{forward.1} parent=0 // pred_fallthru
    _
  // Predicated region
  $region42: #{forward.1} parent=0 // pred_check
    _
  $region43: #{forward.1} parent=0 // pred_check_branch
    %48 = sbr.rel (0) target = $region45
  $region44: #{forward.1} parent=0 // pred_region
    _
  $region45: #{forward.1} parent=0 // pred_fallthru
    _
  // Predicated region
  $region46: #{forward.1} parent=0 // pred_check
    _
  $region47: #{forward.1} parent=0 // pred_check_branch
    %50 = sbr.rel (0) target = $region49
  $region48: #{forward.1} parent=0 // pred_region
    _
  $region49: #{forward.1} parent=0 // pred_fallthru
    _
  // Predicated region
  $region50: #{forward.1} parent=0 // pred_check
    _
  $region51: #{forward.1} parent=0 // pred_check_branch
    %52 = sbr.rel (0) target = $region53
  $region52: #{forward.1} parent=0 // pred_region
    _
  $region53: #{forward.1} parent=0 // pred_fallthru
    _
  // Predicated region
  $region54: #{forward.1} parent=0 // pred_check
    _
  $region55: #{forward.1} parent=0 // pred_check_branch
    %54 = sbr.rel (0) target = $region57
  $region56: #{forward.1} parent=0 // pred_region
    _
  $region57: #{forward.1} parent=0 // pred_fallthru
    _
  // Predicated region
  $region58: #{forward.1} parent=0 // pred_check
    _
  $region59: #{forward.1} parent=0 // pred_check_branch
    %56 = sbr.rel (0) target = $region61
  $region60: #{forward.1} parent=0 // pred_region
    _
  $region61: #{forward.1} parent=0 // pred_fallthru
    _
  // Predicated region
  $region62: #{forward.1} parent=0 // pred_check
    _
  $region63: #{forward.1} parent=0 // pred_check_branch
    %58 = sbr.rel (0) target = $region65
  $region64: #{forward.1} parent=0 // pred_region
    _
  $region65: #{forward.1} parent=0 // pred_fallthru
    _
  // Predicated region
  $region66: #{forward.1} parent=0 // pred_check
    _
  $region67: #{forward.1} parent=0 // pred_check_branch
    %60 = sbr.rel (0) target = $region69
  $region68: #{forward.1} parent=0 // pred_region
    _
  $region69: #{forward.1} parent=0 // pred_fallthru
    _
  // Predicated region
  $region70: #{forward.1} parent=0 // pred_check
    _
  $region71: #{forward.1} parent=0 // pred_check_branch
    %62 = sbr.rel (0) target = $region73
  $region72: #{forward.1} parent=0 // pred_region
    _
  $region73: #{forward.1} parent=0 // pred_fallthru
    _
  // Predicated region
  $region74: #{forward.1} parent=0 // pred_check
    _
  $region75: #{forward.1} parent=0 // pred_check_branch
    %64 = sbr.rel (0) target = $region77
  $region76: #{forward.1} parent=0 // pred_region
    _
  $region77: #{forward.1} parent=0 // pred_fallthru
    _
  // Predicated region
  $region78: #{forward.1} parent=0 // pred_check
    _
  $region79: #{forward.1} parent=0 // pred_check_branch
    %66 = sbr.rel (0) target = $region81
  $region80: #{forward.1} parent=0 // pred_region
    _
  $region81: #{forward.1} parent=0 // pred_fallthru
    _
  // Predicated region
  $region82: #{forward.1} parent=0 // pred_check
    _
  $region83: #{forward.1} parent=0 // pred_check_branch
    %68 = sbr.rel (0) target = $region85
  $region84: #{forward.1} parent=0 // pred_region
    _
  $region85: #{forward.1} parent=0 // pred_fallthru
    _
  // Predicated region
  $region86: #{forward.1} parent=0 // pred_check
    _
  $region87: #{forward.1} parent=0 // pred_check_branch
    %70 = sbr.rel (0) target = $region89
  $region88: #{forward.1} parent=0 // pred_region
    _
  $region89: #{forward.1} parent=0 // pred_fallthru
    _
  %v72 = vld [vmem:[%s0] sm:$0xff]
  %v73 = vld [vmem:[%s0 + $0x8] sm:$0xff]
  %v74 = vld [vmem:[%s2] sm:$0x1]
  %v75 = vld [vmem:[%s3] sm:$0x1]
  %vm76 = vcmask 261120
  %v77 = vsel %vm76, %v72, 0.0
  %78 = vadd.xlane.f32.xlu0 %v77
  %v79 = vpop.xlane.xlu0 %78
  %v80 = vsel %vm76, %v73, 0.0
  %81 = vadd.xlane.f32.xlu0 %v80
  %v82 = vpop.xlane.xlu0 %81
  %v83 = vrcp.pop 32.0
  %v84 = vmul.f32 %v79, %v83
  %v85 = vmul.f32 %v82, %v83
  %v86 = vsub.f32 %v72, %v84
  %v87 = vsub.f32 %v73, %v85
  %v88 = vmul.f32 %v86, %v86
  %v89 = vmul.f32 %v87, %v87
  %v90 = vsel %vm76, %v88, 0.0
  %91 = vadd.xlane.f32.xlu0 %v90
  %v92 = vpop.xlane.xlu0 %91
  %v93 = vsel %vm76, %v89, 0.0
  %94 = vadd.xlane.f32.xlu0 %v93
  %v95 = vpop.xlane.xlu0 %94
  %v96 = vmul.f32 %v92, %v83
  %v97 = vmul.f32 %v95, %v83
  %v98 = vadd.f32 %v96, 1e-12
  %v99 = vadd.f32 %v97, 1e-12
  %v100 = vrsqrt.pop %v98
  %v101 = vrsqrt.pop %v99
  %v102 = vmul.f32 %v86, %v100
  %v103 = vmul.f32 %v87, %v101
  %v105 = vlaneseq
  %v106 = vshrl.u32 %v105, 7
  %v107 = vsub.s32 0, %v106
  %v108 = vrot.slane %v74, %v107
  %v110 = vmul.f32 %v102, %v108
  %v111 = vmul.f32 %v103, %v108
  %v113 = vlaneseq
  %v114 = vshrl.u32 %v113, 7
  %v115 = vsub.s32 0, %v114
  %v116 = vrot.slane %v75, %v115
  %v118 = vadd.f32 %v110, %v116
  %v119 = vadd.f32 %v111, %v116
  %v120 = vld [vmem:[%s1] sm:$0x3]
  %v123 = vunpack.c.l.s4 1966171168
  %v124 = vunpack.c.0.s8 %v123
  %v125 = vlaneseq
  %v126 = vshrl.u32 %v125, 7
  %v127 = vsub.s32 %v124, %v126
  %v128 = vrot.slane %v120, %v127
  %v129 = vcombine.high %v128, %v128
  %v131 = vunpack.c.l.s4 1966171168
  %v132 = vunpack.c.0.s8 %v131
  %v133 = vlaneseq
  %v134 = vshrl.u32 %v133, 7
  %v135 = vsub.s32 %v132, %v134
  %v136 = vrot.slane %v128, %v135
  %v138 = vunpack.c.l.s4 1966171168
  %v139 = vunpack.c.0.s8 %v138
  %v140 = vlaneseq
  %v141 = vshrl.u32 %v140, 7
  %v142 = vsub.s32 %v139, %v141
  %v143 = vrot.slane %v129, %v142
  %v144 = vld [vmem:[%s4] sm:$0xf]
  %v145 = vld [vmem:[%s4 + $0x4] sm:$0xf]
  %v146 = vld [vmem:[%s4 + $0x8] sm:$0xf]
  %v147 = vld [vmem:[%s4 + $0xc] sm:$0xf]
  %v148 = vld [vmem:[%s5] sm:$0x1]
  %v149 = vpack.c.bf16 %v119, %v118
  %v151 = vlaneseq
  %v152 = vshrl.u32 %v151, 7
  %v153 = vsub.s32 0, %v152
  %v154 = vrot.slane %v148, %v153
  %v160 = vunpack.c.l.b16 %v144
  %v161 = vunpack.c.l.b16 %v145
  %v162 = vunpack.c.l.b16 %v146
  %v163 = vunpack.c.l.b16 %v147
  %v164 = vpack.c.b16 %v161, %v160
  %v165 = vpack.c.b16 %v163, %v162
  %v169 = vsel %vm76, %v149, 0
  %171 = vmatprep.subr.bf16.mxu0 0
  %172 = vmatpush1.bf16.msra.mxu0 %v164
  %173 = vmatprep.subr.bf16.mxu0 0
  %174 = vmatpush1.bf16.msra.mxu0 %v165
  %175 = vmatprep.subr.bf16.mxu0 0
  %176 = vmatpush1.bf16.msra.mxu0 0
  %177 = vmatprep.subr.bf16.mxu0 0
  %178 = vmatpush1.bf16.msra.mxu0 0
  %179 = vmatprep.subr.bf16.mxu0 0
  %180 = vmatpush1.bf16.msra.mxu0 0
  %181 = vmatprep.subr.bf16.mxu0 0
  %182 = vmatpush1.bf16.msra.mxu0 0
  %183 = vmatprep.subr.bf16.mxu0 0
  %184 = vmatpush1.bf16.msra.mxu0 0
  %185 = vmatprep.subr.bf16.mxu0 0
  %186 = vmatpush1.bf16.msra.mxu0 0
  %187 = vmatprep.subr.bf16.mxu0 0
  %188 = vmatpush1.bf16.msra.mxu0 0
  %189 = vmatprep.subr.bf16.mxu0 0
  %190 = vmatpush1.bf16.msra.mxu0 0
  %191 = vmatprep.subr.bf16.mxu0 0
  %192 = vmatpush1.bf16.msra.mxu0 0
  %193 = vmatprep.subr.bf16.mxu0 0
  %194 = vmatpush1.bf16.msra.mxu0 0
  %195 = vmatprep.subr.bf16.mxu0 0
  %196 = vmatpush1.bf16.msra.mxu0 0
  %197 = vmatprep.subr.bf16.mxu0 0
  %198 = vmatpush1.bf16.msra.mxu0 0
  %199 = vmatprep.subr.bf16.mxu0 0
  %200 = vmatpush1.bf16.msra.mxu0 0
  %201 = vmatprep.subr.bf16.mxu0 0
  %202 = vmatpush1.bf16.msra.mxu0 0
  %203 = vmatprep.mubr.bf16.mxu0 0
  %204 = vmatmul.mubr.bf16.gmra.mrb[0].mxu0 %v169
  %v205 = vpop.f32.mrb[0].mxu0
  %v206 = vadd.f32 %v154, %v205
  %v207 = vpop.f32.mrb[0].mxu0
  %v208 = vpop.f32.mrb[0].mxu0
  %v209 = vadd.f32 %v154, %v208
  %v210 = vpop.f32.mrb[0].mxu0
  %211 = vdwg.mxu0
  %214 = vrot.lane.b32.xlu0 %v206, 120
  %v215 = vpop.permute.xlu0 %214
  %216 = vrot.lane.b32.xlu0 %v209, 120
  %v217 = vpop.permute.xlu0 %216
  %220 = vrot.lane.b32.xlu0 %v206, 112
  %v221 = vpop.permute.xlu0 %220
  %222 = vrot.lane.b32.xlu0 %v209, 112
  %v223 = vpop.permute.xlu0 %222
  %226 = vrot.lane.b32.xlu0 %v206, 104
  %v227 = vpop.permute.xlu0 %226
  %228 = vrot.lane.b32.xlu0 %v209, 104
  %v229 = vpop.permute.xlu0 %228
  %v232 = vpack.c.bf16 %v206, %v206
  %v233 = vpack.c.bf16 %v209, %v209
  %v234 = vpack.c.bf16 %v215, %v215
  %v235 = vpack.c.bf16 %v217, %v217
  %v236 = vpack.c.bf16 %v221, %v221
  %v237 = vpack.c.bf16 %v223, %v223
  %v238 = vpack.c.bf16 %v227, %v227
  %v239 = vpack.c.bf16 %v229, %v229
  %241 = vrot.lane.b32.xlu0 %v232, 96
  %v242 = vpop.permute.xlu0 %241
  %vm243 = vcmask 64512
  %v245 = vsel %vm243, %v232, 0
  %v248 = vsel %vm243, %v242, 0
  %250 = vmatprep.subr.bf16.mxu0 0
  %251 = vmatpush1.bf16.xpose.msra.mxu0 %v248
  %252 = vmatprep.subr.bf16.mxu0 0
  %253 = vmatpush1.bf16.xpose.msra.mxu0 0
  %254 = vmatprep.subr.bf16.mxu0 0
  %255 = vmatpush1.bf16.xpose.msra.mxu0 0
  %256 = vmatprep.subr.bf16.mxu0 0
  %257 = vmatpush1.bf16.xpose.msra.mxu0 0
  %258 = vmatprep.subr.bf16.mxu0 0
  %259 = vmatpush1.bf16.xpose.msra.mxu0 0
  %260 = vmatprep.subr.bf16.mxu0 0
  %261 = vmatpush1.bf16.xpose.msra.mxu0 0
  %262 = vmatprep.subr.bf16.mxu0 0
  %263 = vmatpush1.bf16.xpose.msra.mxu0 0
  %264 = vmatprep.subr.bf16.mxu0 0
  %265 = vmatpush1.bf16.xpose.msra.mxu0 0
  %266 = vmatprep.subr.bf16.mxu0 0
  %267 = vmatpush1.bf16.xpose.msra.mxu0 0
  %268 = vmatprep.subr.bf16.mxu0 0
  %269 = vmatpush1.bf16.xpose.msra.mxu0 0
  %270 = vmatprep.subr.bf16.mxu0 0
  %271 = vmatpush1.bf16.xpose.msra.mxu0 0
  %272 = vmatprep.subr.bf16.mxu0 0
  %273 = vmatpush1.bf16.xpose.msra.mxu0 0
  %274 = vmatprep.subr.bf16.mxu0 0
  %275 = vmatpush1.bf16.xpose.msra.mxu0 0
  %276 = vmatprep.subr.bf16.mxu0 0
  %277 = vmatpush1.bf16.xpose.msra.mxu0 0
  %278 = vmatprep.subr.bf16.mxu0 0
  %279 = vmatpush1.bf16.xpose.msra.mxu0 0
  %280 = vmatprep.subr.bf16.mxu0 0
  %281 = vmatpush1.bf16.xpose.msra.mxu0 0
  %282 = vmatprep.mubr.bf16.mxu0 0
  %283 = vmatmul.mubr.bf16.gmra.mrb[0].mxu0 %v245
  %v284 = vpop.f32.mrb[0].mxu0
  %v285 = vadd.f32 0.0, %v284
  %v286 = vpop.f32.mrb[0].mxu0
  %v287 = vpop.f32.mrb[0].mxu0
  %v288 = vpop.f32.mrb[0].mxu0
  %289 = vdwg.mxu0
  %291 = vrot.lane.b32.xlu0 %v233, 96
  %v292 = vpop.permute.xlu0 %291
  %v294 = vsel %vm243, %v233, 0
  %v297 = vsel %vm243, %v292, 0
  %299 = vmatprep.subr.bf16.mxu0 0
  %300 = vmatpush1.bf16.xpose.msra.mxu0 %v297
  %301 = vmatprep.subr.bf16.mxu0 0
  %302 = vmatpush1.bf16.xpose.msra.mxu0 0
  %303 = vmatprep.subr.bf16.mxu0 0
  %304 = vmatpush1.bf16.xpose.msra.mxu0 0
  %305 = vmatprep.subr.bf16.mxu0 0
  %306 = vmatpush1.bf16.xpose.msra.mxu0 0
  %307 = vmatprep.subr.bf16.mxu0 0
  %308 = vmatpush1.bf16.xpose.msra.mxu0 0
  %309 = vmatprep.subr.bf16.mxu0 0
  %310 = vmatpush1.bf16.xpose.msra.mxu0 0
  %311 = vmatprep.subr.bf16.mxu0 0
  %312 = vmatpush1.bf16.xpose.msra.mxu0 0
  %313 = vmatprep.subr.bf16.mxu0 0
  %314 = vmatpush1.bf16.xpose.msra.mxu0 0
  %315 = vmatprep.subr.bf16.mxu0 0
  %316 = vmatpush1.bf16.xpose.msra.mxu0 0
  %317 = vmatprep.subr.bf16.mxu0 0
  %318 = vmatpush1.bf16.xpose.msra.mxu0 0
  %319 = vmatprep.subr.bf16.mxu0 0
  %320 = vmatpush1.bf16.xpose.msra.mxu0 0
  %321 = vmatprep.subr.bf16.mxu0 0
  %322 = vmatpush1.bf16.xpose.msra.mxu0 0
  %323 = vmatprep.subr.bf16.mxu0 0
  %324 = vmatpush1.bf16.xpose.msra.mxu0 0
  %325 = vmatprep.subr.bf16.mxu0 0
  %326 = vmatpush1.bf16.xpose.msra.mxu0 0
  %327 = vmatprep.subr.bf16.mxu0 0
  %328 = vmatpush1.bf16.xpose.msra.mxu0 0
  %329 = vmatprep.subr.bf16.mxu0 0
  %330 = vmatpush1.bf16.xpose.msra.mxu0 0
  %331 = vmatprep.mubr.bf16.mxu0 0
  %332 = vmatmul.mubr.bf16.gmra.mrb[0].mxu0 %v294
  %v333 = vpop.f32.mrb[0].mxu0
  %v334 = vadd.f32 0.0, %v333
  %v335 = vpop.f32.mrb[0].mxu0
  %v336 = vpop.f32.mrb[0].mxu0
  %v337 = vpop.f32.mrb[0].mxu0
  %338 = vdwg.mxu0
  %340 = vrot.lane.b32.xlu0 %v234, 96
  %v341 = vpop.permute.xlu0 %340
  %v343 = vsel %vm243, %v234, 0
  %v346 = vsel %vm243, %v341, 0
  %348 = vmatprep.subr.bf16.mxu0 0
  %349 = vmatpush1.bf16.xpose.msra.mxu0 %v346
  %350 = vmatprep.subr.bf16.mxu0 0
  %351 = vmatpush1.bf16.xpose.msra.mxu0 0
  %352 = vmatprep.subr.bf16.mxu0 0
  %353 = vmatpush1.bf16.xpose.msra.mxu0 0
  %354 = vmatprep.subr.bf16.mxu0 0
  %355 = vmatpush1.bf16.xpose.msra.mxu0 0
  %356 = vmatprep.subr.bf16.mxu0 0
  %357 = vmatpush1.bf16.xpose.msra.mxu0 0
  %358 = vmatprep.subr.bf16.mxu0 0
  %359 = vmatpush1.bf16.xpose.msra.mxu0 0
  %360 = vmatprep.subr.bf16.mxu0 0
  %361 = vmatpush1.bf16.xpose.msra.mxu0 0
  %362 = vmatprep.subr.bf16.mxu0 0
  %363 = vmatpush1.bf16.xpose.msra.mxu0 0
  %364 = vmatprep.subr.bf16.mxu0 0
  %365 = vmatpush1.bf16.xpose.msra.mxu0 0
  %366 = vmatprep.subr.bf16.mxu0 0
  %367 = vmatpush1.bf16.xpose.msra.mxu0 0
  %368 = vmatprep.subr.bf16.mxu0 0
  %369 = vmatpush1.bf16.xpose.msra.mxu0 0
  %370 = vmatprep.subr.bf16.mxu0 0
  %371 = vmatpush1.bf16.xpose.msra.mxu0 0
  %372 = vmatprep.subr.bf16.mxu0 0
  %373 = vmatpush1.bf16.xpose.msra.mxu0 0
  %374 = vmatprep.subr.bf16.mxu0 0
  %375 = vmatpush1.bf16.xpose.msra.mxu0 0
  %376 = vmatprep.subr.bf16.mxu0 0
  %377 = vmatpush1.bf16.xpose.msra.mxu0 0
  %378 = vmatprep.subr.bf16.mxu0 0
  %379 = vmatpush1.bf16.xpose.msra.mxu0 0
  %380 = vmatprep.mubr.bf16.mxu0 0
  %381 = vmatmul.mubr.bf16.gmra.mrb[0].mxu0 %v343
  %v382 = vpop.f32.mrb[0].mxu0
  %v383 = vadd.f32 0.0, %v382
  %v384 = vpop.f32.mrb[0].mxu0
  %v385 = vpop.f32.mrb[0].mxu0
  %v386 = vpop.f32.mrb[0].mxu0
  %387 = vdwg.mxu0
  %389 = vrot.lane.b32.xlu0 %v235, 96
  %v390 = vpop.permute.xlu0 %389
  %v392 = vsel %vm243, %v235, 0
  %v395 = vsel %vm243, %v390, 0
  %397 = vmatprep.subr.bf16.mxu0 0
  %398 = vmatpush1.bf16.xpose.msra.mxu0 %v395
  %399 = vmatprep.subr.bf16.mxu0 0
  %400 = vmatpush1.bf16.xpose.msra.mxu0 0
  %401 = vmatprep.subr.bf16.mxu0 0
  %402 = vmatpush1.bf16.xpose.msra.mxu0 0
  %403 = vmatprep.subr.bf16.mxu0 0
  %404 = vmatpush1.bf16.xpose.msra.mxu0 0
  %405 = vmatprep.subr.bf16.mxu0 0
  %406 = vmatpush1.bf16.xpose.msra.mxu0 0
  %407 = vmatprep.subr.bf16.mxu0 0
  %408 = vmatpush1.bf16.xpose.msra.mxu0 0
  %409 = vmatprep.subr.bf16.mxu0 0
  %410 = vmatpush1.bf16.xpose.msra.mxu0 0
  %411 = vmatprep.subr.bf16.mxu0 0
  %412 = vmatpush1.bf16.xpose.msra.mxu0 0
  %413 = vmatprep.subr.bf16.mxu0 0
  %414 = vmatpush1.bf16.xpose.msra.mxu0 0
  %415 = vmatprep.subr.bf16.mxu0 0
  %416 = vmatpush1.bf16.xpose.msra.mxu0 0
  %417 = vmatprep.subr.bf16.mxu0 0
  %418 = vmatpush1.bf16.xpose.msra.mxu0 0
  %419 = vmatprep.subr.bf16.mxu0 0
  %420 = vmatpush1.bf16.xpose.msra.mxu0 0
  %421 = vmatprep.subr.bf16.mxu0 0
  %422 = vmatpush1.bf16.xpose.msra.mxu0 0
  %423 = vmatprep.subr.bf16.mxu0 0
  %424 = vmatpush1.bf16.xpose.msra.mxu0 0
  %425 = vmatprep.subr.bf16.mxu0 0
  %426 = vmatpush1.bf16.xpose.msra.mxu0 0
  %427 = vmatprep.subr.bf16.mxu0 0
  %428 = vmatpush1.bf16.xpose.msra.mxu0 0
  %429 = vmatprep.mubr.bf16.mxu0 0
  %430 = vmatmul.mubr.bf16.gmra.mrb[0].mxu0 %v392
  %v431 = vpop.f32.mrb[0].mxu0
  %v432 = vadd.f32 0.0, %v431
  %v433 = vpop.f32.mrb[0].mxu0
  %v434 = vpop.f32.mrb[0].mxu0
  %v435 = vpop.f32.mrb[0].mxu0
  %436 = vdwg.mxu0
  %438 = vrot.lane.b32.xlu0 %v236, 96
  %v439 = vpop.permute.xlu0 %438
  %v441 = vsel %vm243, %v236, 0
  %v444 = vsel %vm243, %v439, 0
  %446 = vmatprep.subr.bf16.mxu0 0
  %447 = vmatpush1.bf16.xpose.msra.mxu0 %v444
  %448 = vmatprep.subr.bf16.mxu0 0
  %449 = vmatpush1.bf16.xpose.msra.mxu0 0
  %450 = vmatprep.subr.bf16.mxu0 0
  %451 = vmatpush1.bf16.xpose.msra.mxu0 0
  %452 = vmatprep.subr.bf16.mxu0 0
  %453 = vmatpush1.bf16.xpose.msra.mxu0 0
  %454 = vmatprep.subr.bf16.mxu0 0
  %455 = vmatpush1.bf16.xpose.msra.mxu0 0
  %456 = vmatprep.subr.bf16.mxu0 0
  %457 = vmatpush1.bf16.xpose.msra.mxu0 0
  %458 = vmatprep.subr.bf16.mxu0 0
  %459 = vmatpush1.bf16.xpose.msra.mxu0 0
  %460 = vmatprep.subr.bf16.mxu0 0
  %461 = vmatpush1.bf16.xpose.msra.mxu0 0
  %462 = vmatprep.subr.bf16.mxu0 0
  %463 = vmatpush1.bf16.xpose.msra.mxu0 0
  %464 = vmatprep.subr.bf16.mxu0 0
  %465 = vmatpush1.bf16.xpose.msra.mxu0 0
  %466 = vmatprep.subr.bf16.mxu0 0
  %467 = vmatpush1.bf16.xpose.msra.mxu0 0
  %468 = vmatprep.subr.bf16.mxu0 0
  %469 = vmatpush1.bf16.xpose.msra.mxu0 0
  %470 = vmatprep.subr.bf16.mxu0 0
  %471 = vmatpush1.bf16.xpose.msra.mxu0 0
  %472 = vmatprep.subr.bf16.mxu0 0
  %473 = vmatpush1.bf16.xpose.msra.mxu0 0
  %474 = vmatprep.subr.bf16.mxu0 0
  %475 = vmatpush1.bf16.xpose.msra.mxu0 0
  %476 = vmatprep.subr.bf16.mxu0 0
  %477 = vmatpush1.bf16.xpose.msra.mxu0 0
  %478 = vmatprep.mubr.bf16.mxu0 0
  %479 = vmatmul.mubr.bf16.gmra.mrb[0].mxu0 %v441
  %v480 = vpop.f32.mrb[0].mxu0
  %v481 = vadd.f32 0.0, %v480
  %v482 = vpop.f32.mrb[0].mxu0
  %v483 = vpop.f32.mrb[0].mxu0
  %v484 = vpop.f32.mrb[0].mxu0
  %485 = vdwg.mxu0
  %487 = vrot.lane.b32.xlu0 %v237, 96
  %v488 = vpop.permute.xlu0 %487
  %v490 = vsel %vm243, %v237, 0
  %v493 = vsel %vm243, %v488, 0
  %495 = vmatprep.subr.bf16.mxu0 0
  %496 = vmatpush1.bf16.xpose.msra.mxu0 %v493
  %497 = vmatprep.subr.bf16.mxu0 0
  %498 = vmatpush1.bf16.xpose.msra.mxu0 0
  %499 = vmatprep.subr.bf16.mxu0 0
  %500 = vmatpush1.bf16.xpose.msra.mxu0 0
  %501 = vmatprep.subr.bf16.mxu0 0
  %502 = vmatpush1.bf16.xpose.msra.mxu0 0
  %503 = vmatprep.subr.bf16.mxu0 0
  %504 = vmatpush1.bf16.xpose.msra.mxu0 0
  %505 = vmatprep.subr.bf16.mxu0 0
  %506 = vmatpush1.bf16.xpose.msra.mxu0 0
  %507 = vmatprep.subr.bf16.mxu0 0
  %508 = vmatpush1.bf16.xpose.msra.mxu0 0
  %509 = vmatprep.subr.bf16.mxu0 0
  %510 = vmatpush1.bf16.xpose.msra.mxu0 0
  %511 = vmatprep.subr.bf16.mxu0 0
  %512 = vmatpush1.bf16.xpose.msra.mxu0 0
  %513 = vmatprep.subr.bf16.mxu0 0
  %514 = vmatpush1.bf16.xpose.msra.mxu0 0
  %515 = vmatprep.subr.bf16.mxu0 0
  %516 = vmatpush1.bf16.xpose.msra.mxu0 0
  %517 = vmatprep.subr.bf16.mxu0 0
  %518 = vmatpush1.bf16.xpose.msra.mxu0 0
  %519 = vmatprep.subr.bf16.mxu0 0
  %520 = vmatpush1.bf16.xpose.msra.mxu0 0
  %521 = vmatprep.subr.bf16.mxu0 0
  %522 = vmatpush1.bf16.xpose.msra.mxu0 0
  %523 = vmatprep.subr.bf16.mxu0 0
  %524 = vmatpush1.bf16.xpose.msra.mxu0 0
  %525 = vmatprep.subr.bf16.mxu0 0
  %526 = vmatpush1.bf16.xpose.msra.mxu0 0
  %527 = vmatprep.mubr.bf16.mxu0 0
  %528 = vmatmul.mubr.bf16.gmra.mrb[0].mxu0 %v490
  %v529 = vpop.f32.mrb[0].mxu0
  %v530 = vadd.f32 0.0, %v529
  %v531 = vpop.f32.mrb[0].mxu0
  %v532 = vpop.f32.mrb[0].mxu0
  %v533 = vpop.f32.mrb[0].mxu0
  %534 = vdwg.mxu0
  %536 = vrot.lane.b32.xlu0 %v238, 96
  %v537 = vpop.permute.xlu0 %536
  %v539 = vsel %vm243, %v238, 0
  %v542 = vsel %vm243, %v537, 0
  %544 = vmatprep.subr.bf16.mxu0 0
  %545 = vmatpush1.bf16.xpose.msra.mxu0 %v542
  %546 = vmatprep.subr.bf16.mxu0 0
  %547 = vmatpush1.bf16.xpose.msra.mxu0 0
  %548 = vmatprep.subr.bf16.mxu0 0
  %549 = vmatpush1.bf16.xpose.msra.mxu0 0
  %550 = vmatprep.subr.bf16.mxu0 0
  %551 = vmatpush1.bf16.xpose.msra.mxu0 0
  %552 = vmatprep.subr.bf16.mxu0 0
  %553 = vmatpush1.bf16.xpose.msra.mxu0 0
  %554 = vmatprep.subr.bf16.mxu0 0
  %555 = vmatpush1.bf16.xpose.msra.mxu0 0
  %556 = vmatprep.subr.bf16.mxu0 0
  %557 = vmatpush1.bf16.xpose.msra.mxu0 0
  %558 = vmatprep.subr.bf16.mxu0 0
  %559 = vmatpush1.bf16.xpose.msra.mxu0 0
  %560 = vmatprep.subr.bf16.mxu0 0
  %561 = vmatpush1.bf16.xpose.msra.mxu0 0
  %562 = vmatprep.subr.bf16.mxu0 0
  %563 = vmatpush1.bf16.xpose.msra.mxu0 0
  %564 = vmatprep.subr.bf16.mxu0 0
  %565 = vmatpush1.bf16.xpose.msra.mxu0 0
  %566 = vmatprep.subr.bf16.mxu0 0
  %567 = vmatpush1.bf16.xpose.msra.mxu0 0
  %568 = vmatprep.subr.bf16.mxu0 0
  %569 = vmatpush1.bf16.xpose.msra.mxu0 0
  %570 = vmatprep.subr.bf16.mxu0 0
  %571 = vmatpush1.bf16.xpose.msra.mxu0 0
  %572 = vmatprep.subr.bf16.mxu0 0
  %573 = vmatpush1.bf16.xpose.msra.mxu0 0
  %574 = vmatprep.subr.bf16.mxu0 0
  %575 = vmatpush1.bf16.xpose.msra.mxu0 0
  %576 = vmatprep.mubr.bf16.mxu0 0
  %577 = vmatmul.mubr.bf16.gmra.mrb[0].mxu0 %v539
  %v578 = vpop.f32.mrb[0].mxu0
  %v579 = vadd.f32 0.0, %v578
  %v580 = vpop.f32.mrb[0].mxu0
  %v581 = vpop.f32.mrb[0].mxu0
  %v582 = vpop.f32.mrb[0].mxu0
  %583 = vdwg.mxu0
  %585 = vrot.lane.b32.xlu0 %v239, 96
  %v586 = vpop.permute.xlu0 %585
  %v588 = vsel %vm243, %v239, 0
  %v591 = vsel %vm243, %v586, 0
  %593 = vmatprep.subr.bf16.mxu0 0
  %594 = vmatpush1.bf16.xpose.msra.mxu0 %v591
  %595 = vmatprep.subr.bf16.mxu0 0
  %596 = vmatpush1.bf16.xpose.msra.mxu0 0
  %597 = vmatprep.subr.bf16.mxu0 0
  %598 = vmatpush1.bf16.xpose.msra.mxu0 0
  %599 = vmatprep.subr.bf16.mxu0 0
  %600 = vmatpush1.bf16.xpose.msra.mxu0 0
  %601 = vmatprep.subr.bf16.mxu0 0
  %602 = vmatpush1.bf16.xpose.msra.mxu0 0
  %603 = vmatprep.subr.bf16.mxu0 0
  %604 = vmatpush1.bf16.xpose.msra.mxu0 0
  %605 = vmatprep.subr.bf16.mxu0 0
  %606 = vmatpush1.bf16.xpose.msra.mxu0 0
  %607 = vmatprep.subr.bf16.mxu0 0
  %608 = vmatpush1.bf16.xpose.msra.mxu0 0
  %609 = vmatprep.subr.bf16.mxu0 0
  %610 = vmatpush1.bf16.xpose.msra.mxu0 0
  %611 = vmatprep.subr.bf16.mxu0 0
  %612 = vmatpush1.bf16.xpose.msra.mxu0 0
  %613 = vmatprep.subr.bf16.mxu0 0
  %614 = vmatpush1.bf16.xpose.msra.mxu0 0
  %615 = vmatprep.subr.bf16.mxu0 0
  %616 = vmatpush1.bf16.xpose.msra.mxu0 0
  %617 = vmatprep.subr.bf16.mxu0 0
  %618 = vmatpush1.bf16.xpose.msra.mxu0 0
  %619 = vmatprep.subr.bf16.mxu0 0
  %620 = vmatpush1.bf16.xpose.msra.mxu0 0
  %621 = vmatprep.subr.bf16.mxu0 0
  %622 = vmatpush1.bf16.xpose.msra.mxu0 0
  %623 = vmatprep.subr.bf16.mxu0 0
  %624 = vmatpush1.bf16.xpose.msra.mxu0 0
  %625 = vmatprep.mubr.bf16.mxu0 0
  %626 = vmatmul.mubr.bf16.gmra.mrb[0].mxu0 %v588
  %v627 = vpop.f32.mrb[0].mxu0
  %v628 = vadd.f32 0.0, %v627
  %v629 = vpop.f32.mrb[0].mxu0
  %v630 = vpop.f32.mrb[0].mxu0
  %v631 = vpop.f32.mrb[0].mxu0
  %632 = vdwg.mxu0
  %v633 = vmul.f32 %v285, 0.35355338
  %v634 = vmul.f32 %v334, 0.35355338
  %v635 = vmul.f32 %v383, 0.35355338
  %v636 = vmul.f32 %v432, 0.35355338
  %v637 = vmul.f32 %v481, 0.35355338
  %v638 = vmul.f32 %v530, 0.35355338
  %v639 = vmul.f32 %v579, 0.35355338
  %v640 = vmul.f32 %v628, 0.35355338
  %v641 = vlaneseq
  %v642 = vshrl.u32 %v641, 7
  %v643 = vsub.s32 0, %v642
  %v644 = vrot.slane %v136, %v643
  %v645 = vlaneseq
  %v646 = vshrl.u32 %v645, 7
  %v647 = vsub.s32 0, %v646
  %v648 = vrot.slane %v143, %v647
  %v651 = vadd.f32 %v633, %v644
  %v652 = vadd.f32 %v634, %v648
  %v653 = vadd.f32 %v635, %v644
  %v654 = vadd.f32 %v636, %v648
  %v655 = vadd.f32 %v637, %v644
  %v656 = vadd.f32 %v638, %v648
  %v657 = vadd.f32 %v639, %v644
  %v658 = vadd.f32 %v640, %v648
  %v659 = vsel %vm243, %v651, -inf
  %660 = vmax.xlane.f32.xlu0 %v659
  %v661 = vpop.xlane.xlu0 %660
  %v662 = vsel %vm243, %v652, -inf
  %663 = vmax.xlane.f32.xlu0 %v662
  %v664 = vpop.xlane.xlu0 %663
  %v665 = vsel %vm243, %v653, -inf
  %666 = vmax.xlane.f32.xlu0 %v665
  %v667 = vpop.xlane.xlu0 %666
  %v668 = vsel %vm243, %v654, -inf
  %669 = vmax.xlane.f32.xlu0 %v668
  %v670 = vpop.xlane.xlu0 %669
  %v671 = vsel %vm243, %v655, -inf
  %672 = vmax.xlane.f32.xlu0 %v671
  %v673 = vpop.xlane.xlu0 %672
  %v674 = vsel %vm243, %v656, -inf
  %675 = vmax.xlane.f32.xlu0 %v674
  %v676 = vpop.xlane.xlu0 %675
  %v677 = vsel %vm243, %v657, -inf
  %678 = vmax.xlane.f32.xlu0 %v677
  %v679 = vpop.xlane.xlu0 %678
  %v680 = vsel %vm243, %v658, -inf
  %681 = vmax.xlane.f32.xlu0 %v680
  %v682 = vpop.xlane.xlu0 %681
  %v683 = vsub.f32 %v651, %v661
  %v684 = vsub.f32 %v652, %v664
  %v685 = vsub.f32 %v653, %v667
  %v686 = vsub.f32 %v654, %v670
  %v687 = vsub.f32 %v655, %v673
  %v688 = vsub.f32 %v656, %v676
  %v689 = vsub.f32 %v657, %v679
  %v690 = vsub.f32 %v658, %v682
  %v691 = vmul.f32 %v683, 1.442695
  %v692 = vpow.pop %v691
  %v693 = vmul.f32 %v684, 1.442695
  %v694 = vpow.pop %v693
  %v695 = vmul.f32 %v685, 1.442695
  %v696 = vpow.pop %v695
  %v697 = vmul.f32 %v686, 1.442695
  %v698 = vpow.pop %v697
  %v699 = vmul.f32 %v687, 1.442695
  %v700 = vpow.pop %v699
  %v701 = vmul.f32 %v688, 1.442695
  %v702 = vpow.pop %v701
  %v703 = vmul.f32 %v689, 1.442695
  %v704 = vpow.pop %v703
  %v705 = vmul.f32 %v690, 1.442695
  %v706 = vpow.pop %v705
  %v707 = vsel %vm243, %v692, 0.0
  %708 = vadd.xlane.f32.xlu0 %v707
  %v709 = vpop.xlane.xlu0 %708
  %v710 = vsel %vm243, %v694, 0.0
  %711 = vadd.xlane.f32.xlu0 %v710
  %v712 = vpop.xlane.xlu0 %711
  %v713 = vsel %vm243, %v696, 0.0
  %714 = vadd.xlane.f32.xlu0 %v713
  %v715 = vpop.xlane.xlu0 %714
  %v716 = vsel %vm243, %v698, 0.0
  %717 = vadd.xlane.f32.xlu0 %v716
  %v718 = vpop.xlane.xlu0 %717
  %v719 = vsel %vm243, %v700, 0.0
  %720 = vadd.xlane.f32.xlu0 %v719
  %v721 = vpop.xlane.xlu0 %720
  %v722 = vsel %vm243, %v702, 0.0
  %723 = vadd.xlane.f32.xlu0 %v722
  %v724 = vpop.xlane.xlu0 %723
  %v725 = vsel %vm243, %v704, 0.0
  %726 = vadd.xlane.f32.xlu0 %v725
  %v727 = vpop.xlane.xlu0 %726
  %v728 = vsel %vm243, %v706, 0.0
  %729 = vadd.xlane.f32.xlu0 %v728
  %v730 = vpop.xlane.xlu0 %729
  %v731 = vrcp.pop %v709
  %v732 = vrcp.pop %v712
  %v733 = vrcp.pop %v715
  %v734 = vrcp.pop %v718
  %v735 = vrcp.pop %v721
  %v736 = vrcp.pop %v724
  %v737 = vrcp.pop %v727
  %v738 = vrcp.pop %v730
  %v739 = vmul.f32 %v692, %v731
  %v740 = vmul.f32 %v694, %v732
  %v741 = vmul.f32 %v696, %v733
  %v742 = vmul.f32 %v698, %v734
  %v743 = vmul.f32 %v700, %v735
  %v744 = vmul.f32 %v702, %v736
  %v745 = vmul.f32 %v704, %v737
  %v746 = vmul.f32 %v706, %v738
  %v747 = vpack.c.bf16 %v739, %v739
  %v748 = vpack.c.bf16 %v740, %v740
  %v749 = vpack.c.bf16 %v741, %v741
  %v750 = vpack.c.bf16 %v742, %v742
  %v751 = vpack.c.bf16 %v743, %v743
  %v752 = vpack.c.bf16 %v744, %v744
  %v753 = vpack.c.bf16 %v745, %v745
  %v754 = vpack.c.bf16 %v746, %v746
  %755 = vrot.lane.b32.xlu0 %v232, 64
  %v756 = vpop.permute.xlu0 %755
  %v758 = vsel %vm243, %v747, 0
  %vm760 = vcmask 1043456
  %v762 = vsel %vm760, %v756, 0
  %764 = vmatprep.subr.bf16.mxu0 0
  %765 = vmatpush1.bf16.msra.mxu0 %v762
  %766 = vmatprep.subr.bf16.mxu0 0
  %767 = vmatpush1.bf16.msra.mxu0 0
  %768 = vmatprep.subr.bf16.mxu0 0
  %769 = vmatpush1.bf16.msra.mxu0 0
  %770 = vmatprep.subr.bf16.mxu0 0
  %771 = vmatpush1.bf16.msra.mxu0 0
  %772 = vmatprep.subr.bf16.mxu0 0
  %773 = vmatpush1.bf16.msra.mxu0 0
  %774 = vmatprep.subr.bf16.mxu0 0
  %775 = vmatpush1.bf16.msra.mxu0 0
  %776 = vmatprep.subr.bf16.mxu0 0
  %777 = vmatpush1.bf16.msra.mxu0 0
  %778 = vmatprep.subr.bf16.mxu0 0
  %779 = vmatpush1.bf16.msra.mxu0 0
  %780 = vmatprep.subr.bf16.mxu0 0
  %781 = vmatpush1.bf16.msra.mxu0 0
  %782 = vmatprep.subr.bf16.mxu0 0
  %783 = vmatpush1.bf16.msra.mxu0 0
  %784 = vmatprep.subr.bf16.mxu0 0
  %785 = vmatpush1.bf16.msra.mxu0 0
  %786 = vmatprep.subr.bf16.mxu0 0
  %787 = vmatpush1.bf16.msra.mxu0 0
  %788 = vmatprep.subr.bf16.mxu0 0
  %789 = vmatpush1.bf16.msra.mxu0 0
  %790 = vmatprep.subr.bf16.mxu0 0
  %791 = vmatpush1.bf16.msra.mxu0 0
  %792 = vmatprep.subr.bf16.mxu0 0
  %793 = vmatpush1.bf16.msra.mxu0 0
  %794 = vmatprep.subr.bf16.mxu0 0
  %795 = vmatpush1.bf16.msra.mxu0 0
  %796 = vmatprep.mubr.bf16.mxu0 0
  %797 = vmatmul.mubr.bf16.gmra.mrb[0].mxu0 %v758
  %v798 = vpop.f32.mrb[0].mxu0
  %v799 = vadd.f32 0.0, %v798
  %v800 = vpop.f32.mrb[0].mxu0
  %v801 = vpop.f32.mrb[0].mxu0
  %v802 = vpop.f32.mrb[0].mxu0
  %803 = vdwg.mxu0
  %804 = vrot.lane.b32.xlu0 %v233, 64
  %v805 = vpop.permute.xlu0 %804
  %v807 = vsel %vm243, %v748, 0
  %v810 = vsel %vm760, %v805, 0
  %812 = vmatprep.subr.bf16.mxu0 0
  %813 = vmatpush1.bf16.msra.mxu0 %v810
  %814 = vmatprep.subr.bf16.mxu0 0
  %815 = vmatpush1.bf16.msra.mxu0 0
  %816 = vmatprep.subr.bf16.mxu0 0
  %817 = vmatpush1.bf16.msra.mxu0 0
  %818 = vmatprep.subr.bf16.mxu0 0
  %819 = vmatpush1.bf16.msra.mxu0 0
  %820 = vmatprep.subr.bf16.mxu0 0
  %821 = vmatpush1.bf16.msra.mxu0 0
  %822 = vmatprep.subr.bf16.mxu0 0
  %823 = vmatpush1.bf16.msra.mxu0 0
  %824 = vmatprep.subr.bf16.mxu0 0
  %825 = vmatpush1.bf16.msra.mxu0 0
  %826 = vmatprep.subr.bf16.mxu0 0
  %827 = vmatpush1.bf16.msra.mxu0 0
  %828 = vmatprep.subr.bf16.mxu0 0
  %829 = vmatpush1.bf16.msra.mxu0 0
  %830 = vmatprep.subr.bf16.mxu0 0
  %831 = vmatpush1.bf16.msra.mxu0 0
  %832 = vmatprep.subr.bf16.mxu0 0
  %833 = vmatpush1.bf16.msra.mxu0 0
  %834 = vmatprep.subr.bf16.mxu0 0
  %835 = vmatpush1.bf16.msra.mxu0 0
  %836 = vmatprep.subr.bf16.mxu0 0
  %837 = vmatpush1.bf16.msra.mxu0 0
  %838 = vmatprep.subr.bf16.mxu0 0
  %839 = vmatpush1.bf16.msra.mxu0 0
  %840 = vmatprep.subr.bf16.mxu0 0
  %841 = vmatpush1.bf16.msra.mxu0 0
  %842 = vmatprep.subr.bf16.mxu0 0
  %843 = vmatpush1.bf16.msra.mxu0 0
  %844 = vmatprep.mubr.bf16.mxu0 0
  %845 = vmatmul.mubr.bf16.gmra.mrb[0].mxu0 %v807
  %v846 = vpop.f32.mrb[0].mxu0
  %v847 = vadd.f32 0.0, %v846
  %v848 = vpop.f32.mrb[0].mxu0
  %v849 = vpop.f32.mrb[0].mxu0
  %v850 = vpop.f32.mrb[0].mxu0
  %851 = vdwg.mxu0
  %852 = vrot.lane.b32.xlu0 %v234, 64
  %v853 = vpop.permute.xlu0 %852
  %v855 = vsel %vm243, %v749, 0
  %v858 = vsel %vm760, %v853, 0
  %860 = vmatprep.subr.bf16.mxu0 0
  %861 = vmatpush1.bf16.msra.mxu0 %v858
  %862 = vmatprep.subr.bf16.mxu0 0
  %863 = vmatpush1.bf16.msra.mxu0 0
  %864 = vmatprep.subr.bf16.mxu0 0
  %865 = vmatpush1.bf16.msra.mxu0 0
  %866 = vmatprep.subr.bf16.mxu0 0
  %867 = vmatpush1.bf16.msra.mxu0 0
  %868 = vmatprep.subr.bf16.mxu0 0
  %869 = vmatpush1.bf16.msra.mxu0 0
  %870 = vmatprep.subr.bf16.mxu0 0
  %871 = vmatpush1.bf16.msra.mxu0 0
  %872 = vmatprep.subr.bf16.mxu0 0
  %873 = vmatpush1.bf16.msra.mxu0 0
  %874 = vmatprep.subr.bf16.mxu0 0
  %875 = vmatpush1.bf16.msra.mxu0 0
  %876 = vmatprep.subr.bf16.mxu0 0
  %877 = vmatpush1.bf16.msra.mxu0 0
  %878 = vmatprep.subr.bf16.mxu0 0
  %879 = vmatpush1.bf16.msra.mxu0 0
  %880 = vmatprep.subr.bf16.mxu0 0
  %881 = vmatpush1.bf16.msra.mxu0 0
  %882 = vmatprep.subr.bf16.mxu0 0
  %883 = vmatpush1.bf16.msra.mxu0 0
  %884 = vmatprep.subr.bf16.mxu0 0
  %885 = vmatpush1.bf16.msra.mxu0 0
  %886 = vmatprep.subr.bf16.mxu0 0
  %887 = vmatpush1.bf16.msra.mxu0 0
  %888 = vmatprep.subr.bf16.mxu0 0
  %889 = vmatpush1.bf16.msra.mxu0 0
  %890 = vmatprep.subr.bf16.mxu0 0
  %891 = vmatpush1.bf16.msra.mxu0 0
  %892 = vmatprep.mubr.bf16.mxu0 0
  %893 = vmatmul.mubr.bf16.gmra.mrb[0].mxu0 %v855
  %v894 = vpop.f32.mrb[0].mxu0
  %v895 = vadd.f32 0.0, %v894
  %v896 = vpop.f32.mrb[0].mxu0
  %v897 = vpop.f32.mrb[0].mxu0
  %v898 = vpop.f32.mrb[0].mxu0
  %899 = vdwg.mxu0
  %900 = vrot.lane.b32.xlu0 %v235, 64
  %v901 = vpop.permute.xlu0 %900
  %v903 = vsel %vm243, %v750, 0
  %v906 = vsel %vm760, %v901, 0
  %908 = vmatprep.subr.bf16.mxu0 0
  %909 = vmatpush1.bf16.msra.mxu0 %v906
  %910 = vmatprep.subr.bf16.mxu0 0
  %911 = vmatpush1.bf16.msra.mxu0 0
  %912 = vmatprep.subr.bf16.mxu0 0
  %913 = vmatpush1.bf16.msra.mxu0 0
  %914 = vmatprep.subr.bf16.mxu0 0
  %915 = vmatpush1.bf16.msra.mxu0 0
  %916 = vmatprep.subr.bf16.mxu0 0
  %917 = vmatpush1.bf16.msra.mxu0 0
  %918 = vmatprep.subr.bf16.mxu0 0
  %919 = vmatpush1.bf16.msra.mxu0 0
  %920 = vmatprep.subr.bf16.mxu0 0
  %921 = vmatpush1.bf16.msra.mxu0 0
  %922 = vmatprep.subr.bf16.mxu0 0
  %923 = vmatpush1.bf16.msra.mxu0 0
  %924 = vmatprep.subr.bf16.mxu0 0
  %925 = vmatpush1.bf16.msra.mxu0 0
  %926 = vmatprep.subr.bf16.mxu0 0
  %927 = vmatpush1.bf16.msra.mxu0 0
  %928 = vmatprep.subr.bf16.mxu0 0
  %929 = vmatpush1.bf16.msra.mxu0 0
  %930 = vmatprep.subr.bf16.mxu0 0
  %931 = vmatpush1.bf16.msra.mxu0 0
  %932 = vmatprep.subr.bf16.mxu0 0
  %933 = vmatpush1.bf16.msra.mxu0 0
  %934 = vmatprep.subr.bf16.mxu0 0
  %935 = vmatpush1.bf16.msra.mxu0 0
  %936 = vmatprep.subr.bf16.mxu0 0
  %937 = vmatpush1.bf16.msra.mxu0 0
  %938 = vmatprep.subr.bf16.mxu0 0
  %939 = vmatpush1.bf16.msra.mxu0 0
  %940 = vmatprep.mubr.bf16.mxu0 0
  %941 = vmatmul.mubr.bf16.gmra.mrb[0].mxu0 %v903
  %v942 = vpop.f32.mrb[0].mxu0
  %v943 = vadd.f32 0.0, %v942
  %v944 = vpop.f32.mrb[0].mxu0
  %v945 = vpop.f32.mrb[0].mxu0
  %v946 = vpop.f32.mrb[0].mxu0
  %947 = vdwg.mxu0
  %948 = vrot.lane.b32.xlu0 %v236, 64
  %v949 = vpop.permute.xlu0 %948
  %v951 = vsel %vm243, %v751, 0
  %v954 = vsel %vm760, %v949, 0
  %956 = vmatprep.subr.bf16.mxu0 0
  %957 = vmatpush1.bf16.msra.mxu0 %v954
  %958 = vmatprep.subr.bf16.mxu0 0
  %959 = vmatpush1.bf16.msra.mxu0 0
  %960 = vmatprep.subr.bf16.mxu0 0
  %961 = vmatpush1.bf16.msra.mxu0 0
  %962 = vmatprep.subr.bf16.mxu0 0
  %963 = vmatpush1.bf16.msra.mxu0 0
  %964 = vmatprep.subr.bf16.mxu0 0
  %965 = vmatpush1.bf16.msra.mxu0 0
  %966 = vmatprep.subr.bf16.mxu0 0
  %967 = vmatpush1.bf16.msra.mxu0 0
  %968 = vmatprep.subr.bf16.mxu0 0
  %969 = vmatpush1.bf16.msra.mxu0 0
  %970 = vmatprep.subr.bf16.mxu0 0
  %971 = vmatpush1.bf16.msra.mxu0 0
  %972 = vmatprep.subr.bf16.mxu0 0
  %973 = vmatpush1.bf16.msra.mxu0 0
  %974 = vmatprep.subr.bf16.mxu0 0
  %975 = vmatpush1.bf16.msra.mxu0 0
  %976 = vmatprep.subr.bf16.mxu0 0
  %977 = vmatpush1.bf16.msra.mxu0 0
  %978 = vmatprep.subr.bf16.mxu0 0
  %979 = vmatpush1.bf16.msra.mxu0 0
  %980 = vmatprep.subr.bf16.mxu0 0
  %981 = vmatpush1.bf16.msra.mxu0 0
  %982 = vmatprep.subr.bf16.mxu0 0
  %983 = vmatpush1.bf16.msra.mxu0 0
  %984 = vmatprep.subr.bf16.mxu0 0
  %985 = vmatpush1.bf16.msra.mxu0 0
  %986 = vmatprep.subr.bf16.mxu0 0
  %987 = vmatpush1.bf16.msra.mxu0 0
  %988 = vmatprep.mubr.bf16.mxu0 0
  %989 = vmatmul.mubr.bf16.gmra.mrb[0].mxu0 %v951
  %v990 = vpop.f32.mrb[0].mxu0
  %v991 = vadd.f32 0.0, %v990
  %v992 = vpop.f32.mrb[0].mxu0
  %v993 = vpop.f32.mrb[0].mxu0
  %v994 = vpop.f32.mrb[0].mxu0
  %995 = vdwg.mxu0
  %996 = vrot.lane.b32.xlu0 %v237, 64
  %v997 = vpop.permute.xlu0 %996
  %v999 = vsel %vm243, %v752, 0
  %v1002 = vsel %vm760, %v997, 0
  %1004 = vmatprep.subr.bf16.mxu0 0
  %1005 = vmatpush1.bf16.msra.mxu0 %v1002
  %1006 = vmatprep.subr.bf16.mxu0 0
  %1007 = vmatpush1.bf16.msra.mxu0 0
  %1008 = vmatprep.subr.bf16.mxu0 0
  %1009 = vmatpush1.bf16.msra.mxu0 0
  %1010 = vmatprep.subr.bf16.mxu0 0
  %1011 = vmatpush1.bf16.msra.mxu0 0
  %1012 = vmatprep.subr.bf16.mxu0 0
  %1013 = vmatpush1.bf16.msra.mxu0 0
  %1014 = vmatprep.subr.bf16.mxu0 0
  %1015 = vmatpush1.bf16.msra.mxu0 0
  %1016 = vmatprep.subr.bf16.mxu0 0
  %1017 = vmatpush1.bf16.msra.mxu0 0
  %1018 = vmatprep.subr.bf16.mxu0 0
  %1019 = vmatpush1.bf16.msra.mxu0 0
  %1020 = vmatprep.subr.bf16.mxu0 0
  %1021 = vmatpush1.bf16.msra.mxu0 0
  %1022 = vmatprep.subr.bf16.mxu0 0
  %1023 = vmatpush1.bf16.msra.mxu0 0
  %1024 = vmatprep.subr.bf16.mxu0 0
  %1025 = vmatpush1.bf16.msra.mxu0 0
  %1026 = vmatprep.subr.bf16.mxu0 0
  %1027 = vmatpush1.bf16.msra.mxu0 0
  %1028 = vmatprep.subr.bf16.mxu0 0
  %1029 = vmatpush1.bf16.msra.mxu0 0
  %1030 = vmatprep.subr.bf16.mxu0 0
  %1031 = vmatpush1.bf16.msra.mxu0 0
  %1032 = vmatprep.subr.bf16.mxu0 0
  %1033 = vmatpush1.bf16.msra.mxu0 0
  %1034 = vmatprep.subr.bf16.mxu0 0
  %1035 = vmatpush1.bf16.msra.mxu0 0
  %1036 = vmatprep.mubr.bf16.mxu0 0
  %1037 = vmatmul.mubr.bf16.gmra.mrb[0].mxu0 %v999
  %v1038 = vpop.f32.mrb[0].mxu0
  %v1039 = vadd.f32 0.0, %v1038
  %v1040 = vpop.f32.mrb[0].mxu0
  %v1041 = vpop.f32.mrb[0].mxu0
  %v1042 = vpop.f32.mrb[0].mxu0
  %1043 = vdwg.mxu0
  %1044 = vrot.lane.b32.xlu0 %v238, 64
  %v1045 = vpop.permute.xlu0 %1044
  %v1047 = vsel %vm243, %v753, 0
  %v1050 = vsel %vm760, %v1045, 0
  %1052 = vmatprep.subr.bf16.mxu0 0
  %1053 = vmatpush1.bf16.msra.mxu0 %v1050
  %1054 = vmatprep.subr.bf16.mxu0 0
  %1055 = vmatpush1.bf16.msra.mxu0 0
  %1056 = vmatprep.subr.bf16.mxu0 0
  %1057 = vmatpush1.bf16.msra.mxu0 0
  %1058 = vmatprep.subr.bf16.mxu0 0
  %1059 = vmatpush1.bf16.msra.mxu0 0
  %1060 = vmatprep.subr.bf16.mxu0 0
  %1061 = vmatpush1.bf16.msra.mxu0 0
  %1062 = vmatprep.subr.bf16.mxu0 0
  %1063 = vmatpush1.bf16.msra.mxu0 0
  %1064 = vmatprep.subr.bf16.mxu0 0
  %1065 = vmatpush1.bf16.msra.mxu0 0
  %1066 = vmatprep.subr.bf16.mxu0 0
  %1067 = vmatpush1.bf16.msra.mxu0 0
  %1068 = vmatprep.subr.bf16.mxu0 0
  %1069 = vmatpush1.bf16.msra.mxu0 0
  %1070 = vmatprep.subr.bf16.mxu0 0
  %1071 = vmatpush1.bf16.msra.mxu0 0
  %1072 = vmatprep.subr.bf16.mxu0 0
  %1073 = vmatpush1.bf16.msra.mxu0 0
  %1074 = vmatprep.subr.bf16.mxu0 0
  %1075 = vmatpush1.bf16.msra.mxu0 0
  %1076 = vmatprep.subr.bf16.mxu0 0
  %1077 = vmatpush1.bf16.msra.mxu0 0
  %1078 = vmatprep.subr.bf16.mxu0 0
  %1079 = vmatpush1.bf16.msra.mxu0 0
  %1080 = vmatprep.subr.bf16.mxu0 0
  %1081 = vmatpush1.bf16.msra.mxu0 0
  %1082 = vmatprep.subr.bf16.mxu0 0
  %1083 = vmatpush1.bf16.msra.mxu0 0
  %1084 = vmatprep.mubr.bf16.mxu0 0
  %1085 = vmatmul.mubr.bf16.gmra.mrb[0].mxu0 %v1047
  %v1086 = vpop.f32.mrb[0].mxu0
  %v1087 = vadd.f32 0.0, %v1086
  %v1088 = vpop.f32.mrb[0].mxu0
  %v1089 = vpop.f32.mrb[0].mxu0
  %v1090 = vpop.f32.mrb[0].mxu0
  %1091 = vdwg.mxu0
  %1092 = vrot.lane.b32.xlu0 %v239, 64
  %v1093 = vpop.permute.xlu0 %1092
  %v1095 = vsel %vm243, %v754, 0
  %v1098 = vsel %vm760, %v1093, 0
  %1100 = vmatprep.subr.bf16.mxu0 0
  %1101 = vmatpush1.bf16.msra.mxu0 %v1098
  %1102 = vmatprep.subr.bf16.mxu0 0
  %1103 = vmatpush1.bf16.msra.mxu0 0
  %1104 = vmatprep.subr.bf16.mxu0 0
  %1105 = vmatpush1.bf16.msra.mxu0 0
  %1106 = vmatprep.subr.bf16.mxu0 0
  %1107 = vmatpush1.bf16.msra.mxu0 0
  %1108 = vmatprep.subr.bf16.mxu0 0
  %1109 = vmatpush1.bf16.msra.mxu0 0
  %1110 = vmatprep.subr.bf16.mxu0 0
  %1111 = vmatpush1.bf16.msra.mxu0 0
  %1112 = vmatprep.subr.bf16.mxu0 0
  %1113 = vmatpush1.bf16.msra.mxu0 0
  %1114 = vmatprep.subr.bf16.mxu0 0
  %1115 = vmatpush1.bf16.msra.mxu0 0
  %1116 = vmatprep.subr.bf16.mxu0 0
  %1117 = vmatpush1.bf16.msra.mxu0 0
  %1118 = vmatprep.subr.bf16.mxu0 0
  %1119 = vmatpush1.bf16.msra.mxu0 0
  %1120 = vmatprep.subr.bf16.mxu0 0
  %1121 = vmatpush1.bf16.msra.mxu0 0
  %1122 = vmatprep.subr.bf16.mxu0 0
  %1123 = vmatpush1.bf16.msra.mxu0 0
  %1124 = vmatprep.subr.bf16.mxu0 0
  %1125 = vmatpush1.bf16.msra.mxu0 0
  %1126 = vmatprep.subr.bf16.mxu0 0
  %1127 = vmatpush1.bf16.msra.mxu0 0
  %1128 = vmatprep.subr.bf16.mxu0 0
  %1129 = vmatpush1.bf16.msra.mxu0 0
  %1130 = vmatprep.subr.bf16.mxu0 0
  %1131 = vmatpush1.bf16.msra.mxu0 0
  %1132 = vmatprep.mubr.bf16.mxu0 0
  %1133 = vmatmul.mubr.bf16.gmra.mrb[0].mxu0 %v1095
  %v1134 = vpop.f32.mrb[0].mxu0
  %v1135 = vadd.f32 0.0, %v1134
  %v1136 = vpop.f32.mrb[0].mxu0
  %v1137 = vpop.f32.mrb[0].mxu0
  %v1138 = vpop.f32.mrb[0].mxu0
  %1139 = vdwg.mxu0
  %1142 = vrot.lane.b32.xlu0 %v895, 8
  %v1143 = vpop.permute.xlu0 %1142
  %1144 = vrot.lane.b32.xlu0 %v943, 8
  %v1145 = vpop.permute.xlu0 %1144
  %1150 = vrot.lane.b32.xlu0 %v991, 16
  %v1151 = vpop.permute.xlu0 %1150
  %1152 = vrot.lane.b32.xlu0 %v1039, 16
  %v1153 = vpop.permute.xlu0 %1152
  %1158 = vrot.lane.b32.xlu0 %v1087, 24
  %v1159 = vpop.permute.xlu0 %1158
  %1160 = vrot.lane.b32.xlu0 %v1135, 24
  %v1161 = vpop.permute.xlu0 %1160
  %v1164 = vsel %vm243, %v799, %v1143
  %v1165 = vsel %vm243, %v847, %v1145
  %vm1166 = vcmask 130048
  %v1167 = vsel %vm1166, %v1164, %v1151
  %v1168 = vsel %vm1166, %v1165, %v1153
  %vm1169 = vcmask 195584
  %v1170 = vsel %vm1169, %v1167, %v1159
  %v1171 = vsel %vm1169, %v1168, %v1161
  %v1172 = vld [vmem:[%s6] sm:$0xf]
  %v1173 = vld [vmem:[%s6 + $0x4] sm:$0xf]
  %v1174 = vld [vmem:[%s6 + $0x8] sm:$0xf]
  %v1175 = vld [vmem:[%s6 + $0xc] sm:$0xf]
  %v1176 = vld [vmem:[%s7] sm:$0x1]
  %v1177 = vpack.c.bf16 %v1171, %v1170
  %v1179 = vlaneseq
  %v1180 = vshrl.u32 %v1179, 7
  %v1181 = vsub.s32 0, %v1180
  %v1182 = vrot.slane %v1176, %v1181
  %v1188 = vunpack.c.l.b16 %v1172
  %v1189 = vunpack.c.l.b16 %v1173
  %v1190 = vunpack.c.l.b16 %v1174
  %v1191 = vunpack.c.l.b16 %v1175
  %v1192 = vpack.c.b16 %v1189, %v1188
  %v1193 = vpack.c.b16 %v1191, %v1190
  %v1197 = vsel %vm76, %v1177, 0
  %1199 = vmatprep.subr.bf16.mxu0 0
  %1200 = vmatpush1.bf16.msra.mxu0 %v1192
  %1201 = vmatprep.subr.bf16.mxu0 0
  %1202 = vmatpush1.bf16.msra.mxu0 %v1193
  %1203 = vmatprep.subr.bf16.mxu0 0
  %1204 = vmatpush1.bf16.msra.mxu0 0
  %1205 = vmatprep.subr.bf16.mxu0 0
  %1206 = vmatpush1.bf16.msra.mxu0 0
  %1207 = vmatprep.subr.bf16.mxu0 0
  %1208 = vmatpush1.bf16.msra.mxu0 0
  %1209 = vmatprep.subr.bf16.mxu0 0
  %1210 = vmatpush1.bf16.msra.mxu0 0
  %1211 = vmatprep.subr.bf16.mxu0 0
  %1212 = vmatpush1.bf16.msra.mxu0 0
  %1213 = vmatprep.subr.bf16.mxu0 0
  %1214 = vmatpush1.bf16.msra.mxu0 0
  %1215 = vmatprep.subr.bf16.mxu0 0
  %1216 = vmatpush1.bf16.msra.mxu0 0
  %1217 = vmatprep.subr.bf16.mxu0 0
  %1218 = vmatpush1.bf16.msra.mxu0 0
  %1219 = vmatprep.subr.bf16.mxu0 0
  %1220 = vmatpush1.bf16.msra.mxu0 0
  %1221 = vmatprep.subr.bf16.mxu0 0
  %1222 = vmatpush1.bf16.msra.mxu0 0
  %1223 = vmatprep.subr.bf16.mxu0 0
  %1224 = vmatpush1.bf16.msra.mxu0 0
  %1225 = vmatprep.subr.bf16.mxu0 0
  %1226 = vmatpush1.bf16.msra.mxu0 0
  %1227 = vmatprep.subr.bf16.mxu0 0
  %1228 = vmatpush1.bf16.msra.mxu0 0
  %1229 = vmatprep.subr.bf16.mxu0 0
  %1230 = vmatpush1.bf16.msra.mxu0 0
  %1231 = vmatprep.mubr.bf16.mxu0 0
  %1232 = vmatmul.mubr.bf16.gmra.mrb[0].mxu0 %v1197
  %v1233 = vpop.f32.mrb[0].mxu0
  %v1234 = vadd.f32 %v1182, %v1233
  %v1235 = vpop.f32.mrb[0].mxu0
  %v1236 = vpop.f32.mrb[0].mxu0
  %v1237 = vadd.f32 %v1182, %v1236
  %v1238 = vpop.f32.mrb[0].mxu0
  %1239 = vdwg.mxu0
  %v1240 = vadd.f32 %v1234, %v118
  %v1241 = vadd.f32 %v1237, %v119
  %v1242 = vld [vmem:[%s8] sm:$0x1]
  %v1243 = vld [vmem:[%s9] sm:$0x1]
  %v1244 = vsel %vm76, %v1240, 0.0
  %1245 = vadd.xlane.f32.xlu0 %v1244
  %v1246 = vpop.xlane.xlu0 %1245
  %v1247 = vsel %vm76, %v1241, 0.0
  %1248 = vadd.xlane.f32.xlu0 %v1247
  %v1249 = vpop.xlane.xlu0 %1248
  %v1250 = vmul.f32 %v1246, %v83
  %v1251 = vmul.f32 %v1249, %v83
  %v1252 = vsub.f32 %v1240, %v1250
  %v1253 = vsub.f32 %v1241, %v1251
  %v1254 = vmul.f32 %v1252, %v1252
  %v1255 = vmul.f32 %v1253, %v1253
  %v1256 = vsel %vm76, %v1254, 0.0
  %1257 = vadd.xlane.f32.xlu0 %v1256
  %v1258 = vpop.xlane.xlu0 %1257
  %v1259 = vsel %vm76, %v1255, 0.0
  %1260 = vadd.xlane.f32.xlu0 %v1259
  %v1261 = vpop.xlane.xlu0 %1260
  %v1262 = vmul.f32 %v1258, %v83
  %v1263 = vmul.f32 %v1261, %v83
  %v1264 = vadd.f32 %v1262, 1e-12
  %v1265 = vadd.f32 %v1263, 1e-12
  %v1266 = vrsqrt.pop %v1264
  %v1267 = vrsqrt.pop %v1265
  %v1268 = vmul.f32 %v1252, %v1266
  %v1269 = vmul.f32 %v1253, %v1267
  %v1271 = vlaneseq
  %v1272 = vshrl.u32 %v1271, 7
  %v1273 = vsub.s32 0, %v1272
  %v1274 = vrot.slane %v1242, %v1273
  %v1276 = vmul.f32 %v1268, %v1274
  %v1277 = vmul.f32 %v1269, %v1274
  %v1279 = vlaneseq
  %v1280 = vshrl.u32 %v1279, 7
  %v1281 = vsub.s32 0, %v1280
  %v1282 = vrot.slane %v1243, %v1281
  %v1284 = vadd.f32 %v1276, %v1282
  %v1285 = vadd.f32 %v1277, %v1282
  %v1286 = vld [vmem:[%s10] sm:$0xf]
  %v1287 = vld [vmem:[%s10 + $0x4] sm:$0xf]
  %v1288 = vld [vmem:[%s10 + $0x8] sm:$0xf]
  %v1289 = vld [vmem:[%s10 + $0xc] sm:$0xf]
  %v1290 = vld [vmem:[%s11] sm:$0x1]
  %v1291 = vpack.c.bf16 %v1285, %v1284
  %v1293 = vlaneseq
  %v1294 = vshrl.u32 %v1293, 7
  %v1295 = vsub.s32 0, %v1294
  %v1296 = vrot.slane %v1290, %v1295
  %v1302 = vunpack.c.l.b16 %v1286
  %v1303 = vunpack.c.l.b16 %v1287
  %v1304 = vunpack.c.l.b16 %v1288
  %v1305 = vunpack.c.l.b16 %v1289
  %v1306 = vpack.c.b16 %v1303, %v1302
  %v1307 = vpack.c.b16 %v1305, %v1304
  %v1311 = vsel %vm76, %v1291, 0
  %1313 = vmatprep.subr.bf16.mxu0 0
  %1314 = vmatpush1.bf16.msra.mxu0 %v1306
  %1315 = vmatprep.subr.bf16.mxu0 0
  %1316 = vmatpush1.bf16.msra.mxu0 %v1307
  %1317 = vmatprep.subr.bf16.mxu0 0
  %1318 = vmatpush1.bf16.msra.mxu0 0
  %1319 = vmatprep.subr.bf16.mxu0 0
  %1320 = vmatpush1.bf16.msra.mxu0 0
  %1321 = vmatprep.subr.bf16.mxu0 0
  %1322 = vmatpush1.bf16.msra.mxu0 0
  %1323 = vmatprep.subr.bf16.mxu0 0
  %1324 = vmatpush1.bf16.msra.mxu0 0
  %1325 = vmatprep.subr.bf16.mxu0 0
  %1326 = vmatpush1.bf16.msra.mxu0 0
  %1327 = vmatprep.subr.bf16.mxu0 0
  %1328 = vmatpush1.bf16.msra.mxu0 0
  %1329 = vmatprep.subr.bf16.mxu0 0
  %1330 = vmatpush1.bf16.msra.mxu0 0
  %1331 = vmatprep.subr.bf16.mxu0 0
  %1332 = vmatpush1.bf16.msra.mxu0 0
  %1333 = vmatprep.subr.bf16.mxu0 0
  %1334 = vmatpush1.bf16.msra.mxu0 0
  %1335 = vmatprep.subr.bf16.mxu0 0
  %1336 = vmatpush1.bf16.msra.mxu0 0
  %1337 = vmatprep.subr.bf16.mxu0 0
  %1338 = vmatpush1.bf16.msra.mxu0 0
  %1339 = vmatprep.subr.bf16.mxu0 0
  %1340 = vmatpush1.bf16.msra.mxu0 0
  %1341 = vmatprep.subr.bf16.mxu0 0
  %1342 = vmatpush1.bf16.msra.mxu0 0
  %1343 = vmatprep.subr.bf16.mxu0 0
  %1344 = vmatpush1.bf16.msra.mxu0 0
  %1345 = vmatprep.mubr.bf16.mxu0 0
  %1346 = vmatmul.mubr.bf16.gmra.mrb[0].mxu0 %v1311
  %v1347 = vpop.f32.mrb[0].mxu0
  %v1348 = vadd.f32 %v1296, %v1347
  %v1349 = vpop.f32.mrb[0].mxu0
  %v1350 = vpop.f32.mrb[0].mxu0
  %v1351 = vadd.f32 %v1296, %v1350
  %v1352 = vpop.f32.mrb[0].mxu0
  %1353 = vdwg.mxu0
  %v1354 = vmul.f32 %v1348, 0.5
  %v1355 = vmul.f32 %v1351, 0.5
  %v1356 = vmul.f32 %v1348, 0.044715
  %v1357 = vmul.f32 %v1351, 0.044715
  %v1358 = vmul.f32 %v1356, %v1348
  %v1359 = vmul.f32 %v1357, %v1351
  %v1360 = vmul.f32 %v1358, %v1348
  %v1361 = vmul.f32 %v1359, %v1351
  %v1362 = vadd.f32 %v1348, %v1360
  %v1363 = vadd.f32 %v1351, %v1361
  %v1364 = vmul.f32 %v1362, 0.7978846
  %v1365 = vmul.f32 %v1363, 0.7978846
  %v1366 = vtanh.pop %v1364
  %v1367 = vtanh.pop %v1365
  %v1368 = vadd.f32 %v1366, 1.0
  %v1369 = vadd.f32 %v1367, 1.0
  %v1370 = vmul.f32 %v1354, %v1368
  %v1371 = vmul.f32 %v1355, %v1369
  %v1372 = vld [vmem:[%s12] sm:$0xf]
  %v1373 = vld [vmem:[%s12 + $0x4] sm:$0xf]
  %v1374 = vld [vmem:[%s12 + $0x8] sm:$0xf]
  %v1375 = vld [vmem:[%s12 + $0xc] sm:$0xf]
  %v1376 = vld [vmem:[%s12 + $0x10] sm:$0xf]
  %v1377 = vld [vmem:[%s12 + $0x14] sm:$0xf]
  %v1378 = vld [vmem:[%s12 + $0x18] sm:$0xf]
  %v1379 = vld [vmem:[%s12 + $0x1c] sm:$0xf]
  %v1380 = vld [vmem:[%s13] sm:$0x1]
  %v1381 = vpack.c.bf16 %v1371, %v1370
  %v1383 = vlaneseq
  %v1384 = vshrl.u32 %v1383, 7
  %v1385 = vsub.s32 0, %v1384
  %v1386 = vrot.slane %v1380, %v1385
  %v1396 = vunpack.c.l.b16 %v1372
  %v1397 = vunpack.c.l.b16 %v1373
  %v1398 = vunpack.c.l.b16 %v1374
  %v1399 = vunpack.c.l.b16 %v1375
  %v1400 = vunpack.c.l.b16 %v1376
  %v1401 = vunpack.c.l.b16 %v1377
  %v1402 = vunpack.c.l.b16 %v1378
  %v1403 = vunpack.c.l.b16 %v1379
  %v1404 = vpack.c.b16 %v1397, %v1396
  %v1405 = vpack.c.b16 %v1399, %v1398
  %v1406 = vpack.c.b16 %v1401, %v1400
  %v1407 = vpack.c.b16 %v1403, %v1402
  %vm1412 = vcmask 523264
  %v1414 = vsel %vm1412, %v1381, 0
  %1416 = vmatprep.subr.bf16.mxu0 0
  %1417 = vmatpush1.bf16.msra.mxu0 %v1404
  %1418 = vmatprep.subr.bf16.mxu0 0
  %1419 = vmatpush1.bf16.msra.mxu0 %v1405
  %1420 = vmatprep.subr.bf16.mxu0 0
  %1421 = vmatpush1.bf16.msra.mxu0 %v1406
  %1422 = vmatprep.subr.bf16.mxu0 0
  %1423 = vmatpush1.bf16.msra.mxu0 %v1407
  %1424 = vmatprep.subr.bf16.mxu0 0
  %1425 = vmatpush1.bf16.msra.mxu0 0
  %1426 = vmatprep.subr.bf16.mxu0 0
  %1427 = vmatpush1.bf16.msra.mxu0 0
  %1428 = vmatprep.subr.bf16.mxu0 0
  %1429 = vmatpush1.bf16.msra.mxu0 0
  %1430 = vmatprep.subr.bf16.mxu0 0
  %1431 = vmatpush1.bf16.msra.mxu0 0
  %1432 = vmatprep.subr.bf16.mxu0 0
  %1433 = vmatpush1.bf16.msra.mxu0 0
  %1434 = vmatprep.subr.bf16.mxu0 0
  %1435 = vmatpush1.bf16.msra.mxu0 0
  %1436 = vmatprep.subr.bf16.mxu0 0
  %1437 = vmatpush1.bf16.msra.mxu0 0
  %1438 = vmatprep.subr.bf16.mxu0 0
  %1439 = vmatpush1.bf16.msra.mxu0 0
  %1440 = vmatprep.subr.bf16.mxu0 0
  %1441 = vmatpush1.bf16.msra.mxu0 0
  %1442 = vmatprep.subr.bf16.mxu0 0
  %1443 = vmatpush1.bf16.msra.mxu0 0
  %1444 = vmatprep.subr.bf16.mxu0 0
  %1445 = vmatpush1.bf16.msra.mxu0 0
  %1446 = vmatprep.subr.bf16.mxu0 0
  %1447 = vmatpush1.bf16.msra.mxu0 0
  %1448 = vmatprep.mubr.bf16.mxu0 0
  %1449 = vmatmul.mubr.bf16.gmra.mrb[0].mxu0 %v1414
  %v1450 = vpop.f32.mrb[0].mxu0
  %v1451 = vadd.f32 %v1386, %v1450
  %v1452 = vpop.f32.mrb[0].mxu0
  %v1453 = vpop.f32.mrb[0].mxu0
  %v1454 = vadd.f32 %v1386, %v1453
  %v1455 = vpop.f32.mrb[0].mxu0
  %1456 = vdwg.mxu0
  %v1457 = vadd.f32 %v1451, %v1284
  %v1458 = vadd.f32 %v1454, %v1285
  %v1459 = vld [vmem:[%s14] sm:$0x1]
  %v1460 = vld [vmem:[%s15] sm:$0x1]
  %v1461 = vsel %vm76, %v1457, 0.0
  %1462 = vadd.xlane.f32.xlu0 %v1461
  %v1463 = vpop.xlane.xlu0 %1462
  %v1464 = vsel %vm76, %v1458, 0.0
  %1465 = vadd.xlane.f32.xlu0 %v1464
  %v1466 = vpop.xlane.xlu0 %1465
  %v1467 = vmul.f32 %v1463, %v83
  %v1468 = vmul.f32 %v1466, %v83
  %v1469 = vsub.f32 %v1457, %v1467
  %v1470 = vsub.f32 %v1458, %v1468
  %v1471 = vmul.f32 %v1469, %v1469
  %v1472 = vmul.f32 %v1470, %v1470
  %v1473 = vsel %vm76, %v1471, 0.0
  %1474 = vadd.xlane.f32.xlu0 %v1473
  %v1475 = vpop.xlane.xlu0 %1474
  %v1476 = vsel %vm76, %v1472, 0.0
  %1477 = vadd.xlane.f32.xlu0 %v1476
  %v1478 = vpop.xlane.xlu0 %1477
  %v1479 = vmul.f32 %v1475, %v83
  %v1480 = vmul.f32 %v1478, %v83
  %v1481 = vadd.f32 %v1479, 1e-12
  %v1482 = vadd.f32 %v1480, 1e-12
  %v1483 = vrsqrt.pop %v1481
  %v1484 = vrsqrt.pop %v1482
  %v1485 = vmul.f32 %v1469, %v1483
  %v1486 = vmul.f32 %v1470, %v1484
  %v1488 = vlaneseq
  %v1489 = vshrl.u32 %v1488, 7
  %v1490 = vsub.s32 0, %v1489
  %v1491 = vrot.slane %v1459, %v1490
  %v1493 = vmul.f32 %v1485, %v1491
  %v1494 = vmul.f32 %v1486, %v1491
  %v1496 = vlaneseq
  %v1497 = vshrl.u32 %v1496, 7
  %v1498 = vsub.s32 0, %v1497
  %v1499 = vrot.slane %v1460, %v1498
  %v1501 = vadd.f32 %v1493, %v1499
  %v1502 = vadd.f32 %v1494, %v1499
  %s1503 = scalar_lea.vmem %s4, 16
  %v1504 = vld [vmem:[%s1503] sm:$0xf]
  %v1505 = vld [vmem:[%s1503 + $0x4] sm:$0xf]
  %v1506 = vld [vmem:[%s1503 + $0x8] sm:$0xf]
  %v1507 = vld [vmem:[%s1503 + $0xc] sm:$0xf]
  %s1508 = scalar_lea.vmem %s5, 1
  %v1509 = vld [vmem:[%s1508] sm:$0x1]
  %v1510 = vpack.c.bf16 %v1502, %v1501
  %v1512 = vlaneseq
  %v1513 = vshrl.u32 %v1512, 7
  %v1514 = vsub.s32 0, %v1513
  %v1515 = vrot.slane %v1509, %v1514
  %v1521 = vunpack.c.l.b16 %v1504
  %v1522 = vunpack.c.l.b16 %v1505
  %v1523 = vunpack.c.l.b16 %v1506
  %v1524 = vunpack.c.l.b16 %v1507
  %v1525 = vpack.c.b16 %v1522, %v1521
  %v1526 = vpack.c.b16 %v1524, %v1523
  %v1530 = vsel %vm76, %v1510, 0
  %1532 = vmatprep.subr.bf16.mxu0 0
  %1533 = vmatpush1.bf16.msra.mxu0 %v1525
  %1534 = vmatprep.subr.bf16.mxu0 0
  %1535 = vmatpush1.bf16.msra.mxu0 %v1526
  %1536 = vmatprep.subr.bf16.mxu0 0
  %1537 = vmatpush1.bf16.msra.mxu0 0
  %1538 = vmatprep.subr.bf16.mxu0 0
  %1539 = vmatpush1.bf16.msra.mxu0 0
  %1540 = vmatprep.subr.bf16.mxu0 0
  %1541 = vmatpush1.bf16.msra.mxu0 0
  %1542 = vmatprep.subr.bf16.mxu0 0
  %1543 = vmatpush1.bf16.msra.mxu0 0
  %1544 = vmatprep.subr.bf16.mxu0 0
  %1545 = vmatpush1.bf16.msra.mxu0 0
  %1546 = vmatprep.subr.bf16.mxu0 0
  %1547 = vmatpush1.bf16.msra.mxu0 0
  %1548 = vmatprep.subr.bf16.mxu0 0
  %1549 = vmatpush1.bf16.msra.mxu0 0
  %1550 = vmatprep.subr.bf16.mxu0 0
  %1551 = vmatpush1.bf16.msra.mxu0 0
  %1552 = vmatprep.subr.bf16.mxu0 0
  %1553 = vmatpush1.bf16.msra.mxu0 0
  %1554 = vmatprep.subr.bf16.mxu0 0
  %1555 = vmatpush1.bf16.msra.mxu0 0
  %1556 = vmatprep.subr.bf16.mxu0 0
  %1557 = vmatpush1.bf16.msra.mxu0 0
  %1558 = vmatprep.subr.bf16.mxu0 0
  %1559 = vmatpush1.bf16.msra.mxu0 0
  %1560 = vmatprep.subr.bf16.mxu0 0
  %1561 = vmatpush1.bf16.msra.mxu0 0
  %1562 = vmatprep.subr.bf16.mxu0 0
  %1563 = vmatpush1.bf16.msra.mxu0 0
  %1564 = vmatprep.mubr.bf16.mxu0 0
  %1565 = vmatmul.mubr.bf16.gmra.mrb[0].mxu0 %v1530
  %v1566 = vpop.f32.mrb[0].mxu0
  %v1567 = vadd.f32 %v1515, %v1566
  %v1568 = vpop.f32.mrb[0].mxu0
  %v1569 = vpop.f32.mrb[0].mxu0
  %v1570 = vadd.f32 %v1515, %v1569
  %v1571 = vpop.f32.mrb[0].mxu0
  %1572 = vdwg.mxu0
  %1575 = vrot.lane.b32.xlu0 %v1567, 120
  %v1576 = vpop.permute.xlu0 %1575
  %1577 = vrot.lane.b32.xlu0 %v1570, 120
  %v1578 = vpop.permute.xlu0 %1577
  %1581 = vrot.lane.b32.xlu0 %v1567, 112
  %v1582 = vpop.permute.xlu0 %1581
  %1583 = vrot.lane.b32.xlu0 %v1570, 112
  %v1584 = vpop.permute.xlu0 %1583
  %1587 = vrot.lane.b32.xlu0 %v1567, 104
  %v1588 = vpop.permute.xlu0 %1587
  %1589 = vrot.lane.b32.xlu0 %v1570, 104
  %v1590 = vpop.permute.xlu0 %1589
  %v1593 = vpack.c.bf16 %v1567, %v1567
  %v1594 = vpack.c.bf16 %v1570, %v1570
  %v1595 = vpack.c.bf16 %v1576, %v1576
  %v1596 = vpack.c.bf16 %v1578, %v1578
  %v1597 = vpack.c.bf16 %v1582, %v1582
  %v1598 = vpack.c.bf16 %v1584, %v1584
  %v1599 = vpack.c.bf16 %v1588, %v1588
  %v1600 = vpack.c.bf16 %v1590, %v1590
  %1602 = vrot.lane.b32.xlu0 %v1593, 96
  %v1603 = vpop.permute.xlu0 %1602
  %v1605 = vsel %vm243, %v1593, 0
  %v1608 = vsel %vm243, %v1603, 0
  %1610 = vmatprep.subr.bf16.mxu0 0
  %1611 = vmatpush1.bf16.xpose.msra.mxu0 %v1608
  %1612 = vmatprep.subr.bf16.mxu0 0
  %1613 = vmatpush1.bf16.xpose.msra.mxu0 0
  %1614 = vmatprep.subr.bf16.mxu0 0
  %1615 = vmatpush1.bf16.xpose.msra.mxu0 0
  %1616 = vmatprep.subr.bf16.mxu0 0
  %1617 = vmatpush1.bf16.xpose.msra.mxu0 0
  %1618 = vmatprep.subr.bf16.mxu0 0
  %1619 = vmatpush1.bf16.xpose.msra.mxu0 0
  %1620 = vmatprep.subr.bf16.mxu0 0
  %1621 = vmatpush1.bf16.xpose.msra.mxu0 0
  %1622 = vmatprep.subr.bf16.mxu0 0
  %1623 = vmatpush1.bf16.xpose.msra.mxu0 0
  %1624 = vmatprep.subr.bf16.mxu0 0
  %1625 = vmatpush1.bf16.xpose.msra.mxu0 0
  %1626 = vmatprep.subr.bf16.mxu0 0
  %1627 = vmatpush1.bf16.xpose.msra.mxu0 0
  %1628 = vmatprep.subr.bf16.mxu0 0
  %1629 = vmatpush1.bf16.xpose.msra.mxu0 0
  %1630 = vmatprep.subr.bf16.mxu0 0
  %1631 = vmatpush1.bf16.xpose.msra.mxu0 0
  %1632 = vmatprep.subr.bf16.mxu0 0
  %1633 = vmatpush1.bf16.xpose.msra.mxu0 0
  %1634 = vmatprep.subr.bf16.mxu0 0
  %1635 = vmatpush1.bf16.xpose.msra.mxu0 0
  %1636 = vmatprep.subr.bf16.mxu0 0
  %1637 = vmatpush1.bf16.xpose.msra.mxu0 0
  %1638 = vmatprep.subr.bf16.mxu0 0
  %1639 = vmatpush1.bf16.xpose.msra.mxu0 0
  %1640 = vmatprep.subr.bf16.mxu0 0
  %1641 = vmatpush1.bf16.xpose.msra.mxu0 0
  %1642 = vmatprep.mubr.bf16.mxu0 0
  %1643 = vmatmul.mubr.bf16.gmra.mrb[0].mxu0 %v1605
  %v1644 = vpop.f32.mrb[0].mxu0
  %v1645 = vadd.f32 0.0, %v1644
  %v1646 = vpop.f32.mrb[0].mxu0
  %v1647 = vpop.f32.mrb[0].mxu0
  %v1648 = vpop.f32.mrb[0].mxu0
  %1649 = vdwg.mxu0
  %1651 = vrot.lane.b32.xlu0 %v1594, 96
  %v1652 = vpop.permute.xlu0 %1651
  %v1654 = vsel %vm243, %v1594, 0
  %v1657 = vsel %vm243, %v1652, 0
  %1659 = vmatprep.subr.bf16.mxu0 0
  %1660 = vmatpush1.bf16.xpose.msra.mxu0 %v1657
  %1661 = vmatprep.subr.bf16.mxu0 0
  %1662 = vmatpush1.bf16.xpose.msra.mxu0 0
  %1663 = vmatprep.subr.bf16.mxu0 0
  %1664 = vmatpush1.bf16.xpose.msra.mxu0 0
  %1665 = vmatprep.subr.bf16.mxu0 0
  %1666 = vmatpush1.bf16.xpose.msra.mxu0 0
  %1667 = vmatprep.subr.bf16.mxu0 0
  %1668 = vmatpush1.bf16.xpose.msra.mxu0 0
  %1669 = vmatprep.subr.bf16.mxu0 0
  %1670 = vmatpush1.bf16.xpose.msra.mxu0 0
  %1671 = vmatprep.subr.bf16.mxu0 0
  %1672 = vmatpush1.bf16.xpose.msra.mxu0 0
  %1673 = vmatprep.subr.bf16.mxu0 0
  %1674 = vmatpush1.bf16.xpose.msra.mxu0 0
  %1675 = vmatprep.subr.bf16.mxu0 0
  %1676 = vmatpush1.bf16.xpose.msra.mxu0 0
  %1677 = vmatprep.subr.bf16.mxu0 0
  %1678 = vmatpush1.bf16.xpose.msra.mxu0 0
  %1679 = vmatprep.subr.bf16.mxu0 0
  %1680 = vmatpush1.bf16.xpose.msra.mxu0 0
  %1681 = vmatprep.subr.bf16.mxu0 0
  %1682 = vmatpush1.bf16.xpose.msra.mxu0 0
  %1683 = vmatprep.subr.bf16.mxu0 0
  %1684 = vmatpush1.bf16.xpose.msra.mxu0 0
  %1685 = vmatprep.subr.bf16.mxu0 0
  %1686 = vmatpush1.bf16.xpose.msra.mxu0 0
  %1687 = vmatprep.subr.bf16.mxu0 0
  %1688 = vmatpush1.bf16.xpose.msra.mxu0 0
  %1689 = vmatprep.subr.bf16.mxu0 0
  %1690 = vmatpush1.bf16.xpose.msra.mxu0 0
  %1691 = vmatprep.mubr.bf16.mxu0 0
  %1692 = vmatmul.mubr.bf16.gmra.mrb[0].mxu0 %v1654
  %v1693 = vpop.f32.mrb[0].mxu0
  %v1694 = vadd.f32 0.0, %v1693
  %v1695 = vpop.f32.mrb[0].mxu0
  %v1696 = vpop.f32.mrb[0].mxu0
  %v1697 = vpop.f32.mrb[0].mxu0
  %1698 = vdwg.mxu0
  %1700 = vrot.lane.b32.xlu0 %v1595, 96
  %v1701 = vpop.permute.xlu0 %1700
  %v1703 = vsel %vm243, %v1595, 0
  %v1706 = vsel %vm243, %v1701, 0
  %1708 = vmatprep.subr.bf16.mxu0 0
  %1709 = vmatpush1.bf16.xpose.msra.mxu0 %v1706
  %1710 = vmatprep.subr.bf16.mxu0 0
  %1711 = vmatpush1.bf16.xpose.msra.mxu0 0
  %1712 = vmatprep.subr.bf16.mxu0 0
  %1713 = vmatpush1.bf16.xpose.msra.mxu0 0
  %1714 = vmatprep.subr.bf16.mxu0 0
  %1715 = vmatpush1.bf16.xpose.msra.mxu0 0
  %1716 = vmatprep.subr.bf16.mxu0 0
  %1717 = vmatpush1.bf16.xpose.msra.mxu0 0
  %1718 = vmatprep.subr.bf16.mxu0 0
  %1719 = vmatpush1.bf16.xpose.msra.mxu0 0
  %1720 = vmatprep.subr.bf16.mxu0 0
  %1721 = vmatpush1.bf16.xpose.msra.mxu0 0
  %1722 = vmatprep.subr.bf16.mxu0 0
  %1723 = vmatpush1.bf16.xpose.msra.mxu0 0
  %1724 = vmatprep.subr.bf16.mxu0 0
  %1725 = vmatpush1.bf16.xpose.msra.mxu0 0
  %1726 = vmatprep.subr.bf16.mxu0 0
  %1727 = vmatpush1.bf16.xpose.msra.mxu0 0
  %1728 = vmatprep.subr.bf16.mxu0 0
  %1729 = vmatpush1.bf16.xpose.msra.mxu0 0
  %1730 = vmatprep.subr.bf16.mxu0 0
  %1731 = vmatpush1.bf16.xpose.msra.mxu0 0
  %1732 = vmatprep.subr.bf16.mxu0 0
  %1733 = vmatpush1.bf16.xpose.msra.mxu0 0
  %1734 = vmatprep.subr.bf16.mxu0 0
  %1735 = vmatpush1.bf16.xpose.msra.mxu0 0
  %1736 = vmatprep.subr.bf16.mxu0 0
  %1737 = vmatpush1.bf16.xpose.msra.mxu0 0
  %1738 = vmatprep.subr.bf16.mxu0 0
  %1739 = vmatpush1.bf16.xpose.msra.mxu0 0
  %1740 = vmatprep.mubr.bf16.mxu0 0
  %1741 = vmatmul.mubr.bf16.gmra.mrb[0].mxu0 %v1703
  %v1742 = vpop.f32.mrb[0].mxu0
  %v1743 = vadd.f32 0.0, %v1742
  %v1744 = vpop.f32.mrb[0].mxu0
  %v1745 = vpop.f32.mrb[0].mxu0
  %v1746 = vpop.f32.mrb[0].mxu0
  %1747 = vdwg.mxu0
  %1749 = vrot.lane.b32.xlu0 %v1596, 96
  %v1750 = vpop.permute.xlu0 %1749
  %v1752 = vsel %vm243, %v1596, 0
  %v1755 = vsel %vm243, %v1750, 0
  %1757 = vmatprep.subr.bf16.mxu0 0
  %1758 = vmatpush1.bf16.xpose.msra.mxu0 %v1755
  %1759 = vmatprep.subr.bf16.mxu0 0
  %1760 = vmatpush1.bf16.xpose.msra.mxu0 0
  %1761 = vmatprep.subr.bf16.mxu0 0
  %1762 = vmatpush1.bf16.xpose.msra.mxu0 0
  %1763 = vmatprep.subr.bf16.mxu0 0
  %1764 = vmatpush1.bf16.xpose.msra.mxu0 0
  %1765 = vmatprep.subr.bf16.mxu0 0
  %1766 = vmatpush1.bf16.xpose.msra.mxu0 0
  %1767 = vmatprep.subr.bf16.mxu0 0
  %1768 = vmatpush1.bf16.xpose.msra.mxu0 0
  %1769 = vmatprep.subr.bf16.mxu0 0
  %1770 = vmatpush1.bf16.xpose.msra.mxu0 0
  %1771 = vmatprep.subr.bf16.mxu0 0
  %1772 = vmatpush1.bf16.xpose.msra.mxu0 0
  %1773 = vmatprep.subr.bf16.mxu0 0
  %1774 = vmatpush1.bf16.xpose.msra.mxu0 0
  %1775 = vmatprep.subr.bf16.mxu0 0
  %1776 = vmatpush1.bf16.xpose.msra.mxu0 0
  %1777 = vmatprep.subr.bf16.mxu0 0
  %1778 = vmatpush1.bf16.xpose.msra.mxu0 0
  %1779 = vmatprep.subr.bf16.mxu0 0
  %1780 = vmatpush1.bf16.xpose.msra.mxu0 0
  %1781 = vmatprep.subr.bf16.mxu0 0
  %1782 = vmatpush1.bf16.xpose.msra.mxu0 0
  %1783 = vmatprep.subr.bf16.mxu0 0
  %1784 = vmatpush1.bf16.xpose.msra.mxu0 0
  %1785 = vmatprep.subr.bf16.mxu0 0
  %1786 = vmatpush1.bf16.xpose.msra.mxu0 0
  %1787 = vmatprep.subr.bf16.mxu0 0
  %1788 = vmatpush1.bf16.xpose.msra.mxu0 0
  %1789 = vmatprep.mubr.bf16.mxu0 0
  %1790 = vmatmul.mubr.bf16.gmra.mrb[0].mxu0 %v1752
  %v1791 = vpop.f32.mrb[0].mxu0
  %v1792 = vadd.f32 0.0, %v1791
  %v1793 = vpop.f32.mrb[0].mxu0
  %v1794 = vpop.f32.mrb[0].mxu0
  %v1795 = vpop.f32.mrb[0].mxu0
  %1796 = vdwg.mxu0
  %1798 = vrot.lane.b32.xlu0 %v1597, 96
  %v1799 = vpop.permute.xlu0 %1798
  %v1801 = vsel %vm243, %v1597, 0
  %v1804 = vsel %vm243, %v1799, 0
  %1806 = vmatprep.subr.bf16.mxu0 0
  %1807 = vmatpush1.bf16.xpose.msra.mxu0 %v1804
  %1808 = vmatprep.subr.bf16.mxu0 0
  %1809 = vmatpush1.bf16.xpose.msra.mxu0 0
  %1810 = vmatprep.subr.bf16.mxu0 0
  %1811 = vmatpush1.bf16.xpose.msra.mxu0 0
  %1812 = vmatprep.subr.bf16.mxu0 0
  %1813 = vmatpush1.bf16.xpose.msra.mxu0 0
  %1814 = vmatprep.subr.bf16.mxu0 0
  %1815 = vmatpush1.bf16.xpose.msra.mxu0 0
  %1816 = vmatprep.subr.bf16.mxu0 0
  %1817 = vmatpush1.bf16.xpose.msra.mxu0 0
  %1818 = vmatprep.subr.bf16.mxu0 0
  %1819 = vmatpush1.bf16.xpose.msra.mxu0 0
  %1820 = vmatprep.subr.bf16.mxu0 0
  %1821 = vmatpush1.bf16.xpose.msra.mxu0 0
  %1822 = vmatprep.subr.bf16.mxu0 0
  %1823 = vmatpush1.bf16.xpose.msra.mxu0 0
  %1824 = vmatprep.subr.bf16.mxu0 0
  %1825 = vmatpush1.bf16.xpose.msra.mxu0 0
  %1826 = vmatprep.subr.bf16.mxu0 0
  %1827 = vmatpush1.bf16.xpose.msra.mxu0 0
  %1828 = vmatprep.subr.bf16.mxu0 0
  %1829 = vmatpush1.bf16.xpose.msra.mxu0 0
  %1830 = vmatprep.subr.bf16.mxu0 0
  %1831 = vmatpush1.bf16.xpose.msra.mxu0 0
  %1832 = vmatprep.subr.bf16.mxu0 0
  %1833 = vmatpush1.bf16.xpose.msra.mxu0 0
  %1834 = vmatprep.subr.bf16.mxu0 0
  %1835 = vmatpush1.bf16.xpose.msra.mxu0 0
  %1836 = vmatprep.subr.bf16.mxu0 0
  %1837 = vmatpush1.bf16.xpose.msra.mxu0 0
  %1838 = vmatprep.mubr.bf16.mxu0 0
  %1839 = vmatmul.mubr.bf16.gmra.mrb[0].mxu0 %v1801
  %v1840 = vpop.f32.mrb[0].mxu0
  %v1841 = vadd.f32 0.0, %v1840
  %v1842 = vpop.f32.mrb[0].mxu0
  %v1843 = vpop.f32.mrb[0].mxu0
  %v1844 = vpop.f32.mrb[0].mxu0
  %1845 = vdwg.mxu0
  %1847 = vrot.lane.b32.xlu0 %v1598, 96
  %v1848 = vpop.permute.xlu0 %1847
  %v1850 = vsel %vm243, %v1598, 0
  %v1853 = vsel %vm243, %v1848, 0
  %1855 = vmatprep.subr.bf16.mxu0 0
  %1856 = vmatpush1.bf16.xpose.msra.mxu0 %v1853
  %1857 = vmatprep.subr.bf16.mxu0 0
  %1858 = vmatpush1.bf16.xpose.msra.mxu0 0
  %1859 = vmatprep.subr.bf16.mxu0 0
  %1860 = vmatpush1.bf16.xpose.msra.mxu0 0
  %1861 = vmatprep.subr.bf16.mxu0 0
  %1862 = vmatpush1.bf16.xpose.msra.mxu0 0
  %1863 = vmatprep.subr.bf16.mxu0 0
  %1864 = vmatpush1.bf16.xpose.msra.mxu0 0
  %1865 = vmatprep.subr.bf16.mxu0 0
  %1866 = vmatpush1.bf16.xpose.msra.mxu0 0
  %1867 = vmatprep.subr.bf16.mxu0 0
  %1868 = vmatpush1.bf16.xpose.msra.mxu0 0
  %1869 = vmatprep.subr.bf16.mxu0 0
  %1870 = vmatpush1.bf16.xpose.msra.mxu0 0
  %1871 = vmatprep.subr.bf16.mxu0 0
  %1872 = vmatpush1.bf16.xpose.msra.mxu0 0
  %1873 = vmatprep.subr.bf16.mxu0 0
  %1874 = vmatpush1.bf16.xpose.msra.mxu0 0
  %1875 = vmatprep.subr.bf16.mxu0 0
  %1876 = vmatpush1.bf16.xpose.msra.mxu0 0
  %1877 = vmatprep.subr.bf16.mxu0 0
  %1878 = vmatpush1.bf16.xpose.msra.mxu0 0
  %1879 = vmatprep.subr.bf16.mxu0 0
  %1880 = vmatpush1.bf16.xpose.msra.mxu0 0
  %1881 = vmatprep.subr.bf16.mxu0 0
  %1882 = vmatpush1.bf16.xpose.msra.mxu0 0
  %1883 = vmatprep.subr.bf16.mxu0 0
  %1884 = vmatpush1.bf16.xpose.msra.mxu0 0
  %1885 = vmatprep.subr.bf16.mxu0 0
  %1886 = vmatpush1.bf16.xpose.msra.mxu0 0
  %1887 = vmatprep.mubr.bf16.mxu0 0
  %1888 = vmatmul.mubr.bf16.gmra.mrb[0].mxu0 %v1850
  %v1889 = vpop.f32.mrb[0].mxu0
  %v1890 = vadd.f32 0.0, %v1889
  %v1891 = vpop.f32.mrb[0].mxu0
  %v1892 = vpop.f32.mrb[0].mxu0
  %v1893 = vpop.f32.mrb[0].mxu0
  %1894 = vdwg.mxu0
  %1896 = vrot.lane.b32.xlu0 %v1599, 96
  %v1897 = vpop.permute.xlu0 %1896
  %v1899 = vsel %vm243, %v1599, 0
  %v1902 = vsel %vm243, %v1897, 0
  %1904 = vmatprep.subr.bf16.mxu0 0
  %1905 = vmatpush1.bf16.xpose.msra.mxu0 %v1902
  %1906 = vmatprep.subr.bf16.mxu0 0
  %1907 = vmatpush1.bf16.xpose.msra.mxu0 0
  %1908 = vmatprep.subr.bf16.mxu0 0
  %1909 = vmatpush1.bf16.xpose.msra.mxu0 0
  %1910 = vmatprep.subr.bf16.mxu0 0
  %1911 = vmatpush1.bf16.xpose.msra.mxu0 0
  %1912 = vmatprep.subr.bf16.mxu0 0
  %1913 = vmatpush1.bf16.xpose.msra.mxu0 0
  %1914 = vmatprep.subr.bf16.mxu0 0
  %1915 = vmatpush1.bf16.xpose.msra.mxu0 0
  %1916 = vmatprep.subr.bf16.mxu0 0
  %1917 = vmatpush1.bf16.xpose.msra.mxu0 0
  %1918 = vmatprep.subr.bf16.mxu0 0
  %1919 = vmatpush1.bf16.xpose.msra.mxu0 0
  %1920 = vmatprep.subr.bf16.mxu0 0
  %1921 = vmatpush1.bf16.xpose.msra.mxu0 0
  %1922 = vmatprep.subr.bf16.mxu0 0
  %1923 = vmatpush1.bf16.xpose.msra.mxu0 0
  %1924 = vmatprep.subr.bf16.mxu0 0
  %1925 = vmatpush1.bf16.xpose.msra.mxu0 0
  %1926 = vmatprep.subr.bf16.mxu0 0
  %1927 = vmatpush1.bf16.xpose.msra.mxu0 0
  %1928 = vmatprep.subr.bf16.mxu0 0
  %1929 = vmatpush1.bf16.xpose.msra.mxu0 0
  %1930 = vmatprep.subr.bf16.mxu0 0
  %1931 = vmatpush1.bf16.xpose.msra.mxu0 0
  %1932 = vmatprep.subr.bf16.mxu0 0
  %1933 = vmatpush1.bf16.xpose.msra.mxu0 0
  %1934 = vmatprep.subr.bf16.mxu0 0
  %1935 = vmatpush1.bf16.xpose.msra.mxu0 0
  %1936 = vmatprep.mubr.bf16.mxu0 0
  %1937 = vmatmul.mubr.bf16.gmra.mrb[0].mxu0 %v1899
  %v1938 = vpop.f32.mrb[0].mxu0
  %v1939 = vadd.f32 0.0, %v1938
  %v1940 = vpop.f32.mrb[0].mxu0
  %v1941 = vpop.f32.mrb[0].mxu0
  %v1942 = vpop.f32.mrb[0].mxu0
  %1943 = vdwg.mxu0
  %1945 = vrot.lane.b32.xlu0 %v1600, 96
  %v1946 = vpop.permute.xlu0 %1945
  %v1948 = vsel %vm243, %v1600, 0
  %v1951 = vsel %vm243, %v1946, 0
  %1953 = vmatprep.subr.bf16.mxu0 0
  %1954 = vmatpush1.bf16.xpose.msra.mxu0 %v1951
  %1955 = vmatprep.subr.bf16.mxu0 0
  %1956 = vmatpush1.bf16.xpose.msra.mxu0 0
  %1957 = vmatprep.subr.bf16.mxu0 0
  %1958 = vmatpush1.bf16.xpose.msra.mxu0 0
  %1959 = vmatprep.subr.bf16.mxu0 0
  %1960 = vmatpush1.bf16.xpose.msra.mxu0 0
  %1961 = vmatprep.subr.bf16.mxu0 0
  %1962 = vmatpush1.bf16.xpose.msra.mxu0 0
  %1963 = vmatprep.subr.bf16.mxu0 0
  %1964 = vmatpush1.bf16.xpose.msra.mxu0 0
  %1965 = vmatprep.subr.bf16.mxu0 0
  %1966 = vmatpush1.bf16.xpose.msra.mxu0 0
  %1967 = vmatprep.subr.bf16.mxu0 0
  %1968 = vmatpush1.bf16.xpose.msra.mxu0 0
  %1969 = vmatprep.subr.bf16.mxu0 0
  %1970 = vmatpush1.bf16.xpose.msra.mxu0 0
  %1971 = vmatprep.subr.bf16.mxu0 0
  %1972 = vmatpush1.bf16.xpose.msra.mxu0 0
  %1973 = vmatprep.subr.bf16.mxu0 0
  %1974 = vmatpush1.bf16.xpose.msra.mxu0 0
  %1975 = vmatprep.subr.bf16.mxu0 0
  %1976 = vmatpush1.bf16.xpose.msra.mxu0 0
  %1977 = vmatprep.subr.bf16.mxu0 0
  %1978 = vmatpush1.bf16.xpose.msra.mxu0 0
  %1979 = vmatprep.subr.bf16.mxu0 0
  %1980 = vmatpush1.bf16.xpose.msra.mxu0 0
  %1981 = vmatprep.subr.bf16.mxu0 0
  %1982 = vmatpush1.bf16.xpose.msra.mxu0 0
  %1983 = vmatprep.subr.bf16.mxu0 0
  %1984 = vmatpush1.bf16.xpose.msra.mxu0 0
  %1985 = vmatprep.mubr.bf16.mxu0 0
  %1986 = vmatmul.mubr.bf16.gmra.mrb[0].mxu0 %v1948
  %v1987 = vpop.f32.mrb[0].mxu0
  %v1988 = vadd.f32 0.0, %v1987
  %v1989 = vpop.f32.mrb[0].mxu0
  %v1990 = vpop.f32.mrb[0].mxu0
  %v1991 = vpop.f32.mrb[0].mxu0
  %1992 = vdwg.mxu0
  %v1993 = vmul.f32 %v1645, 0.35355338
  %v1994 = vmul.f32 %v1694, 0.35355338
  %v1995 = vmul.f32 %v1743, 0.35355338
  %v1996 = vmul.f32 %v1792, 0.35355338
  %v1997 = vmul.f32 %v1841, 0.35355338
  %v1998 = vmul.f32 %v1890, 0.35355338
  %v1999 = vmul.f32 %v1939, 0.35355338
  %v2000 = vmul.f32 %v1988, 0.35355338
  %v2001 = vadd.f32 %v1993, %v644
  %v2002 = vadd.f32 %v1994, %v648
  %v2003 = vadd.f32 %v1995, %v644
  %v2004 = vadd.f32 %v1996, %v648
  %v2005 = vadd.f32 %v1997, %v644
  %v2006 = vadd.f32 %v1998, %v648
  %v2007 = vadd.f32 %v1999, %v644
  %v2008 = vadd.f32 %v2000, %v648
  %v2009 = vsel %vm243, %v2001, -inf
  %2010 = vmax.xlane.f32.xlu0 %v2009
  %v2011 = vpop.xlane.xlu0 %2010
  %v2012 = vsel %vm243, %v2002, -inf
  %2013 = vmax.xlane.f32.xlu0 %v2012
  %v2014 = vpop.xlane.xlu0 %2013
  %v2015 = vsel %vm243, %v2003, -inf
  %2016 = vmax.xlane.f32.xlu0 %v2015
  %v2017 = vpop.xlane.xlu0 %2016
  %v2018 = vsel %vm243, %v2004, -inf
  %2019 = vmax.xlane.f32.xlu0 %v2018
  %v2020 = vpop.xlane.xlu0 %2019
  %v2021 = vsel %vm243, %v2005, -inf
  %2022 = vmax.xlane.f32.xlu0 %v2021
  %v2023 = vpop.xlane.xlu0 %2022
  %v2024 = vsel %vm243, %v2006, -inf
  %2025 = vmax.xlane.f32.xlu0 %v2024
  %v2026 = vpop.xlane.xlu0 %2025
  %v2027 = vsel %vm243, %v2007, -inf
  %2028 = vmax.xlane.f32.xlu0 %v2027
  %v2029 = vpop.xlane.xlu0 %2028
  %v2030 = vsel %vm243, %v2008, -inf
  %2031 = vmax.xlane.f32.xlu0 %v2030
  %v2032 = vpop.xlane.xlu0 %2031
  %v2033 = vsub.f32 %v2001, %v2011
  %v2034 = vsub.f32 %v2002, %v2014
  %v2035 = vsub.f32 %v2003, %v2017
  %v2036 = vsub.f32 %v2004, %v2020
  %v2037 = vsub.f32 %v2005, %v2023
  %v2038 = vsub.f32 %v2006, %v2026
  %v2039 = vsub.f32 %v2007, %v2029
  %v2040 = vsub.f32 %v2008, %v2032
  %v2041 = vmul.f32 %v2033, 1.442695
  %v2042 = vpow.pop %v2041
  %v2043 = vmul.f32 %v2034, 1.442695
  %v2044 = vpow.pop %v2043
  %v2045 = vmul.f32 %v2035, 1.442695
  %v2046 = vpow.pop %v2045
  %v2047 = vmul.f32 %v2036, 1.442695
  %v2048 = vpow.pop %v2047
  %v2049 = vmul.f32 %v2037, 1.442695
  %v2050 = vpow.pop %v2049
  %v2051 = vmul.f32 %v2038, 1.442695
  %v2052 = vpow.pop %v2051
  %v2053 = vmul.f32 %v2039, 1.442695
  %v2054 = vpow.pop %v2053
  %v2055 = vmul.f32 %v2040, 1.442695
  %v2056 = vpow.pop %v2055
  %v2057 = vsel %vm243, %v2042, 0.0
  %2058 = vadd.xlane.f32.xlu0 %v2057
  %v2059 = vpop.xlane.xlu0 %2058
  %v2060 = vsel %vm243, %v2044, 0.0
  %2061 = vadd.xlane.f32.xlu0 %v2060
  %v2062 = vpop.xlane.xlu0 %2061
  %v2063 = vsel %vm243, %v2046, 0.0
  %2064 = vadd.xlane.f32.xlu0 %v2063
  %v2065 = vpop.xlane.xlu0 %2064
  %v2066 = vsel %vm243, %v2048, 0.0
  %2067 = vadd.xlane.f32.xlu0 %v2066
  %v2068 = vpop.xlane.xlu0 %2067
  %v2069 = vsel %vm243, %v2050, 0.0
  %2070 = vadd.xlane.f32.xlu0 %v2069
  %v2071 = vpop.xlane.xlu0 %2070
  %v2072 = vsel %vm243, %v2052, 0.0
  %2073 = vadd.xlane.f32.xlu0 %v2072
  %v2074 = vpop.xlane.xlu0 %2073
  %v2075 = vsel %vm243, %v2054, 0.0
  %2076 = vadd.xlane.f32.xlu0 %v2075
  %v2077 = vpop.xlane.xlu0 %2076
  %v2078 = vsel %vm243, %v2056, 0.0
  %2079 = vadd.xlane.f32.xlu0 %v2078
  %v2080 = vpop.xlane.xlu0 %2079
  %v2081 = vrcp.pop %v2059
  %v2082 = vrcp.pop %v2062
  %v2083 = vrcp.pop %v2065
  %v2084 = vrcp.pop %v2068
  %v2085 = vrcp.pop %v2071
  %v2086 = vrcp.pop %v2074
  %v2087 = vrcp.pop %v2077
  %v2088 = vrcp.pop %v2080
  %v2089 = vmul.f32 %v2042, %v2081
  %v2090 = vmul.f32 %v2044, %v2082
  %v2091 = vmul.f32 %v2046, %v2083
  %v2092 = vmul.f32 %v2048, %v2084
  %v2093 = vmul.f32 %v2050, %v2085
  %v2094 = vmul.f32 %v2052, %v2086
  %v2095 = vmul.f32 %v2054, %v2087
  %v2096 = vmul.f32 %v2056, %v2088
  %v2097 = vpack.c.bf16 %v2089, %v2089
  %v2098 = vpack.c.bf16 %v2090, %v2090
  %v2099 = vpack.c.bf16 %v2091, %v2091
  %v2100 = vpack.c.bf16 %v2092, %v2092
  %v2101 = vpack.c.bf16 %v2093, %v2093
  %v2102 = vpack.c.bf16 %v2094, %v2094
  %v2103 = vpack.c.bf16 %v2095, %v2095
  %v2104 = vpack.c.bf16 %v2096, %v2096
  %2105 = vrot.lane.b32.xlu0 %v1593, 64
  %v2106 = vpop.permute.xlu0 %2105
  %v2108 = vsel %vm243, %v2097, 0
  %v2111 = vsel %vm760, %v2106, 0
  %2113 = vmatprep.subr.bf16.mxu0 0
  %2114 = vmatpush1.bf16.msra.mxu0 %v2111
  %2115 = vmatprep.subr.bf16.mxu0 0
  %2116 = vmatpush1.bf16.msra.mxu0 0
  %2117 = vmatprep.subr.bf16.mxu0 0
  %2118 = vmatpush1.bf16.msra.mxu0 0
  %2119 = vmatprep.subr.bf16.mxu0 0
  %2120 = vmatpush1.bf16.msra.mxu0 0
  %2121 = vmatprep.subr.bf16.mxu0 0
  %2122 = vmatpush1.bf16.msra.mxu0 0
  %2123 = vmatprep.subr.bf16.mxu0 0
  %2124 = vmatpush1.bf16.msra.mxu0 0
  %2125 = vmatprep.subr.bf16.mxu0 0
  %2126 = vmatpush1.bf16.msra.mxu0 0
  %2127 = vmatprep.subr.bf16.mxu0 0
  %2128 = vmatpush1.bf16.msra.mxu0 0
  %2129 = vmatprep.subr.bf16.mxu0 0
  %2130 = vmatpush1.bf16.msra.mxu0 0
  %2131 = vmatprep.subr.bf16.mxu0 0
  %2132 = vmatpush1.bf16.msra.mxu0 0
  %2133 = vmatprep.subr.bf16.mxu0 0
  %2134 = vmatpush1.bf16.msra.mxu0 0
  %2135 = vmatprep.subr.bf16.mxu0 0
  %2136 = vmatpush1.bf16.msra.mxu0 0
  %2137 = vmatprep.subr.bf16.mxu0 0
  %2138 = vmatpush1.bf16.msra.mxu0 0
  %2139 = vmatprep.subr.bf16.mxu0 0
  %2140 = vmatpush1.bf16.msra.mxu0 0
  %2141 = vmatprep.subr.bf16.mxu0 0
  %2142 = vmatpush1.bf16.msra.mxu0 0
  %2143 = vmatprep.subr.bf16.mxu0 0
  %2144 = vmatpush1.bf16.msra.mxu0 0
  %2145 = vmatprep.mubr.bf16.mxu0 0
  %2146 = vmatmul.mubr.bf16.gmra.mrb[0].mxu0 %v2108
  %v2147 = vpop.f32.mrb[0].mxu0
  %v2148 = vadd.f32 0.0, %v2147
  %v2149 = vpop.f32.mrb[0].mxu0
  %v2150 = vpop.f32.mrb[0].mxu0
  %v2151 = vpop.f32.mrb[0].mxu0
  %2152 = vdwg.mxu0
  %2153 = vrot.lane.b32.xlu0 %v1594, 64
  %v2154 = vpop.permute.xlu0 %2153
  %v2156 = vsel %vm243, %v2098, 0
  %v2159 = vsel %vm760, %v2154, 0
  %2161 = vmatprep.subr.bf16.mxu0 0
  %2162 = vmatpush1.bf16.msra.mxu0 %v2159
  %2163 = vmatprep.subr.bf16.mxu0 0
  %2164 = vmatpush1.bf16.msra.mxu0 0
  %2165 = vmatprep.subr.bf16.mxu0 0
  %2166 = vmatpush1.bf16.msra.mxu0 0
  %2167 = vmatprep.subr.bf16.mxu0 0
  %2168 = vmatpush1.bf16.msra.mxu0 0
  %2169 = vmatprep.subr.bf16.mxu0 0
  %2170 = vmatpush1.bf16.msra.mxu0 0
  %2171 = vmatprep.subr.bf16.mxu0 0
  %2172 = vmatpush1.bf16.msra.mxu0 0
  %2173 = vmatprep.subr.bf16.mxu0 0
  %2174 = vmatpush1.bf16.msra.mxu0 0
  %2175 = vmatprep.subr.bf16.mxu0 0
  %2176 = vmatpush1.bf16.msra.mxu0 0
  %2177 = vmatprep.subr.bf16.mxu0 0
  %2178 = vmatpush1.bf16.msra.mxu0 0
  %2179 = vmatprep.subr.bf16.mxu0 0
  %2180 = vmatpush1.bf16.msra.mxu0 0
  %2181 = vmatprep.subr.bf16.mxu0 0
  %2182 = vmatpush1.bf16.msra.mxu0 0
  %2183 = vmatprep.subr.bf16.mxu0 0
  %2184 = vmatpush1.bf16.msra.mxu0 0
  %2185 = vmatprep.subr.bf16.mxu0 0
  %2186 = vmatpush1.bf16.msra.mxu0 0
  %2187 = vmatprep.subr.bf16.mxu0 0
  %2188 = vmatpush1.bf16.msra.mxu0 0
  %2189 = vmatprep.subr.bf16.mxu0 0
  %2190 = vmatpush1.bf16.msra.mxu0 0
  %2191 = vmatprep.subr.bf16.mxu0 0
  %2192 = vmatpush1.bf16.msra.mxu0 0
  %2193 = vmatprep.mubr.bf16.mxu0 0
  %2194 = vmatmul.mubr.bf16.gmra.mrb[0].mxu0 %v2156
  %v2195 = vpop.f32.mrb[0].mxu0
  %v2196 = vadd.f32 0.0, %v2195
  %v2197 = vpop.f32.mrb[0].mxu0
  %v2198 = vpop.f32.mrb[0].mxu0
  %v2199 = vpop.f32.mrb[0].mxu0
  %2200 = vdwg.mxu0
  %2201 = vrot.lane.b32.xlu0 %v1595, 64
  %v2202 = vpop.permute.xlu0 %2201
  %v2204 = vsel %vm243, %v2099, 0
  %v2207 = vsel %vm760, %v2202, 0
  %2209 = vmatprep.subr.bf16.mxu0 0
  %2210 = vmatpush1.bf16.msra.mxu0 %v2207
  %2211 = vmatprep.subr.bf16.mxu0 0
  %2212 = vmatpush1.bf16.msra.mxu0 0
  %2213 = vmatprep.subr.bf16.mxu0 0
  %2214 = vmatpush1.bf16.msra.mxu0 0
  %2215 = vmatprep.subr.bf16.mxu0 0
  %2216 = vmatpush1.bf16.msra.mxu0 0
  %2217 = vmatprep.subr.bf16.mxu0 0
  %2218 = vmatpush1.bf16.msra.mxu0 0
  %2219 = vmatprep.subr.bf16.mxu0 0
  %2220 = vmatpush1.bf16.msra.mxu0 0
  %2221 = vmatprep.subr.bf16.mxu0 0
  %2222 = vmatpush1.bf16.msra.mxu0 0
  %2223 = vmatprep.subr.bf16.mxu0 0
  %2224 = vmatpush1.bf16.msra.mxu0 0
  %2225 = vmatprep.subr.bf16.mxu0 0
  %2226 = vmatpush1.bf16.msra.mxu0 0
  %2227 = vmatprep.subr.bf16.mxu0 0
  %2228 = vmatpush1.bf16.msra.mxu0 0
  %2229 = vmatprep.subr.bf16.mxu0 0
  %2230 = vmatpush1.bf16.msra.mxu0 0
  %2231 = vmatprep.subr.bf16.mxu0 0
  %2232 = vmatpush1.bf16.msra.mxu0 0
  %2233 = vmatprep.subr.bf16.mxu0 0
  %2234 = vmatpush1.bf16.msra.mxu0 0
  %2235 = vmatprep.subr.bf16.mxu0 0
  %2236 = vmatpush1.bf16.msra.mxu0 0
  %2237 = vmatprep.subr.bf16.mxu0 0
  %2238 = vmatpush1.bf16.msra.mxu0 0
  %2239 = vmatprep.subr.bf16.mxu0 0
  %2240 = vmatpush1.bf16.msra.mxu0 0
  %2241 = vmatprep.mubr.bf16.mxu0 0
  %2242 = vmatmul.mubr.bf16.gmra.mrb[0].mxu0 %v2204
  %v2243 = vpop.f32.mrb[0].mxu0
  %v2244 = vadd.f32 0.0, %v2243
  %v2245 = vpop.f32.mrb[0].mxu0
  %v2246 = vpop.f32.mrb[0].mxu0
  %v2247 = vpop.f32.mrb[0].mxu0
  %2248 = vdwg.mxu0
  %2249 = vrot.lane.b32.xlu0 %v1596, 64
  %v2250 = vpop.permute.xlu0 %2249
  %v2252 = vsel %vm243, %v2100, 0
  %v2255 = vsel %vm760, %v2250, 0
  %2257 = vmatprep.subr.bf16.mxu0 0
  %2258 = vmatpush1.bf16.msra.mxu0 %v2255
  %2259 = vmatprep.subr.bf16.mxu0 0
  %2260 = vmatpush1.bf16.msra.mxu0 0
  %2261 = vmatprep.subr.bf16.mxu0 0
  %2262 = vmatpush1.bf16.msra.mxu0 0
  %2263 = vmatprep.subr.bf16.mxu0 0
  %2264 = vmatpush1.bf16.msra.mxu0 0
  %2265 = vmatprep.subr.bf16.mxu0 0
  %2266 = vmatpush1.bf16.msra.mxu0 0
  %2267 = vmatprep.subr.bf16.mxu0 0
  %2268 = vmatpush1.bf16.msra.mxu0 0
  %2269 = vmatprep.subr.bf16.mxu0 0
  %2270 = vmatpush1.bf16.msra.mxu0 0
  %2271 = vmatprep.subr.bf16.mxu0 0
  %2272 = vmatpush1.bf16.msra.mxu0 0
  %2273 = vmatprep.subr.bf16.mxu0 0
  %2274 = vmatpush1.bf16.msra.mxu0 0
  %2275 = vmatprep.subr.bf16.mxu0 0
  %2276 = vmatpush1.bf16.msra.mxu0 0
  %2277 = vmatprep.subr.bf16.mxu0 0
  %2278 = vmatpush1.bf16.msra.mxu0 0
  %2279 = vmatprep.subr.bf16.mxu0 0
  %2280 = vmatpush1.bf16.msra.mxu0 0
  %2281 = vmatprep.subr.bf16.mxu0 0
  %2282 = vmatpush1.bf16.msra.mxu0 0
  %2283 = vmatprep.subr.bf16.mxu0 0
  %2284 = vmatpush1.bf16.msra.mxu0 0
  %2285 = vmatprep.subr.bf16.mxu0 0
  %2286 = vmatpush1.bf16.msra.mxu0 0
  %2287 = vmatprep.subr.bf16.mxu0 0
  %2288 = vmatpush1.bf16.msra.mxu0 0
  %2289 = vmatprep.mubr.bf16.mxu0 0
  %2290 = vmatmul.mubr.bf16.gmra.mrb[0].mxu0 %v2252
  %v2291 = vpop.f32.mrb[0].mxu0
  %v2292 = vadd.f32 0.0, %v2291
  %v2293 = vpop.f32.mrb[0].mxu0
  %v2294 = vpop.f32.mrb[0].mxu0
  %v2295 = vpop.f32.mrb[0].mxu0
  %2296 = vdwg.mxu0
  %2297 = vrot.lane.b32.xlu0 %v1597, 64
  %v2298 = vpop.permute.xlu0 %2297
  %v2300 = vsel %vm243, %v2101, 0
  %v2303 = vsel %vm760, %v2298, 0
  %2305 = vmatprep.subr.bf16.mxu0 0
  %2306 = vmatpush1.bf16.msra.mxu0 %v2303
  %2307 = vmatprep.subr.bf16.mxu0 0
  %2308 = vmatpush1.bf16.msra.mxu0 0
  %2309 = vmatprep.subr.bf16.mxu0 0
  %2310 = vmatpush1.bf16.msra.mxu0 0
  %2311 = vmatprep.subr.bf16.mxu0 0
  %2312 = vmatpush1.bf16.msra.mxu0 0
  %2313 = vmatprep.subr.bf16.mxu0 0
  %2314 = vmatpush1.bf16.msra.mxu0 0
  %2315 = vmatprep.subr.bf16.mxu0 0
  %2316 = vmatpush1.bf16.msra.mxu0 0
  %2317 = vmatprep.subr.bf16.mxu0 0
  %2318 = vmatpush1.bf16.msra.mxu0 0
  %2319 = vmatprep.subr.bf16.mxu0 0
  %2320 = vmatpush1.bf16.msra.mxu0 0
  %2321 = vmatprep.subr.bf16.mxu0 0
  %2322 = vmatpush1.bf16.msra.mxu0 0
  %2323 = vmatprep.subr.bf16.mxu0 0
  %2324 = vmatpush1.bf16.msra.mxu0 0
  %2325 = vmatprep.subr.bf16.mxu0 0
  %2326 = vmatpush1.bf16.msra.mxu0 0
  %2327 = vmatprep.subr.bf16.mxu0 0
  %2328 = vmatpush1.bf16.msra.mxu0 0
  %2329 = vmatprep.subr.bf16.mxu0 0
  %2330 = vmatpush1.bf16.msra.mxu0 0
  %2331 = vmatprep.subr.bf16.mxu0 0
  %2332 = vmatpush1.bf16.msra.mxu0 0
  %2333 = vmatprep.subr.bf16.mxu0 0
  %2334 = vmatpush1.bf16.msra.mxu0 0
  %2335 = vmatprep.subr.bf16.mxu0 0
  %2336 = vmatpush1.bf16.msra.mxu0 0
  %2337 = vmatprep.mubr.bf16.mxu0 0
  %2338 = vmatmul.mubr.bf16.gmra.mrb[0].mxu0 %v2300
  %v2339 = vpop.f32.mrb[0].mxu0
  %v2340 = vadd.f32 0.0, %v2339
  %v2341 = vpop.f32.mrb[0].mxu0
  %v2342 = vpop.f32.mrb[0].mxu0
  %v2343 = vpop.f32.mrb[0].mxu0
  %2344 = vdwg.mxu0
  %2345 = vrot.lane.b32.xlu0 %v1598, 64
  %v2346 = vpop.permute.xlu0 %2345
  %v2348 = vsel %vm243, %v2102, 0
  %v2351 = vsel %vm760, %v2346, 0
  %2353 = vmatprep.subr.bf16.mxu0 0
  %2354 = vmatpush1.bf16.msra.mxu0 %v2351
  %2355 = vmatprep.subr.bf16.mxu0 0
  %2356 = vmatpush1.bf16.msra.mxu0 0
  %2357 = vmatprep.subr.bf16.mxu0 0
  %2358 = vmatpush1.bf16.msra.mxu0 0
  %2359 = vmatprep.subr.bf16.mxu0 0
  %2360 = vmatpush1.bf16.msra.mxu0 0
  %2361 = vmatprep.subr.bf16.mxu0 0
  %2362 = vmatpush1.bf16.msra.mxu0 0
  %2363 = vmatprep.subr.bf16.mxu0 0
  %2364 = vmatpush1.bf16.msra.mxu0 0
  %2365 = vmatprep.subr.bf16.mxu0 0
  %2366 = vmatpush1.bf16.msra.mxu0 0
  %2367 = vmatprep.subr.bf16.mxu0 0
  %2368 = vmatpush1.bf16.msra.mxu0 0
  %2369 = vmatprep.subr.bf16.mxu0 0
  %2370 = vmatpush1.bf16.msra.mxu0 0
  %2371 = vmatprep.subr.bf16.mxu0 0
  %2372 = vmatpush1.bf16.msra.mxu0 0
  %2373 = vmatprep.subr.bf16.mxu0 0
  %2374 = vmatpush1.bf16.msra.mxu0 0
  %2375 = vmatprep.subr.bf16.mxu0 0
  %2376 = vmatpush1.bf16.msra.mxu0 0
  %2377 = vmatprep.subr.bf16.mxu0 0
  %2378 = vmatpush1.bf16.msra.mxu0 0
  %2379 = vmatprep.subr.bf16.mxu0 0
  %2380 = vmatpush1.bf16.msra.mxu0 0
  %2381 = vmatprep.subr.bf16.mxu0 0
  %2382 = vmatpush1.bf16.msra.mxu0 0
  %2383 = vmatprep.subr.bf16.mxu0 0
  %2384 = vmatpush1.bf16.msra.mxu0 0
  %2385 = vmatprep.mubr.bf16.mxu0 0
  %2386 = vmatmul.mubr.bf16.gmra.mrb[0].mxu0 %v2348
  %v2387 = vpop.f32.mrb[0].mxu0
  %v2388 = vadd.f32 0.0, %v2387
  %v2389 = vpop.f32.mrb[0].mxu0
  %v2390 = vpop.f32.mrb[0].mxu0
  %v2391 = vpop.f32.mrb[0].mxu0
  %2392 = vdwg.mxu0
  %2393 = vrot.lane.b32.xlu0 %v1599, 64
  %v2394 = vpop.permute.xlu0 %2393
  %v2396 = vsel %vm243, %v2103, 0
  %v2399 = vsel %vm760, %v2394, 0
  %2401 = vmatprep.subr.bf16.mxu0 0
  %2402 = vmatpush1.bf16.msra.mxu0 %v2399
  %2403 = vmatprep.subr.bf16.mxu0 0
  %2404 = vmatpush1.bf16.msra.mxu0 0
  %2405 = vmatprep.subr.bf16.mxu0 0
  %2406 = vmatpush1.bf16.msra.mxu0 0
  %2407 = vmatprep.subr.bf16.mxu0 0
  %2408 = vmatpush1.bf16.msra.mxu0 0
  %2409 = vmatprep.subr.bf16.mxu0 0
  %2410 = vmatpush1.bf16.msra.mxu0 0
  %2411 = vmatprep.subr.bf16.mxu0 0
  %2412 = vmatpush1.bf16.msra.mxu0 0
  %2413 = vmatprep.subr.bf16.mxu0 0
  %2414 = vmatpush1.bf16.msra.mxu0 0
  %2415 = vmatprep.subr.bf16.mxu0 0
  %2416 = vmatpush1.bf16.msra.mxu0 0
  %2417 = vmatprep.subr.bf16.mxu0 0
  %2418 = vmatpush1.bf16.msra.mxu0 0
  %2419 = vmatprep.subr.bf16.mxu0 0
  %2420 = vmatpush1.bf16.msra.mxu0 0
  %2421 = vmatprep.subr.bf16.mxu0 0
  %2422 = vmatpush1.bf16.msra.mxu0 0
  %2423 = vmatprep.subr.bf16.mxu0 0
  %2424 = vmatpush1.bf16.msra.mxu0 0
  %2425 = vmatprep.subr.bf16.mxu0 0
  %2426 = vmatpush1.bf16.msra.mxu0 0
  %2427 = vmatprep.subr.bf16.mxu0 0
  %2428 = vmatpush1.bf16.msra.mxu0 0
  %2429 = vmatprep.subr.bf16.mxu0 0
  %2430 = vmatpush1.bf16.msra.mxu0 0
  %2431 = vmatprep.subr.bf16.mxu0 0
  %2432 = vmatpush1.bf16.msra.mxu0 0
  %2433 = vmatprep.mubr.bf16.mxu0 0
  %2434 = vmatmul.mubr.bf16.gmra.mrb[0].mxu0 %v2396
  %v2435 = vpop.f32.mrb[0].mxu0
  %v2436 = vadd.f32 0.0, %v2435
  %v2437 = vpop.f32.mrb[0].mxu0
  %v2438 = vpop.f32.mrb[0].mxu0
  %v2439 = vpop.f32.mrb[0].mxu0
  %2440 = vdwg.mxu0
  %2441 = vrot.lane.b32.xlu0 %v1600, 64
  %v2442 = vpop.permute.xlu0 %2441
  %v2444 = vsel %vm243, %v2104, 0
  %v2447 = vsel %vm760, %v2442, 0
  %2449 = vmatprep.subr.bf16.mxu0 0
  %2450 = vmatpush1.bf16.msra.mxu0 %v2447
  %2451 = vmatprep.subr.bf16.mxu0 0
  %2452 = vmatpush1.bf16.msra.mxu0 0
  %2453 = vmatprep.subr.bf16.mxu0 0
  %2454 = vmatpush1.bf16.msra.mxu0 0
  %2455 = vmatprep.subr.bf16.mxu0 0
  %2456 = vmatpush1.bf16.msra.mxu0 0
  %2457 = vmatprep.subr.bf16.mxu0 0
  %2458 = vmatpush1.bf16.msra.mxu0 0
  %2459 = vmatprep.subr.bf16.mxu0 0
  %2460 = vmatpush1.bf16.msra.mxu0 0
  %2461 = vmatprep.subr.bf16.mxu0 0
  %2462 = vmatpush1.bf16.msra.mxu0 0
  %2463 = vmatprep.subr.bf16.mxu0 0
  %2464 = vmatpush1.bf16.msra.mxu0 0
  %2465 = vmatprep.subr.bf16.mxu0 0
  %2466 = vmatpush1.bf16.msra.mxu0 0
  %2467 = vmatprep.subr.bf16.mxu0 0
  %2468 = vmatpush1.bf16.msra.mxu0 0
  %2469 = vmatprep.subr.bf16.mxu0 0
  %2470 = vmatpush1.bf16.msra.mxu0 0
  %2471 = vmatprep.subr.bf16.mxu0 0
  %2472 = vmatpush1.bf16.msra.mxu0 0
  %2473 = vmatprep.subr.bf16.mxu0 0
  %2474 = vmatpush1.bf16.msra.mxu0 0
  %2475 = vmatprep.subr.bf16.mxu0 0
  %2476 = vmatpush1.bf16.msra.mxu0 0
  %2477 = vmatprep.subr.bf16.mxu0 0
  %2478 = vmatpush1.bf16.msra.mxu0 0
  %2479 = vmatprep.subr.bf16.mxu0 0
  %2480 = vmatpush1.bf16.msra.mxu0 0
  %2481 = vmatprep.mubr.bf16.mxu0 0
  %2482 = vmatmul.mubr.bf16.gmra.mrb[0].mxu0 %v2444
  %v2483 = vpop.f32.mrb[0].mxu0
  %v2484 = vadd.f32 0.0, %v2483
  %v2485 = vpop.f32.mrb[0].mxu0
  %v2486 = vpop.f32.mrb[0].mxu0
  %v2487 = vpop.f32.mrb[0].mxu0
  %2488 = vdwg.mxu0
  %2491 = vrot.lane.b32.xlu0 %v2244, 8
  %v2492 = vpop.permute.xlu0 %2491
  %2493 = vrot.lane.b32.xlu0 %v2292, 8
  %v2494 = vpop.permute.xlu0 %2493
  %2499 = vrot.lane.b32.xlu0 %v2340, 16
  %v2500 = vpop.permute.xlu0 %2499
  %2501 = vrot.lane.b32.xlu0 %v2388, 16
  %v2502 = vpop.permute.xlu0 %2501
  %2507 = vrot.lane.b32.xlu0 %v2436, 24
  %v2508 = vpop.permute.xlu0 %2507
  %2509 = vrot.lane.b32.xlu0 %v2484, 24
  %v2510 = vpop.permute.xlu0 %2509
  %v2513 = vsel %vm243, %v2148, %v2492
  %v2514 = vsel %vm243, %v2196, %v2494
  %v2515 = vsel %vm1166, %v2513, %v2500
  %v2516 = vsel %vm1166, %v2514, %v2502
  %v2517 = vsel %vm1169, %v2515, %v2508
  %v2518 = vsel %vm1169, %v2516, %v2510
  %s2519 = scalar_lea.vmem %s6, 16
  %v2520 = vld [vmem:[%s2519] sm:$0xf]
  %v2521 = vld [vmem:[%s2519 + $0x4] sm:$0xf]
  %v2522 = vld [vmem:[%s2519 + $0x8] sm:$0xf]
  %v2523 = vld [vmem:[%s2519 + $0xc] sm:$0xf]
  %s2524 = scalar_lea.vmem %s7, 1
  %v2525 = vld [vmem:[%s2524] sm:$0x1]
  %v2526 = vpack.c.bf16 %v2518, %v2517
  %v2528 = vlaneseq
  %v2529 = vshrl.u32 %v2528, 7
  %v2530 = vsub.s32 0, %v2529
  %v2531 = vrot.slane %v2525, %v2530
  %v2537 = vunpack.c.l.b16 %v2520
  %v2538 = vunpack.c.l.b16 %v2521
  %v2539 = vunpack.c.l.b16 %v2522
  %v2540 = vunpack.c.l.b16 %v2523
  %v2541 = vpack.c.b16 %v2538, %v2537
  %v2542 = vpack.c.b16 %v2540, %v2539
  %v2546 = vsel %vm76, %v2526, 0
  %2548 = vmatprep.subr.bf16.mxu0 0
  %2549 = vmatpush1.bf16.msra.mxu0 %v2541
  %2550 = vmatprep.subr.bf16.mxu0 0
  %2551 = vmatpush1.bf16.msra.mxu0 %v2542
  %2552 = vmatprep.subr.bf16.mxu0 0
  %2553 = vmatpush1.bf16.msra.mxu0 0
  %2554 = vmatprep.subr.bf16.mxu0 0
  %2555 = vmatpush1.bf16.msra.mxu0 0
  %2556 = vmatprep.subr.bf16.mxu0 0
  %2557 = vmatpush1.bf16.msra.mxu0 0
  %2558 = vmatprep.subr.bf16.mxu0 0
  %2559 = vmatpush1.bf16.msra.mxu0 0
  %2560 = vmatprep.subr.bf16.mxu0 0
  %2561 = vmatpush1.bf16.msra.mxu0 0
  %2562 = vmatprep.subr.bf16.mxu0 0
  %2563 = vmatpush1.bf16.msra.mxu0 0
  %2564 = vmatprep.subr.bf16.mxu0 0
  %2565 = vmatpush1.bf16.msra.mxu0 0
  %2566 = vmatprep.subr.bf16.mxu0 0
  %2567 = vmatpush1.bf16.msra.mxu0 0
  %2568 = vmatprep.subr.bf16.mxu0 0
  %2569 = vmatpush1.bf16.msra.mxu0 0
  %2570 = vmatprep.subr.bf16.mxu0 0
  %2571 = vmatpush1.bf16.msra.mxu0 0
  %2572 = vmatprep.subr.bf16.mxu0 0
  %2573 = vmatpush1.bf16.msra.mxu0 0
  %2574 = vmatprep.subr.bf16.mxu0 0
  %2575 = vmatpush1.bf16.msra.mxu0 0
  %2576 = vmatprep.subr.bf16.mxu0 0
  %2577 = vmatpush1.bf16.msra.mxu0 0
  %2578 = vmatprep.subr.bf16.mxu0 0
  %2579 = vmatpush1.bf16.msra.mxu0 0
  %2580 = vmatprep.mubr.bf16.mxu0 0
  %2581 = vmatmul.mubr.bf16.gmra.mrb[0].mxu0 %v2546
  %v2582 = vpop.f32.mrb[0].mxu0
  %v2583 = vadd.f32 %v2531, %v2582
  %v2584 = vpop.f32.mrb[0].mxu0
  %v2585 = vpop.f32.mrb[0].mxu0
  %v2586 = vadd.f32 %v2531, %v2585
  %v2587 = vpop.f32.mrb[0].mxu0
  %2588 = vdwg.mxu0
  %v2589 = vadd.f32 %v2583, %v1501
  %v2590 = vadd.f32 %v2586, %v1502
  %s2591 = scalar_lea.vmem %s8, 1
  %v2592 = vld [vmem:[%s2591] sm:$0x1]
  %s2593 = scalar_lea.vmem %s9, 1
  %v2594 = vld [vmem:[%s2593] sm:$0x1]
  %v2595 = vsel %vm76, %v2589, 0.0
  %2596 = vadd.xlane.f32.xlu0 %v2595
  %v2597 = vpop.xlane.xlu0 %2596
  %v2598 = vsel %vm76, %v2590, 0.0
  %2599 = vadd.xlane.f32.xlu0 %v2598
  %v2600 = vpop.xlane.xlu0 %2599
  %v2601 = vmul.f32 %v2597, %v83
  %v2602 = vmul.f32 %v2600, %v83
  %v2603 = vsub.f32 %v2589, %v2601
  %v2604 = vsub.f32 %v2590, %v2602
  %v2605 = vmul.f32 %v2603, %v2603
  %v2606 = vmul.f32 %v2604, %v2604
  %v2607 = vsel %vm76, %v2605, 0.0
  %2608 = vadd.xlane.f32.xlu0 %v2607
  %v2609 = vpop.xlane.xlu0 %2608
  %v2610 = vsel %vm76, %v2606, 0.0
  %2611 = vadd.xlane.f32.xlu0 %v2610
  %v2612 = vpop.xlane.xlu0 %2611
  %v2613 = vmul.f32 %v2609, %v83
  %v2614 = vmul.f32 %v2612, %v83
  %v2615 = vadd.f32 %v2613, 1e-12
  %v2616 = vadd.f32 %v2614, 1e-12
  %v2617 = vrsqrt.pop %v2615
  %v2618 = vrsqrt.pop %v2616
  %v2619 = vmul.f32 %v2603, %v2617
  %v2620 = vmul.f32 %v2604, %v2618
  %v2622 = vlaneseq
  %v2623 = vshrl.u32 %v2622, 7
  %v2624 = vsub.s32 0, %v2623
  %v2625 = vrot.slane %v2592, %v2624
  %v2627 = vmul.f32 %v2619, %v2625
  %v2628 = vmul.f32 %v2620, %v2625
  %v2630 = vlaneseq
  %v2631 = vshrl.u32 %v2630, 7
  %v2632 = vsub.s32 0, %v2631
  %v2633 = vrot.slane %v2594, %v2632
  %v2635 = vadd.f32 %v2627, %v2633
  %v2636 = vadd.f32 %v2628, %v2633
  %s2637 = scalar_lea.vmem %s10, 16
  %v2638 = vld [vmem:[%s2637] sm:$0xf]
  %v2639 = vld [vmem:[%s2637 + $0x4] sm:$0xf]
  %v2640 = vld [vmem:[%s2637 + $0x8] sm:$0xf]
  %v2641 = vld [vmem:[%s2637 + $0xc] sm:$0xf]
  %s2642 = scalar_lea.vmem %s11, 1
  %v2643 = vld [vmem:[%s2642] sm:$0x1]
  %v2644 = vpack.c.bf16 %v2636, %v2635
  %v2646 = vlaneseq
  %v2647 = vshrl.u32 %v2646, 7
  %v2648 = vsub.s32 0, %v2647
  %v2649 = vrot.slane %v2643, %v2648
  %v2655 = vunpack.c.l.b16 %v2638
  %v2656 = vunpack.c.l.b16 %v2639
  %v2657 = vunpack.c.l.b16 %v2640
  %v2658 = vunpack.c.l.b16 %v2641
  %v2659 = vpack.c.b16 %v2656, %v2655
  %v2660 = vpack.c.b16 %v2658, %v2657
  %v2664 = vsel %vm76, %v2644, 0
  %2666 = vmatprep.subr.bf16.mxu0 0
  %2667 = vmatpush1.bf16.msra.mxu0 %v2659
  %2668 = vmatprep.subr.bf16.mxu0 0
  %2669 = vmatpush1.bf16.msra.mxu0 %v2660
  %2670 = vmatprep.subr.bf16.mxu0 0
  %2671 = vmatpush1.bf16.msra.mxu0 0
  %2672 = vmatprep.subr.bf16.mxu0 0
  %2673 = vmatpush1.bf16.msra.mxu0 0
  %2674 = vmatprep.subr.bf16.mxu0 0
  %2675 = vmatpush1.bf16.msra.mxu0 0
  %2676 = vmatprep.subr.bf16.mxu0 0
  %2677 = vmatpush1.bf16.msra.mxu0 0
  %2678 = vmatprep.subr.bf16.mxu0 0
  %2679 = vmatpush1.bf16.msra.mxu0 0
  %2680 = vmatprep.subr.bf16.mxu0 0
  %2681 = vmatpush1.bf16.msra.mxu0 0
  %2682 = vmatprep.subr.bf16.mxu0 0
  %2683 = vmatpush1.bf16.msra.mxu0 0
  %2684 = vmatprep.subr.bf16.mxu0 0
  %2685 = vmatpush1.bf16.msra.mxu0 0
  %2686 = vmatprep.subr.bf16.mxu0 0
  %2687 = vmatpush1.bf16.msra.mxu0 0
  %2688 = vmatprep.subr.bf16.mxu0 0
  %2689 = vmatpush1.bf16.msra.mxu0 0
  %2690 = vmatprep.subr.bf16.mxu0 0
  %2691 = vmatpush1.bf16.msra.mxu0 0
  %2692 = vmatprep.subr.bf16.mxu0 0
  %2693 = vmatpush1.bf16.msra.mxu0 0
  %2694 = vmatprep.subr.bf16.mxu0 0
  %2695 = vmatpush1.bf16.msra.mxu0 0
  %2696 = vmatprep.subr.bf16.mxu0 0
  %2697 = vmatpush1.bf16.msra.mxu0 0
  %2698 = vmatprep.mubr.bf16.mxu0 0
  %2699 = vmatmul.mubr.bf16.gmra.mrb[0].mxu0 %v2664
  %v2700 = vpop.f32.mrb[0].mxu0
  %v2701 = vadd.f32 %v2649, %v2700
  %v2702 = vpop.f32.mrb[0].mxu0
  %v2703 = vpop.f32.mrb[0].mxu0
  %v2704 = vadd.f32 %v2649, %v2703
  %v2705 = vpop.f32.mrb[0].mxu0
  %2706 = vdwg.mxu0
  %v2707 = vmul.f32 %v2701, 0.5
  %v2708 = vmul.f32 %v2704, 0.5
  %v2709 = vmul.f32 %v2701, 0.044715
  %v2710 = vmul.f32 %v2704, 0.044715
  %v2711 = vmul.f32 %v2709, %v2701
  %v2712 = vmul.f32 %v2710, %v2704
  %v2713 = vmul.f32 %v2711, %v2701
  %v2714 = vmul.f32 %v2712, %v2704
  %v2715 = vadd.f32 %v2701, %v2713
  %v2716 = vadd.f32 %v2704, %v2714
  %v2717 = vmul.f32 %v2715, 0.7978846
  %v2718 = vmul.f32 %v2716, 0.7978846
  %v2719 = vtanh.pop %v2717
  %v2720 = vtanh.pop %v2718
  %v2721 = vadd.f32 %v2719, 1.0
  %v2722 = vadd.f32 %v2720, 1.0
  %v2723 = vmul.f32 %v2707, %v2721
  %v2724 = vmul.f32 %v2708, %v2722
  %s2725 = scalar_lea.vmem %s12, 32
  %v2726 = vld [vmem:[%s2725] sm:$0xf]
  %v2727 = vld [vmem:[%s2725 + $0x4] sm:$0xf]
  %v2728 = vld [vmem:[%s2725 + $0x8] sm:$0xf]
  %v2729 = vld [vmem:[%s2725 + $0xc] sm:$0xf]
  %v2730 = vld [vmem:[%s2725 + $0x10] sm:$0xf]
  %v2731 = vld [vmem:[%s2725 + $0x14] sm:$0xf]
  %v2732 = vld [vmem:[%s2725 + $0x18] sm:$0xf]
  %v2733 = vld [vmem:[%s2725 + $0x1c] sm:$0xf]
  %s2734 = scalar_lea.vmem %s13, 1
  %v2735 = vld [vmem:[%s2734] sm:$0x1]
  %v2736 = vpack.c.bf16 %v2724, %v2723
  %v2738 = vlaneseq
  %v2739 = vshrl.u32 %v2738, 7
  %v2740 = vsub.s32 0, %v2739
  %v2741 = vrot.slane %v2735, %v2740
  %v2751 = vunpack.c.l.b16 %v2726
  %v2752 = vunpack.c.l.b16 %v2727
  %v2753 = vunpack.c.l.b16 %v2728
  %v2754 = vunpack.c.l.b16 %v2729
  %v2755 = vunpack.c.l.b16 %v2730
  %v2756 = vunpack.c.l.b16 %v2731
  %v2757 = vunpack.c.l.b16 %v2732
  %v2758 = vunpack.c.l.b16 %v2733
  %v2759 = vpack.c.b16 %v2752, %v2751
  %v2760 = vpack.c.b16 %v2754, %v2753
  %v2761 = vpack.c.b16 %v2756, %v2755
  %v2762 = vpack.c.b16 %v2758, %v2757
  %v2768 = vsel %vm1412, %v2736, 0
  %2770 = vmatprep.subr.bf16.mxu0 0
  %2771 = vmatpush1.bf16.msra.mxu0 %v2759
  %2772 = vmatprep.subr.bf16.mxu0 0
  %2773 = vmatpush1.bf16.msra.mxu0 %v2760
  %2774 = vmatprep.subr.bf16.mxu0 0
  %2775 = vmatpush1.bf16.msra.mxu0 %v2761
  %2776 = vmatprep.subr.bf16.mxu0 0
  %2777 = vmatpush1.bf16.msra.mxu0 %v2762
  %2778 = vmatprep.subr.bf16.mxu0 0
  %2779 = vmatpush1.bf16.msra.mxu0 0
  %2780 = vmatprep.subr.bf16.mxu0 0
  %2781 = vmatpush1.bf16.msra.mxu0 0
  %2782 = vmatprep.subr.bf16.mxu0 0
  %2783 = vmatpush1.bf16.msra.mxu0 0
  %2784 = vmatprep.subr.bf16.mxu0 0
  %2785 = vmatpush1.bf16.msra.mxu0 0
  %2786 = vmatprep.subr.bf16.mxu0 0
  %2787 = vmatpush1.bf16.msra.mxu0 0
  %2788 = vmatprep.subr.bf16.mxu0 0
  %2789 = vmatpush1.bf16.msra.mxu0 0
  %2790 = vmatprep.subr.bf16.mxu0 0
  %2791 = vmatpush1.bf16.msra.mxu0 0
  %2792 = vmatprep.subr.bf16.mxu0 0
  %2793 = vmatpush1.bf16.msra.mxu0 0
  %2794 = vmatprep.subr.bf16.mxu0 0
  %2795 = vmatpush1.bf16.msra.mxu0 0
  %2796 = vmatprep.subr.bf16.mxu0 0
  %2797 = vmatpush1.bf16.msra.mxu0 0
  %2798 = vmatprep.subr.bf16.mxu0 0
  %2799 = vmatpush1.bf16.msra.mxu0 0
  %2800 = vmatprep.subr.bf16.mxu0 0
  %2801 = vmatpush1.bf16.msra.mxu0 0
  %2802 = vmatprep.mubr.bf16.mxu0 0
  %2803 = vmatmul.mubr.bf16.gmra.mrb[0].mxu0 %v2768
  %v2804 = vpop.f32.mrb[0].mxu0
  %v2805 = vadd.f32 %v2741, %v2804
  %v2806 = vpop.f32.mrb[0].mxu0
  %v2807 = vpop.f32.mrb[0].mxu0
  %v2808 = vadd.f32 %v2741, %v2807
  %v2809 = vpop.f32.mrb[0].mxu0
  %2810 = vdwg.mxu0
  %v2811 = vadd.f32 %v2805, %v2635
  %v2812 = vadd.f32 %v2808, %v2636
  %s2813 = scalar_lea.vmem %s14, 1
  %v2814 = vld [vmem:[%s2813] sm:$0x1]
  %s2815 = scalar_lea.vmem %s15, 1
  %v2816 = vld [vmem:[%s2815] sm:$0x1]
  %v2817 = vsel %vm76, %v2811, 0.0
  %2818 = vadd.xlane.f32.xlu0 %v2817
  %v2819 = vpop.xlane.xlu0 %2818
  %v2820 = vsel %vm76, %v2812, 0.0
  %2821 = vadd.xlane.f32.xlu0 %v2820
  %v2822 = vpop.xlane.xlu0 %2821
  %v2823 = vmul.f32 %v2819, %v83
  %v2824 = vmul.f32 %v2822, %v83
  %v2825 = vsub.f32 %v2811, %v2823
  %v2826 = vsub.f32 %v2812, %v2824
  %v2827 = vmul.f32 %v2825, %v2825
  %v2828 = vmul.f32 %v2826, %v2826
  %v2829 = vsel %vm76, %v2827, 0.0
  %2830 = vadd.xlane.f32.xlu0 %v2829
  %v2831 = vpop.xlane.xlu0 %2830
  %v2832 = vsel %vm76, %v2828, 0.0
  %2833 = vadd.xlane.f32.xlu0 %v2832
  %v2834 = vpop.xlane.xlu0 %2833
  %v2835 = vmul.f32 %v2831, %v83
  %v2836 = vmul.f32 %v2834, %v83
  %v2837 = vadd.f32 %v2835, 1e-12
  %v2838 = vadd.f32 %v2836, 1e-12
  %v2839 = vrsqrt.pop %v2837
  %v2840 = vrsqrt.pop %v2838
  %v2841 = vmul.f32 %v2825, %v2839
  %v2842 = vmul.f32 %v2826, %v2840
  %v2844 = vlaneseq
  %v2845 = vshrl.u32 %v2844, 7
  %v2846 = vsub.s32 0, %v2845
  %v2847 = vrot.slane %v2814, %v2846
  %v2849 = vmul.f32 %v2841, %v2847
  %v2850 = vmul.f32 %v2842, %v2847
  %v2852 = vlaneseq
  %v2853 = vshrl.u32 %v2852, 7
  %v2854 = vsub.s32 0, %v2853
  %v2855 = vrot.slane %v2816, %v2854
  %v2857 = vadd.f32 %v2849, %v2855
  %v2858 = vadd.f32 %v2850, %v2855
  %2859 = vst.msk [vmem:[#allocation2] sm:$0xff] %vm76, %v2857
  %2860 = vst.msk [vmem:[#allocation2 + $0x8] sm:$0xff] %vm76, %v2858
  %v2861 = vld [vmem:[#allocation2] ss:$8 sm:$0x3]
  %v2862 = vld [vmem:[%s16] sm:$0xf]
  %v2863 = vld [vmem:[%s16 + $0x4] sm:$0xf]
  %v2864 = vld [vmem:[%s16 + $0x8] sm:$0xf]
  %v2865 = vld [vmem:[%s16 + $0xc] sm:$0xf]
  %v2866 = vld [vmem:[%s17] sm:$0x1]
  %v2867 = vpack.c.bf16 %v2861, %v2861
  %v2869 = vlaneseq
  %v2870 = vshrl.u32 %v2869, 7
  %v2871 = vsub.s32 0, %v2870
  %v2872 = vrot.slane %v2866, %v2871
  %v2878 = vunpack.c.l.b16 %v2862
  %v2879 = vunpack.c.l.b16 %v2863
  %v2880 = vunpack.c.l.b16 %v2864
  %v2881 = vunpack.c.l.b16 %v2865
  %v2882 = vpack.c.b16 %v2879, %v2878
  %v2883 = vpack.c.b16 %v2881, %v2880
  %v2887 = vsel %vm76, %v2867, 0
  %2889 = vmatprep.subr.bf16.mxu0 0
  %2890 = vmatpush1.bf16.msra.mxu0 %v2882
  %2891 = vmatprep.subr.bf16.mxu0 0
  %2892 = vmatpush1.bf16.msra.mxu0 %v2883
  %2893 = vmatprep.subr.bf16.mxu0 0
  %2894 = vmatpush1.bf16.msra.mxu0 0
  %2895 = vmatprep.subr.bf16.mxu0 0
  %2896 = vmatpush1.bf16.msra.mxu0 0
  %2897 = vmatprep.subr.bf16.mxu0 0
  %2898 = vmatpush1.bf16.msra.mxu0 0
  %2899 = vmatprep.subr.bf16.mxu0 0
  %2900 = vmatpush1.bf16.msra.mxu0 0
  %2901 = vmatprep.subr.bf16.mxu0 0
  %2902 = vmatpush1.bf16.msra.mxu0 0
  %2903 = vmatprep.subr.bf16.mxu0 0
  %2904 = vmatpush1.bf16.msra.mxu0 0
  %2905 = vmatprep.subr.bf16.mxu0 0
  %2906 = vmatpush1.bf16.msra.mxu0 0
  %2907 = vmatprep.subr.bf16.mxu0 0
  %2908 = vmatpush1.bf16.msra.mxu0 0
  %2909 = vmatprep.subr.bf16.mxu0 0
  %2910 = vmatpush1.bf16.msra.mxu0 0
  %2911 = vmatprep.subr.bf16.mxu0 0
  %2912 = vmatpush1.bf16.msra.mxu0 0
  %2913 = vmatprep.subr.bf16.mxu0 0
  %2914 = vmatpush1.bf16.msra.mxu0 0
  %2915 = vmatprep.subr.bf16.mxu0 0
  %2916 = vmatpush1.bf16.msra.mxu0 0
  %2917 = vmatprep.subr.bf16.mxu0 0
  %2918 = vmatpush1.bf16.msra.mxu0 0
  %2919 = vmatprep.subr.bf16.mxu0 0
  %2920 = vmatpush1.bf16.msra.mxu0 0
  %2921 = vmatprep.mubr.bf16.mxu0 0
  %2922 = vmatmul.mubr.bf16.gmra.mrb[0].mxu0 %v2887
  %v2923 = vpop.f32.mrb[0].mxu0
  %v2924 = vadd.f32 %v2872, %v2923
  %v2925 = vpop.f32.mrb[0].mxu0
  %v2926 = vpop.f32.mrb[0].mxu0
  %v2927 = vpop.f32.mrb[0].mxu0
  %2928 = vdwg.mxu0
  %v2929 = vtanh.pop %v2924
  %v2930 = vld [vmem:[%s18] sm:$0xf]
  %v2931 = vld [vmem:[%s18 + $0x4] sm:$0xf]
  %v2932 = vld [vmem:[%s18 + $0x8] sm:$0xf]
  %v2933 = vld [vmem:[%s18 + $0xc] sm:$0xf]
  %v2934 = vld [vmem:[%s19] sm:$0x1]
  %v2935 = vpack.c.bf16 %v2929, %v2929
  %v2937 = vlaneseq
  %v2938 = vshrl.u32 %v2937, 7
  %v2939 = vsub.s32 0, %v2938
  %v2940 = vrot.slane %v2934, %v2939
  %v2946 = vunpack.c.l.b16 %v2930
  %v2947 = vunpack.c.l.b16 %v2931
  %v2948 = vunpack.c.l.b16 %v2932
  %v2949 = vunpack.c.l.b16 %v2933
  %v2950 = vpack.c.b16 %v2947, %v2946
  %v2951 = vpack.c.b16 %v2949, %v2948
  %v2955 = vsel %vm76, %v2935, 0
  %2957 = vmatprep.subr.bf16.mxu0 0
  %2958 = vmatpush1.bf16.msra.mxu0 %v2950
  %2959 = vmatprep.subr.bf16.mxu0 0
  %2960 = vmatpush1.bf16.msra.mxu0 %v2951
  %2961 = vmatprep.subr.bf16.mxu0 0
  %2962 = vmatpush1.bf16.msra.mxu0 0
  %2963 = vmatprep.subr.bf16.mxu0 0
  %2964 = vmatpush1.bf16.msra.mxu0 0
  %2965 = vmatprep.subr.bf16.mxu0 0
  %2966 = vmatpush1.bf16.msra.mxu0 0
  %2967 = vmatprep.subr.bf16.mxu0 0
  %2968 = vmatpush1.bf16.msra.mxu0 0
  %2969 = vmatprep.subr.bf16.mxu0 0
  %2970 = vmatpush1.bf16.msra.mxu0 0
  %2971 = vmatprep.subr.bf16.mxu0 0
  %2972 = vmatpush1.bf16.msra.mxu0 0
  %2973 = vmatprep.subr.bf16.mxu0 0
  %2974 = vmatpush1.bf16.msra.mxu0 0
  %2975 = vmatprep.subr.bf16.mxu0 0
  %2976 = vmatpush1.bf16.msra.mxu0 0
  %2977 = vmatprep.subr.bf16.mxu0 0
  %2978 = vmatpush1.bf16.msra.mxu0 0
  %2979 = vmatprep.subr.bf16.mxu0 0
  %2980 = vmatpush1.bf16.msra.mxu0 0
  %2981 = vmatprep.subr.bf16.mxu0 0
  %2982 = vmatpush1.bf16.msra.mxu0 0
  %2983 = vmatprep.subr.bf16.mxu0 0
  %2984 = vmatpush1.bf16.msra.mxu0 0
  %2985 = vmatprep.subr.bf16.mxu0 0
  %2986 = vmatpush1.bf16.msra.mxu0 0
  %2987 = vmatprep.subr.bf16.mxu0 0
  %2988 = vmatpush1.bf16.msra.mxu0 0
  %2989 = vmatprep.mubr.bf16.mxu0 0
  %2990 = vmatmul.mubr.bf16.gmra.mrb[0].mxu0 %v2955
  %v2991 = vpop.f32.mrb[0].mxu0
  %v2992 = vadd.f32 %v2940, %v2991
  %v2993 = vpop.f32.mrb[0].mxu0
  %v2994 = vpop.f32.mrb[0].mxu0
  %v2995 = vpop.f32.mrb[0].mxu0
  %2996 = vdwg.mxu0
  %v2997 = vmax.f32 %v2992, 0.0
  %v2998 = vld [vmem:[%s20] sm:$0xf]
  %v2999 = vld [vmem:[%s20 + $0x4] sm:$0xf]
  %v3000 = vld [vmem:[%s20 + $0x8] sm:$0xf]
  %v3001 = vld [vmem:[%s20 + $0xc] sm:$0xf]
  %v3002 = vld [vmem:[%s20 + $0x10] sm:$0xf]
  %v3003 = vld [vmem:[%s20 + $0x14] sm:$0xf]
  %v3004 = vld [vmem:[%s20 + $0x18] sm:$0xf]
  %v3005 = vld [vmem:[%s20 + $0x1c] sm:$0xf]
  %v3006 = vld [vmem:[%s20 + $0x20] sm:$0xf]
  %v3007 = vld [vmem:[%s20 + $0x24] sm:$0xf]
  %v3008 = vld [vmem:[%s20 + $0x28] sm:$0xf]
  %v3009 = vld [vmem:[%s20 + $0x2c] sm:$0xf]
  %v3010 = vld [vmem:[%s20 + $0x30] sm:$0xf]
  %v3011 = vld [vmem:[%s20 + $0x34] sm:$0xf]
  %v3012 = vld [vmem:[%s20 + $0x38] sm:$0xf]
  %v3013 = vld [vmem:[%s20 + $0x3c] sm:$0xf]
  %v3014 = vld [vmem:[%s21] sm:$0x1]
  %v3015 = vpack.c.bf16 %v2997, %v2997
  %v3017 = vlaneseq
  %v3018 = vshrl.u32 %v3017, 7
  %v3019 = vsub.s32 0, %v3018
  %v3020 = vrot.slane %v3014, %v3019
  %v3038 = vunpack.c.l.b16 %v2998
  %v3039 = vunpack.c.l.b16 %v2999
  %v3040 = vunpack.c.l.b16 %v3000
  %v3041 = vunpack.c.l.b16 %v3001
  %v3042 = vunpack.c.l.b16 %v3002
  %v3043 = vunpack.c.l.b16 %v3003
  %v3044 = vunpack.c.l.b16 %v3004
  %v3045 = vunpack.c.l.b16 %v3005
  %v3046 = vunpack.c.l.b16 %v3006
  %v3047 = vunpack.c.l.b16 %v3007
  %v3048 = vunpack.c.l.b16 %v3008
  %v3049 = vunpack.c.l.b16 %v3009
  %v3050 = vunpack.c.l.b16 %v3010
  %v3051 = vunpack.c.l.b16 %v3011
  %v3052 = vunpack.c.l.b16 %v3012
  %v3053 = vunpack.c.l.b16 %v3013
  %v3054 = vpack.c.b16 %v3039, %v3038
  %v3055 = vpack.c.b16 %v3041, %v3040
  %v3056 = vpack.c.b16 %v3043, %v3042
  %v3057 = vpack.c.b16 %v3045, %v3044
  %v3058 = vpack.c.b16 %v3047, %v3046
  %v3059 = vpack.c.b16 %v3049, %v3048
  %v3060 = vpack.c.b16 %v3051, %v3050
  %v3061 = vpack.c.b16 %v3053, %v3052
  %3070 = vmatprep.subr.bf16.mxu0 0
  %3071 = vmatpush1.bf16.msra.mxu0 %v3054
  %3072 = vmatprep.subr.bf16.mxu0 0
  %3073 = vmatpush1.bf16.msra.mxu0 %v3055
  %3074 = vmatprep.subr.bf16.mxu0 0
  %3075 = vmatpush1.bf16.msra.mxu0 %v3056
  %3076 = vmatprep.subr.bf16.mxu0 0
  %3077 = vmatpush1.bf16.msra.mxu0 %v3057
  %3078 = vmatprep.subr.bf16.mxu0 0
  %3079 = vmatpush1.bf16.msra.mxu0 %v3058
  %3080 = vmatprep.subr.bf16.mxu0 0
  %3081 = vmatpush1.bf16.msra.mxu0 %v3059
  %3082 = vmatprep.subr.bf16.mxu0 0
  %3083 = vmatpush1.bf16.msra.mxu0 %v3060
  %3084 = vmatprep.subr.bf16.mxu0 0
  %3085 = vmatpush1.bf16.msra.mxu0 %v3061
  %3086 = vmatprep.subr.bf16.mxu0 0
  %3087 = vmatpush1.bf16.msra.mxu0 0
  %3088 = vmatprep.subr.bf16.mxu0 0
  %3089 = vmatpush1.bf16.msra.mxu0 0
  %3090 = vmatprep.subr.bf16.mxu0 0
  %3091 = vmatpush1.bf16.msra.mxu0 0
  %3092 = vmatprep.subr.bf16.mxu0 0
  %3093 = vmatpush1.bf16.msra.mxu0 0
  %3094 = vmatprep.subr.bf16.mxu0 0
  %3095 = vmatpush1.bf16.msra.mxu0 0
  %3096 = vmatprep.subr.bf16.mxu0 0
  %3097 = vmatpush1.bf16.msra.mxu0 0
  %3098 = vmatprep.subr.bf16.mxu0 0
  %3099 = vmatpush1.bf16.msra.mxu0 0
  %3100 = vmatprep.subr.bf16.mxu0 0
  %3101 = vmatpush1.bf16.msra.mxu0 0
  %3102 = vmatprep.mubr.bf16.mxu0 0
  %3103 = vmatmul.mubr.bf16.gmra.mrb[0].mxu0 %v3015
  %v3104 = vpop.f32.mrb[0].mxu0
  %v3105 = vadd.f32 %v3020, %v3104
  %v3106 = vpop.f32.mrb[0].mxu0
  %v3107 = vpop.f32.mrb[0].mxu0
  %v3108 = vpop.f32.mrb[0].mxu0
  %3109 = vdwg.mxu0
  %vm3110 = vcmask 1041408
  %v3111 = vsel %vm3110, %v3105, -inf
  %3112 = vmax.xlane.f32.xlu0 %v3111
  %v3113 = vpop.xlane.xlu0 %3112
  %v3114 = vsub.f32 %v3105, %v3113
  %v3115 = vmul.f32 %v3114, 1.442695
  %v3116 = vpow.pop %v3115
  %v3117 = vsel %vm3110, %v3116, 0.0
  %3118 = vadd.xlane.f32.xlu0 %v3117
  %v3119 = vpop.xlane.xlu0 %3118
  %v3120 = vrcp.pop %v3119
  %v3121 = vmul.f32 %v3116, %v3120
  %3122 = vst [vmem:[%s22] sm:$0x3] %v3121
  // Predicated region
  $region90: #{forward.1} parent=0 // pred_check
    _
  $region91: #{forward.1} parent=0 // pred_check_branch
    %3124 = sbr.rel (0) target = $region93
  $region92: #{forward.1} parent=0 // pred_region
    _
  $region93: #{forward.1} parent=0 // pred_fallthru
    _
  // Predicated region
  $region94: #{forward.1} parent=0 // pred_check
    _
  $region95: #{forward.1} parent=0 // pred_check_branch
    %3126 = sbr.rel (0) target = $region97
  $region96: #{forward.1} parent=0 // pred_region
    _
  $region97: #{forward.1} parent=0 // pred_fallthru
    _

</llo_original>
